<compile_context>
chip_gen: v7x
topology: tpu7x:2x2x1
jax: 0.10.0
libtpu: 0.0.40
codegen_flags: <defaults>
</compile_context>

<pallas_src>
import math

import numpy as np
import jax
import jax.numpy as jnp
from jax.experimental import pallas as pl
from jax.experimental.pallas import tpu as pltpu  # noqa: F401  (TPU backend assumed)

# ---------------- config (small, consistent with the module) ----------------
BATCH = 2
SEQ = 16                 # seq_len
DIM = 32                 # model dim
HEADS = 4
DH = DIM // HEADS        # dim_head = 8
K_LIN = 8                # linformer k
DEPTH = 2
FF_DIM = DIM * 4         # 128
KVD = HEADS * DH         # 32 (one_kv_head=False, share_kv=False)
S = SEQ // K_LIN         # conv kernel size == stride == 2
SCALE = DH ** -0.5

ROWS = BATCH * SEQ             # 32  (batch folded into rows)
PROJ = BATCH * K_LIN           # 16  (projected kv rows, both batches)
RTOT = BATCH * HEADS * K_LIN   # 64  (kv slots in the block-diagonal attention layout)
SLAB_COLS = 128

# ---------------- packed-parameter slab layout (single VMEM operand) ----------------
_LAYOUT_ITEMS = (
    ("w0_qkv",    DIM,    3 * DIM),   # [wq*scale | wk | wv]
    ("pkbd",      PROJ,   ROWS),      # batch-block-diag proj_k.T
    ("pvbd",      PROJ,   ROWS),      # batch-block-diag proj_v.T
    ("wo0",       DIM,    DIM),
    ("w10",       DIM,    FF_DIM),
    ("w20",       FF_DIM, DIM),
    ("w1_qkva",   DIM,    3 * DIM),   # [wq*scale | wk@Ck0 | wv@Cv0]   (conv tap 0 folded)
    ("w1_qkvb",   DIM,    2 * DIM),   # [wk@Ck1 | wv@Cv1]              (conv tap 1 folded)
    ("sel0",      PROJ,   ROWS),      # 0/1 row-selection for conv tap 0
    ("sel1",      PROJ,   ROWS),      # 0/1 row-selection for conv tap 1
    ("wo1",       DIM,    DIM),
    ("w11",       DIM,    FF_DIM),
    ("w21",       FF_DIM, DIM),
    ("reps2",     RTOT,   PROJ),      # 0/1 kv-slot duplication matrix
    ("maskbd",    RTOT,   KVD),       # 0/1 head block-diagonal mask
    ("blockones", RTOT,   RTOT),      # 0/1 8-wide segment-sum matrix (softmax denom)
    ("bvalid",    ROWS,   RTOT),      # 0/1 query-batch / kv-batch validity mask
    ("vecs",      16,     SLAB_COLS), # all LN gamma/beta + bias row-vectors
)
LAYOUT = {}
_off = 0
for _n, _r, _c in _LAYOUT_ITEMS:
    LAYOUT[_n] = (_off, _r, _c)
    _off += _r
SLAB_ROWS = _off                      # 784
VEC_ROW0 = LAYOUT["vecs"][0]

# row indices inside the "vecs" sub-block
(V_AG0, V_AB0, V_BO0, V_FG0, V_FB0, V_B10, V_B20,
 V_AG1, V_AB1, V_BO1, V_FG1, V_FB1, V_B11, V_B21) = range(14)


# ---------------- in-kernel helpers ----------------
def _blk(slab_ref, name):
    r0, nr, nc = LAYOUT[name]
    return slab_ref[r0:r0 + nr, :nc]          # static view + load, free slicing


def _vec(slab_ref, idx, width):
    r = VEC_ROW0 + idx
    return slab_ref[r:r + 1, :width]          # (1, width) row vector


def _layernorm(y, g, b, eps=1e-5):
    mu = jnp.mean(y, axis=-1, keepdims=True)
    var = jnp.mean((y - mu) ** 2, axis=-1, keepdims=True)
    return (y - mu) * jax.lax.rsqrt(var + eps) * g + b


def _erf(x):
    # Abramowitz & Stegun 7.1.26 polynomial approximation, |err| < 1.5e-7.
    a1, a2, a3, a4, a5 = 0.254829592, -0.284496736, 1.421413741, -1.453152027, 1.061405429
    p = 0.3275911
    z = jnp.abs(x)
    t = 1.0 / (1.0 + p * z)
    y = 1.0 - ((((a5 * t + a4) * t + a3) * t + a2) * t + a1) * t * jnp.exp(-z * z)
    return jnp.where(x >= 0, y, -y)


def _gelu(x):
    # exact (erf-based) GELU, matching torch nn.GELU()
    return 0.5 * x * (1.0 + _erf(x * (1.0 / math.sqrt(2.0))))


# ---------------- the single fused kernel ----------------
def fused_forward_kernel(x_ref, slab_ref, o_ref):
    f32 = jnp.float32
    x = x_ref[...]                                            # (B*N, D) = (32, 32)

    # attention helper constants, loaded once and reused by both layers
    reps2 = _blk(slab_ref, "reps2")                           # (64, 16)
    maskbd = _blk(slab_ref, "maskbd")                         # (64, 32)
    blockones = _blk(slab_ref, "blockones")                   # (64, 64)
    bvalid = _blk(slab_ref, "bvalid")                         # (32, 64)

    def attend(q, pk, pv, wo, bo):
        # q: (B*N, H*DH) pre-scaled by dh**-0.5.  pk/pv: (B*K, H*DH).
        # Batch+head block-diagonal formulation: no per-batch / per-head python loops.
        kbdt = jnp.dot(reps2, pk, preferred_element_type=f32) * maskbd   # (64, 32) K^T blocks
        vbd = jnp.dot(reps2, pv, preferred_element_type=f32) * maskbd    # (64, 32) V blocks
        dots = jax.lax.dot_general(q, kbdt, (((1,), (1,)), ((), ())),
                                   preferred_element_type=f32)           # (32, 64)
        dots = jnp.where(bvalid > 0.5, dots, -1e30)                      # mask cross-batch
        dots = dots - jnp.max(dots, axis=-1, keepdims=True)
        e = jnp.exp(dots)                                                # invalid -> exactly 0
        denom = jnp.dot(e, blockones, preferred_element_type=f32)        # per-8-block sums
        p = e / (denom + (1.0 - bvalid))                                 # exact softmax
        o = jnp.dot(p, vbd, preferred_element_type=f32)                  # (32, 32) merged heads
        return jnp.dot(o, wo, preferred_element_type=f32) + bo

    # ---- layer 0: PreNorm(LinformerSelfAttention) + residual ----
    xn = _layernorm(x, _vec(slab_ref, V_AG0, DIM), _vec(slab_ref, V_AB0, DIM))
    qkv = jnp.dot(xn, _blk(slab_ref, "w0_qkv"), preferred_element_type=f32)    # (32, 96)
    q = qkv[:, :DIM]
    keys = qkv[:, DIM:2 * DIM]
    vals = qkv[:, 2 * DIM:3 * DIM]
    pk = jnp.dot(_blk(slab_ref, "pkbd"), keys, preferred_element_type=f32)     # (16, 32)
    pv = jnp.dot(_blk(slab_ref, "pvbd"), vals, preferred_element_type=f32)     # (16, 32)
    x = x + attend(q, pk, pv, _blk(slab_ref, "wo0"), _vec(slab_ref, V_BO0, DIM))

    # ---- layer 0: PreNorm(FeedForward) + residual ----
    xn = _layernorm(x, _vec(slab_ref, V_FG0, DIM), _vec(slab_ref, V_FB0, DIM))
    h = jnp.dot(xn, _blk(slab_ref, "w10"), preferred_element_type=f32) + _vec(slab_ref, V_B10, FF_DIM)
    h = _gelu(h)
    x = x + jnp.dot(h, _blk(slab_ref, "w20"), preferred_element_type=f32) + _vec(slab_ref, V_B20, DIM)

    # ---- layer 1: PreNorm(ConvLinformerSelfAttention) + residual ----
    # Conv1d(kernel=stride=S, bias=False) is folded into the QKV weights:
    #   pk|pv = Sel_0 @ (xn @ [wk@Ck0 | wv@Cv0]) + Sel_1 @ (xn @ [wk@Ck1 | wv@Cv1])
    xn = _layernorm(x, _vec(slab_ref, V_AG1, DIM), _vec(slab_ref, V_AB1, DIM))
    ya = jnp.dot(xn, _blk(slab_ref, "w1_qkva"), preferred_element_type=f32)    # (32, 96)
    q1 = ya[:, :DIM]
    kv0 = ya[:, DIM:3 * DIM]                                                   # (32, 64) tap 0
    kv1 = jnp.dot(xn, _blk(slab_ref, "w1_qkvb"), preferred_element_type=f32)   # (32, 64) tap 1
    pkv = (jnp.dot(_blk(slab_ref, "sel0"), kv0, preferred_element_type=f32)
           + jnp.dot(_blk(slab_ref, "sel1"), kv1, preferred_element_type=f32))  # (16, 64)
    x = x + attend(q1, pkv[:, :KVD], pkv[:, KVD:],
                   _blk(slab_ref, "wo1"), _vec(slab_ref, V_BO1, DIM))

    # ---- layer 1: PreNorm(FeedForward) + residual ----
    xn = _layernorm(x, _vec(slab_ref, V_FG1, DIM), _vec(slab_ref, V_FB1, DIM))
    h = jnp.dot(xn, _blk(slab_ref, "w11"), preferred_element_type=f32) + _vec(slab_ref, V_B11, FF_DIM)
    h = _gelu(h)
    x = x + jnp.dot(h, _blk(slab_ref, "w21"), preferred_element_type=f32) + _vec(slab_ref, V_B21, DIM)

    o_ref[...] = x


# ---------------- wrapper ----------------
@jax.jit
def conv_linformer_forward(x, slab):
    B, N, D = x.shape
    out = pl.pallas_call(
        fused_forward_kernel,
        out_shape=jax.ShapeDtypeStruct((B * N, D), jnp.float32),
        # gridless: each operand is a single whole-array VMEM block; the whole working
        # set (one ~400 KiB weight slab + 4 KiB activations) stays VMEM-resident.
    )(x.reshape(B * N, D), slab)
    return out.reshape(B, N, D)


# ---------------- deterministic parameter init (torch-layout) ----------------
def init_params(key):
    ks = iter(jax.random.split(key, 128))

    def unif(shape, bound):
        return jax.random.uniform(next(ks), shape, jnp.float32, -bound, bound)

    def linear_w(fan_in, fan_out):     # stored as torch W.T -> (in, out)
        return unif((fan_in, fan_out), 1.0 / math.sqrt(fan_in))

    def linear_b(fan_in, fan_out):
        return unif((1, fan_out), 1.0 / math.sqrt(fan_in))

    def ff_params():
        return dict(ln_g=jnp.ones((1, DIM), jnp.float32),
                    ln_b=jnp.zeros((1, DIM), jnp.float32),
                    w1=linear_w(DIM, FF_DIM), b1=linear_b(DIM, FF_DIM),
                    w2=linear_w(FF_DIM, DIM), b2=linear_b(FF_DIM, DIM))

    layers = []
    for _ in range(DEPTH // 2):   # LinformerSelfAttention layers
        attn = dict(ln_g=jnp.ones((1, DIM), jnp.float32),
                    ln_b=jnp.zeros((1, DIM), jnp.float32),
                    wq=linear_w(DIM, KVD),
                    wk=linear_w(DIM, KVD),
                    wv=linear_w(DIM, KVD),
                    pkT=unif((K_LIN, SEQ), 1.0 / math.sqrt(K_LIN)),  # proj_k.T
                    pvT=unif((K_LIN, SEQ), 1.0 / math.sqrt(K_LIN)),  # proj_v.T
                    wo=linear_w(KVD, DIM),
                    bo=linear_b(KVD, DIM))
        layers.append(dict(type='linformer', attn=attn, ff=ff_params()))

    for _ in range(DEPTH // 2, DEPTH):   # ConvLinformerSelfAttention layers
        bound = 1.0 / math.sqrt(KVD * S)
        attn = dict(ln_g=jnp.ones((1, DIM), jnp.float32),
                    ln_b=jnp.zeros((1, DIM), jnp.float32),
                    wq=linear_w(DIM, KVD),
                    wk=linear_w(DIM, KVD),
                    wv=linear_w(DIM, KVD),
                    wck_oct=unif((KVD, KVD, S), bound),   # torch Conv1d weight (out, in, t)
                    wcv_oct=unif((KVD, KVD, S), bound),
                    wo=linear_w(KVD, DIM),
                    bo=linear_b(KVD, DIM))
        layers.append(dict(type='conv', attn=attn, ff=ff_params()))

    return dict(layers=layers)


# ---------------- one-time wrapper-side weight / constant packing ----------------
def _attention_constants():
    r = np.arange(RTOT)                       # kv slot: b*(H*K) + h*K + k
    b_r = r // (HEADS * K_LIN)
    h_r = (r % (HEADS * K_LIN)) // K_LIN
    k_r = r % K_LIN

    reps2 = np.zeros((RTOT, PROJ), np.float32)
    reps2[r, b_r * K_LIN + k_r] = 1.0

    c = np.arange(KVD)
    maskbd = (h_r[:, None] == (c[None, :] // DH)).astype(np.float32)

    c2 = np.arange(RTOT)
    blockones = ((r[:, None] // K_LIN) == (c2[None, :] // K_LIN)).astype(np.float32)

    n = np.arange(ROWS)
    bvalid = ((n[:, None] // SEQ) == (c2[None, :] // (HEADS * K_LIN))).astype(np.float32)

    sels = []
    for t in range(S):
        m = np.zeros((PROJ, ROWS), np.float32)
        for b in range(BATCH):
            for j in range(K_LIN):
                m[b * K_LIN + j, b * SEQ + j * S + t] = 1.0
        sels.append(m)

    return dict(reps2=reps2, maskbd=maskbd, blockones=blockones, bvalid=bvalid, sel=sels)


def pack_slab(params):
    assert len(params['layers']) == 2
    l0, l1 = params['layers']
    assert l0['type'] == 'linformer' and l1['type'] == 'conv'
    a0, f0 = l0['attn'], l0['ff']
    a1, f1 = l1['attn'], l1['ff']
    eye_b = jnp.eye(BATCH, dtype=jnp.float32)

    # layer-0 fused weights (q pre-scaled by dh**-0.5)
    w0_qkv = jnp.concatenate([a0['wq'] * SCALE, a0['wk'], a0['wv']], axis=1)
    pkbd = jnp.kron(eye_b, a0['pkT'])
    pvbd = jnp.kron(eye_b, a0['pvT'])

    # layer-1: conv tap weights folded into the K/V projections
    ak = [a1['wk'] @ a1['wck_oct'][:, :, t].T for t in range(S)]
    av = [a1['wv'] @ a1['wcv_oct'][:, :, t].T for t in range(S)]
    w1_qkva = jnp.concatenate([a1['wq'] * SCALE, ak[0], av[0]], axis=1)   # (32, 96)
    w1_qkvb = jnp.concatenate([ak[1], av[1]], axis=1)                     # (32, 64)

    consts = _attention_constants()

    vec_rows = [a0['ln_g'], a0['ln_b'], a0['bo'], f0['ln_g'], f0['ln_b'], f0['b1'], f0['b2'],
                a1['ln_g'], a1['ln_b'], a1['bo'], f1['ln_g'], f1['ln_b'], f1['b1'], f1['b2']]
    vecs = jnp.zeros((16, SLAB_COLS), jnp.float32)
    for i, v in enumerate(vec_rows):
        vecs = vecs.at[i, :v.shape[1]].set(v[0])

    blocks = {
        'w0_qkv': w0_qkv, 'pkbd': pkbd, 'pvbd': pvbd, 'wo0': a0['wo'],
        'w10': f0['w1'], 'w20': f0['w2'],
        'w1_qkva': w1_qkva, 'w1_qkvb': w1_qkvb,
        'sel0': consts['sel'][0], 'sel1': consts['sel'][1],
        'wo1': a1['wo'], 'w11': f1['w1'], 'w21': f1['w2'],
        'reps2': consts['reps2'], 'maskbd': consts['maskbd'],
        'blockones': consts['blockones'], 'bvalid': consts['bvalid'],
        'vecs': vecs,
    }
    rows = []
    for name, nr, nc in _LAYOUT_ITEMS:
        b = jnp.asarray(blocks[name], jnp.float32)
        assert b.shape == (nr, nc), (name, b.shape, (nr, nc))
        rows.append(jnp.pad(b, ((0, 0), (0, SLAB_COLS - nc))))
    slab = jnp.concatenate(rows, axis=0)
    assert slab.shape == (SLAB_ROWS, SLAB_COLS)
    return slab


# ---------------- plain-JAX reference (mirrors the torch forward) ----------------
def reference_forward(x, params):
    HI = jax.lax.Precision.HIGHEST

    def layernorm(y, g, b):
        mu = y.mean(-1, keepdims=True)
        var = ((y - mu) ** 2).mean(-1, keepdims=True)
        return (y - mu) / jnp.sqrt(var + 1e-5) * g + b

    def mha(q, pk, pv):
        B, N, _ = q.shape
        Kp = pk.shape[1]
        qh = q.reshape(B, N, HEADS, DH).transpose(0, 2, 1, 3)
        kh = pk.reshape(B, Kp, HEADS, DH).transpose(0, 2, 1, 3)
        vh = pv.reshape(B, Kp, HEADS, DH).transpose(0, 2, 1, 3)
        dots = jnp.einsum('bhnd,bhkd->bhnk', qh, kh, precision=HI) * (DH ** -0.5)
        a = jax.nn.softmax(dots, axis=-1)
        o = jnp.einsum('bhnk,bhkd->bhnd', a, vh, precision=HI)
        return o.transpose(0, 2, 1, 3).reshape(B, N, HEADS * DH)

    for lp in params['layers']:
        ap, fp = lp['attn'], lp['ff']
        xn = layernorm(x, ap['ln_g'], ap['ln_b'])
        q = jnp.einsum('bnd,de->bne', xn, ap['wq'], precision=HI)
        keys = jnp.einsum('bnd,de->bne', xn, ap['wk'], precision=HI)
        vals = jnp.einsum('bnd,de->bne', xn, ap['wv'], precision=HI)
        if lp['type'] == 'linformer':
            pk = jnp.einsum('bnd,kn->bkd', keys, ap['pkT'], precision=HI)
            pv = jnp.einsum('bnd,kn->bkd', vals, ap['pvT'], precision=HI)
        else:
            k4 = keys.reshape(x.shape[0], K_LIN, S, KVD)
            v4 = vals.reshape(x.shape[0], K_LIN, S, KVD)
            pk = jnp.einsum('bjtc,oct->bjo', k4, ap['wck_oct'], precision=HI)
            pv = jnp.einsum('bjtc,oct->bjo', v4, ap['wcv_oct'], precision=HI)
        o = mha(q, pk, pv)
        x = x + jnp.einsum('bne,ed->bnd', o, ap['wo'], precision=HI) + ap['bo']
        xn2 = layernorm(x, fp['ln_g'], fp['ln_b'])
        h = jnp.einsum('bnd,df->bnf', xn2, fp['w1'], precision=HI) + fp['b1']
        h = jax.nn.gelu(h, approximate=False)
        x = x + jnp.einsum('bnf,fd->bnd', h, fp['w2'], precision=HI) + fp['b2']
    return x


if __name__ == "__main__":
    key = jax.random.PRNGKey(0)
    kx, kp = jax.random.split(key)
    x = jax.random.normal(kx, (BATCH, SEQ, DIM), jnp.float32)
    params = init_params(kp)
    slab = pack_slab(params)

    out = conv_linformer_forward(x, slab)
    out = jax.block_until_ready(out)

    ref = reference_forward(x, params)
    assert out.shape == x.shape
    assert bool(jnp.all(jnp.isfinite(out)))
    assert bool(jnp.allclose(out, ref, atol=2e-3, rtol=2e-3))
    print("KERNEL_OK")
</pallas_src>

<mosaic_0001>
module attributes {stable_mosaic.version = 11 : i64} {
  func.func @fused_forward_kernel(%arg0: memref<32x32xf32, #tpu.memory_space<vmem>>, %arg1: memref<784x128xf32, #tpu.memory_space<vmem>>, %arg2: memref<32x32xf32, #tpu.memory_space<vmem>>) attributes {dimension_semantics = [], scalar_prefetch = 0 : i64, scratch_operands = 0 : i64, tpu.core_type = #tpu.core_type<tc>} {
    %c0 = arith.constant 0 : index
    %c0_0 = arith.constant 0 : index
    %0 = vector.load %arg0[%c0, %c0_0] : memref<32x32xf32, #tpu.memory_space<vmem>>, vector<32x32xf32>
    %c544 = arith.constant 544 : index
    %c0_1 = arith.constant 0 : index
    %1 = vector.load %arg1[%c544, %c0_1] : memref<784x128xf32, #tpu.memory_space<vmem>>, vector<64x16xf32>
    %c608 = arith.constant 608 : index
    %c0_2 = arith.constant 0 : index
    %2 = vector.load %arg1[%c608, %c0_2] : memref<784x128xf32, #tpu.memory_space<vmem>>, vector<64x32xf32>
    %c672 = arith.constant 672 : index
    %c0_3 = arith.constant 0 : index
    %3 = vector.load %arg1[%c672, %c0_3] : memref<784x128xf32, #tpu.memory_space<vmem>>, vector<64x64xf32>
    %c736 = arith.constant 736 : index
    %c0_4 = arith.constant 0 : index
    %4 = vector.load %arg1[%c736, %c0_4] : memref<784x128xf32, #tpu.memory_space<vmem>>, vector<32x64xf32>
    %c768 = arith.constant 768 : index
    %c0_5 = arith.constant 0 : index
    %5 = vector.load %arg1[%c768, %c0_5] : memref<784x128xf32, #tpu.memory_space<vmem>>, vector<1x32xf32>
    %c769 = arith.constant 769 : index
    %c0_6 = arith.constant 0 : index
    %6 = vector.load %arg1[%c769, %c0_6] : memref<784x128xf32, #tpu.memory_space<vmem>>, vector<1x32xf32>
    %cst = arith.constant dense<0.000000e+00> : vector<32xf32>
    %7 = vector.multi_reduction <add>, %0, %cst [1] : vector<32x32xf32> to vector<32xf32>
    %8 = vector.shape_cast %7 : vector<32xf32> to vector<32x1xf32>
    %cst_7 = arith.constant 3.200000e+01 : f32
    %9 = vector.broadcast %cst_7 : f32 to vector<32x1xf32>
    %10 = arith.divf %8, %9 : vector<32x1xf32>
    %11 = vector.broadcast %10 : vector<32x1xf32> to vector<32x32xf32>
    %12 = arith.subf %0, %11 : vector<32x32xf32>
    %13 = arith.mulf %12, %12 : vector<32x32xf32>
    %cst_8 = arith.constant dense<0.000000e+00> : vector<32xf32>
    %14 = vector.multi_reduction <add>, %13, %cst_8 [1] : vector<32x32xf32> to vector<32xf32>
    %15 = vector.shape_cast %14 : vector<32xf32> to vector<32x1xf32>
    %cst_9 = arith.constant 3.200000e+01 : f32
    %16 = vector.broadcast %cst_9 : f32 to vector<32x1xf32>
    %17 = arith.divf %15, %16 : vector<32x1xf32>
    %18 = vector.broadcast %10 : vector<32x1xf32> to vector<32x32xf32>
    %19 = arith.subf %0, %18 : vector<32x32xf32>
    %cst_10 = arith.constant 9.99999974E-6 : f32
    %20 = vector.broadcast %cst_10 : f32 to vector<32x1xf32>
    %21 = arith.addf %17, %20 : vector<32x1xf32>
    %22 = math.rsqrt %21 : vector<32x1xf32>
    %23 = vector.broadcast %22 : vector<32x1xf32> to vector<32x32xf32>
    %24 = arith.mulf %19, %23 : vector<32x32xf32>
    %25 = vector.broadcast %5 : vector<1x32xf32> to vector<32x32xf32>
    %26 = arith.mulf %24, %25 : vector<32x32xf32>
    %27 = vector.broadcast %6 : vector<1x32xf32> to vector<32x32xf32>
    %28 = arith.addf %26, %27 : vector<32x32xf32>
    %c0_11 = arith.constant 0 : index
    %c0_12 = arith.constant 0 : index
    %29 = vector.load %arg1[%c0_11, %c0_12] : memref<784x128xf32, #tpu.memory_space<vmem>>, vector<32x96xf32>
    %cst_13 = arith.constant dense<0.000000e+00> : vector<32x96xf32>
    %30 = tpu.matmul %28, %29, %cst_13 {dimension_numbers = #tpu.dot_dimension_numbers<[1], [0], [0], [1], [0, 0, 1, 1], [], []>} : vector<32x32xf32>, vector<32x96xf32>, vector<32x96xf32> -> vector<32x96xf32>
    %31 = vector.extract_strided_slice %30 {offsets = [0, 0], sizes = [32, 32], strides = [1, 1]} : vector<32x96xf32> to vector<32x32xf32>
    %32 = vector.extract_strided_slice %30 {offsets = [0, 32], sizes = [32, 32], strides = [1, 1]} : vector<32x96xf32> to vector<32x32xf32>
    %33 = vector.extract_strided_slice %30 {offsets = [0, 64], sizes = [32, 32], strides = [1, 1]} : vector<32x96xf32> to vector<32x32xf32>
    %c32 = arith.constant 32 : index
    %c0_14 = arith.constant 0 : index
    %34 = vector.load %arg1[%c32, %c0_14] : memref<784x128xf32, #tpu.memory_space<vmem>>, vector<16x32xf32>
    %cst_15 = arith.constant dense<0.000000e+00> : vector<16x32xf32>
    %35 = tpu.matmul %34, %32, %cst_15 {dimension_numbers = #tpu.dot_dimension_numbers<[1], [0], [0], [1], [0, 0, 1, 1], [], []>} : vector<16x32xf32>, vector<32x32xf32>, vector<16x32xf32> -> vector<16x32xf32>
    %c48 = arith.constant 48 : index
    %c0_16 = arith.constant 0 : index
    %36 = vector.load %arg1[%c48, %c0_16] : memref<784x128xf32, #tpu.memory_space<vmem>>, vector<16x32xf32>
    %cst_17 = arith.constant dense<0.000000e+00> : vector<16x32xf32>
    %37 = tpu.matmul %36, %33, %cst_17 {dimension_numbers = #tpu.dot_dimension_numbers<[1], [0], [0], [1], [0, 0, 1, 1], [], []>} : vector<16x32xf32>, vector<32x32xf32>, vector<16x32xf32> -> vector<16x32xf32>
    %c64 = arith.constant 64 : index
    %c0_18 = arith.constant 0 : index
    %38 = vector.load %arg1[%c64, %c0_18] : memref<784x128xf32, #tpu.memory_space<vmem>>, vector<32x32xf32>
    %c770 = arith.constant 770 : index
    %c0_19 = arith.constant 0 : index
    %39 = vector.load %arg1[%c770, %c0_19] : memref<784x128xf32, #tpu.memory_space<vmem>>, vector<1x32xf32>
    %cst_20 = arith.constant dense<0.000000e+00> : vector<64x32xf32>
    %40 = tpu.matmul %1, %35, %cst_20 {dimension_numbers = #tpu.dot_dimension_numbers<[1], [0], [0], [1], [0, 0, 1, 1], [], []>} : vector<64x16xf32>, vector<16x32xf32>, vector<64x32xf32> -> vector<64x32xf32>
    %41 = arith.mulf %40, %2 : vector<64x32xf32>
    %cst_21 = arith.constant dense<0.000000e+00> : vector<64x32xf32>
    %42 = tpu.matmul %1, %37, %cst_21 {dimension_numbers = #tpu.dot_dimension_numbers<[1], [0], [0], [1], [0, 0, 1, 1], [], []>} : vector<64x16xf32>, vector<16x32xf32>, vector<64x32xf32> -> vector<64x32xf32>
    %43 = arith.mulf %42, %2 : vector<64x32xf32>
    %cst_22 = arith.constant dense<0.000000e+00> : vector<32x64xf32>
    %44 = tpu.matmul %31, %41, %cst_22 {dimension_numbers = #tpu.dot_dimension_numbers<[1], [1], [0], [0], [0, 0, 1, 0], [], []>} : vector<32x32xf32>, vector<64x32xf32>, vector<32x64xf32> -> vector<32x64xf32>
    %cst_23 = arith.constant 5.000000e-01 : f32
    %45 = vector.broadcast %cst_23 : f32 to vector<32x64xf32>
    %46 = arith.cmpf ogt, %4, %45 : vector<32x64xf32>
    %cst_24 = arith.constant -1.000000e+30 : f32
    %47 = vector.broadcast %cst_24 : f32 to vector<32x64xf32>
    %48 = arith.select %46, %44, %47 : vector<32x64xi1>, vector<32x64xf32>
    %cst_25 = arith.constant dense<0xFF800000> : vector<32xf32>
    %49 = vector.multi_reduction <maximumf>, %48, %cst_25 [1] : vector<32x64xf32> to vector<32xf32>
    %50 = vector.shape_cast %49 : vector<32xf32> to vector<32x1xf32>
    %51 = vector.broadcast %50 : vector<32x1xf32> to vector<32x64xf32>
    %52 = arith.subf %48, %51 : vector<32x64xf32>
    %53 = math.exp %52 : vector<32x64xf32>
    %cst_26 = arith.constant dense<0.000000e+00> : vector<32x64xf32>
    %54 = tpu.matmul %53, %3, %cst_26 {dimension_numbers = #tpu.dot_dimension_numbers<[1], [0], [0], [1], [0, 0, 1, 1], [], []>} : vector<32x64xf32>, vector<64x64xf32>, vector<32x64xf32> -> vector<32x64xf32>
    %cst_27 = arith.constant 1.000000e+00 : f32
    %55 = vector.broadcast %cst_27 : f32 to vector<32x64xf32>
    %56 = arith.subf %55, %4 : vector<32x64xf32>
    %57 = arith.addf %54, %56 : vector<32x64xf32>
    %58 = arith.divf %53, %57 : vector<32x64xf32>
    %cst_28 = arith.constant dense<0.000000e+00> : vector<32x32xf32>
    %59 = tpu.matmul %58, %43, %cst_28 {dimension_numbers = #tpu.dot_dimension_numbers<[1], [0], [0], [1], [0, 0, 1, 1], [], []>} : vector<32x64xf32>, vector<64x32xf32>, vector<32x32xf32> -> vector<32x32xf32>
    %cst_29 = arith.constant dense<0.000000e+00> : vector<32x32xf32>
    %60 = tpu.matmul %59, %38, %cst_29 {dimension_numbers = #tpu.dot_dimension_numbers<[1], [0], [0], [1], [0, 0, 1, 1], [], []>} : vector<32x32xf32>, vector<32x32xf32>, vector<32x32xf32> -> vector<32x32xf32>
    %61 = vector.broadcast %39 : vector<1x32xf32> to vector<32x32xf32>
    %62 = arith.addf %60, %61 : vector<32x32xf32>
    %63 = arith.addf %0, %62 : vector<32x32xf32>
    %c771 = arith.constant 771 : index
    %c0_30 = arith.constant 0 : index
    %64 = vector.load %arg1[%c771, %c0_30] : memref<784x128xf32, #tpu.memory_space<vmem>>, vector<1x32xf32>
    %c772 = arith.constant 772 : index
    %c0_31 = arith.constant 0 : index
    %65 = vector.load %arg1[%c772, %c0_31] : memref<784x128xf32, #tpu.memory_space<vmem>>, vector<1x32xf32>
    %cst_32 = arith.constant dense<0.000000e+00> : vector<32xf32>
    %66 = vector.multi_reduction <add>, %63, %cst_32 [1] : vector<32x32xf32> to vector<32xf32>
    %67 = vector.shape_cast %66 : vector<32xf32> to vector<32x1xf32>
    %cst_33 = arith.constant 3.200000e+01 : f32
    %68 = vector.broadcast %cst_33 : f32 to vector<32x1xf32>
    %69 = arith.divf %67, %68 : vector<32x1xf32>
    %70 = vector.broadcast %69 : vector<32x1xf32> to vector<32x32xf32>
    %71 = arith.subf %63, %70 : vector<32x32xf32>
    %72 = arith.mulf %71, %71 : vector<32x32xf32>
    %cst_34 = arith.constant dense<0.000000e+00> : vector<32xf32>
    %73 = vector.multi_reduction <add>, %72, %cst_34 [1] : vector<32x32xf32> to vector<32xf32>
    %74 = vector.shape_cast %73 : vector<32xf32> to vector<32x1xf32>
    %cst_35 = arith.constant 3.200000e+01 : f32
    %75 = vector.broadcast %cst_35 : f32 to vector<32x1xf32>
    %76 = arith.divf %74, %75 : vector<32x1xf32>
    %77 = vector.broadcast %69 : vector<32x1xf32> to vector<32x32xf32>
    %78 = arith.subf %63, %77 : vector<32x32xf32>
    %cst_36 = arith.constant 9.99999974E-6 : f32
    %79 = vector.broadcast %cst_36 : f32 to vector<32x1xf32>
    %80 = arith.addf %76, %79 : vector<32x1xf32>
    %81 = math.rsqrt %80 : vector<32x1xf32>
    %82 = vector.broadcast %81 : vector<32x1xf32> to vector<32x32xf32>
    %83 = arith.mulf %78, %82 : vector<32x32xf32>
    %84 = vector.broadcast %64 : vector<1x32xf32> to vector<32x32xf32>
    %85 = arith.mulf %83, %84 : vector<32x32xf32>
    %86 = vector.broadcast %65 : vector<1x32xf32> to vector<32x32xf32>
    %87 = arith.addf %85, %86 : vector<32x32xf32>
    %c96 = arith.constant 96 : index
    %c0_37 = arith.constant 0 : index
    %88 = vector.load %arg1[%c96, %c0_37] : memref<784x128xf32, #tpu.memory_space<vmem>>, vector<32x128xf32>
    %cst_38 = arith.constant dense<0.000000e+00> : vector<32x128xf32>
    %89 = tpu.matmul %87, %88, %cst_38 {dimension_numbers = #tpu.dot_dimension_numbers<[1], [0], [0], [1], [0, 0, 1, 1], [], []>} : vector<32x32xf32>, vector<32x128xf32>, vector<32x128xf32> -> vector<32x128xf32>
    %c773 = arith.constant 773 : index
    %c0_39 = arith.constant 0 : index
    %90 = vector.load %arg1[%c773, %c0_39] : memref<784x128xf32, #tpu.memory_space<vmem>>, vector<1x128xf32>
    %91 = vector.broadcast %90 : vector<1x128xf32> to vector<32x128xf32>
    %92 = arith.addf %89, %91 : vector<32x128xf32>
    %cst_40 = arith.constant 5.000000e-01 : f32
    %93 = vector.broadcast %cst_40 : f32 to vector<32x128xf32>
    %94 = arith.mulf %93, %92 : vector<32x128xf32>
    %cst_41 = arith.constant 0.707106769 : f32
    %95 = vector.broadcast %cst_41 : f32 to vector<32x128xf32>
    %96 = arith.mulf %92, %95 : vector<32x128xf32>
    %97 = math.absf %96 : vector<32x128xf32>
    %cst_42 = arith.constant 0.327591091 : f32
    %98 = vector.broadcast %cst_42 : f32 to vector<32x128xf32>
    %99 = arith.mulf %98, %97 : vector<32x128xf32>
    %cst_43 = arith.constant 1.000000e+00 : f32
    %100 = vector.broadcast %cst_43 : f32 to vector<32x128xf32>
    %101 = arith.addf %100, %99 : vector<32x128xf32>
    %cst_44 = arith.constant 1.000000e+00 : f32
    %102 = vector.broadcast %cst_44 : f32 to vector<32x128xf32>
    %103 = arith.divf %102, %101 : vector<32x128xf32>
    %cst_45 = arith.constant 1.06140542 : f32
    %104 = vector.broadcast %cst_45 : f32 to vector<32x128xf32>
    %105 = arith.mulf %104, %103 : vector<32x128xf32>
    %cst_46 = arith.constant -1.45315206 : f32
    %106 = vector.broadcast %cst_46 : f32 to vector<32x128xf32>
    %107 = arith.addf %105, %106 : vector<32x128xf32>
    %108 = arith.mulf %107, %103 : vector<32x128xf32>
    %cst_47 = arith.constant 1.42141378 : f32
    %109 = vector.broadcast %cst_47 : f32 to vector<32x128xf32>
    %110 = arith.addf %108, %109 : vector<32x128xf32>
    %111 = arith.mulf %110, %103 : vector<32x128xf32>
    %cst_48 = arith.constant -0.284496725 : f32
    %112 = vector.broadcast %cst_48 : f32 to vector<32x128xf32>
    %113 = arith.addf %111, %112 : vector<32x128xf32>
    %114 = arith.mulf %113, %103 : vector<32x128xf32>
    %cst_49 = arith.constant 0.254829586 : f32
    %115 = vector.broadcast %cst_49 : f32 to vector<32x128xf32>
    %116 = arith.addf %114, %115 : vector<32x128xf32>
    %117 = arith.mulf %116, %103 : vector<32x128xf32>
    %cst_50 = arith.constant 0.000000e+00 : f32
    %118 = vector.broadcast %cst_50 : f32 to vector<32x128xf32>
    %119 = arith.subf %118, %97 : vector<32x128xf32>
    %120 = arith.mulf %119, %97 : vector<32x128xf32>
    %121 = math.exp %120 : vector<32x128xf32>
    %122 = arith.mulf %117, %121 : vector<32x128xf32>
    %cst_51 = arith.constant 1.000000e+00 : f32
    %123 = vector.broadcast %cst_51 : f32 to vector<32x128xf32>
    %124 = arith.subf %123, %122 : vector<32x128xf32>
    %cst_52 = arith.constant 0.000000e+00 : f32
    %125 = vector.broadcast %cst_52 : f32 to vector<32x128xf32>
    %126 = arith.cmpf oge, %96, %125 : vector<32x128xf32>
    %cst_53 = arith.constant 0.000000e+00 : f32
    %127 = vector.broadcast %cst_53 : f32 to vector<32x128xf32>
    %128 = arith.subf %127, %124 : vector<32x128xf32>
    %129 = arith.select %126, %124, %128 : vector<32x128xi1>, vector<32x128xf32>
    %cst_54 = arith.constant 1.000000e+00 : f32
    %130 = vector.broadcast %cst_54 : f32 to vector<32x128xf32>
    %131 = arith.addf %130, %129 : vector<32x128xf32>
    %132 = arith.mulf %94, %131 : vector<32x128xf32>
    %c128 = arith.constant 128 : index
    %c0_55 = arith.constant 0 : index
    %133 = vector.load %arg1[%c128, %c0_55] : memref<784x128xf32, #tpu.memory_space<vmem>>, vector<128x32xf32>
    %cst_56 = arith.constant dense<0.000000e+00> : vector<32x32xf32>
    %134 = tpu.matmul %132, %133, %cst_56 {dimension_numbers = #tpu.dot_dimension_numbers<[1], [0], [0], [1], [0, 0, 1, 1], [], []>} : vector<32x128xf32>, vector<128x32xf32>, vector<32x32xf32> -> vector<32x32xf32>
    %135 = arith.addf %63, %134 : vector<32x32xf32>
    %c774 = arith.constant 774 : index
    %c0_57 = arith.constant 0 : index
    %136 = vector.load %arg1[%c774, %c0_57] : memref<784x128xf32, #tpu.memory_space<vmem>>, vector<1x32xf32>
    %137 = vector.broadcast %136 : vector<1x32xf32> to vector<32x32xf32>
    %138 = arith.addf %135, %137 : vector<32x32xf32>
    %c775 = arith.constant 775 : index
    %c0_58 = arith.constant 0 : index
    %139 = vector.load %arg1[%c775, %c0_58] : memref<784x128xf32, #tpu.memory_space<vmem>>, vector<1x32xf32>
    %c776 = arith.constant 776 : index
    %c0_59 = arith.constant 0 : index
    %140 = vector.load %arg1[%c776, %c0_59] : memref<784x128xf32, #tpu.memory_space<vmem>>, vector<1x32xf32>
    %cst_60 = arith.constant dense<0.000000e+00> : vector<32xf32>
    %141 = vector.multi_reduction <add>, %138, %cst_60 [1] : vector<32x32xf32> to vector<32xf32>
    %142 = vector.shape_cast %141 : vector<32xf32> to vector<32x1xf32>
    %cst_61 = arith.constant 3.200000e+01 : f32
    %143 = vector.broadcast %cst_61 : f32 to vector<32x1xf32>
    %144 = arith.divf %142, %143 : vector<32x1xf32>
    %145 = vector.broadcast %144 : vector<32x1xf32> to vector<32x32xf32>
    %146 = arith.subf %138, %145 : vector<32x32xf32>
    %147 = arith.mulf %146, %146 : vector<32x32xf32>
    %cst_62 = arith.constant dense<0.000000e+00> : vector<32xf32>
    %148 = vector.multi_reduction <add>, %147, %cst_62 [1] : vector<32x32xf32> to vector<32xf32>
    %149 = vector.shape_cast %148 : vector<32xf32> to vector<32x1xf32>
    %cst_63 = arith.constant 3.200000e+01 : f32
    %150 = vector.broadcast %cst_63 : f32 to vector<32x1xf32>
    %151 = arith.divf %149, %150 : vector<32x1xf32>
    %152 = vector.broadcast %144 : vector<32x1xf32> to vector<32x32xf32>
    %153 = arith.subf %138, %152 : vector<32x32xf32>
    %cst_64 = arith.constant 9.99999974E-6 : f32
    %154 = vector.broadcast %cst_64 : f32 to vector<32x1xf32>
    %155 = arith.addf %151, %154 : vector<32x1xf32>
    %156 = math.rsqrt %155 : vector<32x1xf32>
    %157 = vector.broadcast %156 : vector<32x1xf32> to vector<32x32xf32>
    %158 = arith.mulf %153, %157 : vector<32x32xf32>
    %159 = vector.broadcast %139 : vector<1x32xf32> to vector<32x32xf32>
    %160 = arith.mulf %158, %159 : vector<32x32xf32>
    %161 = vector.broadcast %140 : vector<1x32xf32> to vector<32x32xf32>
    %162 = arith.addf %160, %161 : vector<32x32xf32>
    %c256 = arith.constant 256 : index
    %c0_65 = arith.constant 0 : index
    %163 = vector.load %arg1[%c256, %c0_65] : memref<784x128xf32, #tpu.memory_space<vmem>>, vector<32x96xf32>
    %cst_66 = arith.constant dense<0.000000e+00> : vector<32x96xf32>
    %164 = tpu.matmul %162, %163, %cst_66 {dimension_numbers = #tpu.dot_dimension_numbers<[1], [0], [0], [1], [0, 0, 1, 1], [], []>} : vector<32x32xf32>, vector<32x96xf32>, vector<32x96xf32> -> vector<32x96xf32>
    %165 = vector.extract_strided_slice %164 {offsets = [0, 0], sizes = [32, 32], strides = [1, 1]} : vector<32x96xf32> to vector<32x32xf32>
    %166 = vector.extract_strided_slice %164 {offsets = [0, 32], sizes = [32, 64], strides = [1, 1]} : vector<32x96xf32> to vector<32x64xf32>
    %c288 = arith.constant 288 : index
    %c0_67 = arith.constant 0 : index
    %167 = vector.load %arg1[%c288, %c0_67] : memref<784x128xf32, #tpu.memory_space<vmem>>, vector<32x64xf32>
    %cst_68 = arith.constant dense<0.000000e+00> : vector<32x64xf32>
    %168 = tpu.matmul %162, %167, %cst_68 {dimension_numbers = #tpu.dot_dimension_numbers<[1], [0], [0], [1], [0, 0, 1, 1], [], []>} : vector<32x32xf32>, vector<32x64xf32>, vector<32x64xf32> -> vector<32x64xf32>
    %c320 = arith.constant 320 : index
    %c0_69 = arith.constant 0 : index
    %169 = vector.load %arg1[%c320, %c0_69] : memref<784x128xf32, #tpu.memory_space<vmem>>, vector<16x32xf32>
    %cst_70 = arith.constant dense<0.000000e+00> : vector<16x64xf32>
    %170 = tpu.matmul %169, %166, %cst_70 {dimension_numbers = #tpu.dot_dimension_numbers<[1], [0], [0], [1], [0, 0, 1, 1], [], []>} : vector<16x32xf32>, vector<32x64xf32>, vector<16x64xf32> -> vector<16x64xf32>
    %c336 = arith.constant 336 : index
    %c0_71 = arith.constant 0 : index
    %171 = vector.load %arg1[%c336, %c0_71] : memref<784x128xf32, #tpu.memory_space<vmem>>, vector<16x32xf32>
    %cst_72 = arith.constant dense<0.000000e+00> : vector<16x64xf32>
    %172 = tpu.matmul %171, %168, %cst_72 {dimension_numbers = #tpu.dot_dimension_numbers<[1], [0], [0], [1], [0, 0, 1, 1], [], []>} : vector<16x32xf32>, vector<32x64xf32>, vector<16x64xf32> -> vector<16x64xf32>
    %173 = arith.addf %170, %172 : vector<16x64xf32>
    %174 = vector.extract_strided_slice %173 {offsets = [0, 0], sizes = [16, 32], strides = [1, 1]} : vector<16x64xf32> to vector<16x32xf32>
    %175 = vector.extract_strided_slice %173 {offsets = [0, 32], sizes = [16, 32], strides = [1, 1]} : vector<16x64xf32> to vector<16x32xf32>
    %c352 = arith.constant 352 : index
    %c0_73 = arith.constant 0 : index
    %176 = vector.load %arg1[%c352, %c0_73] : memref<784x128xf32, #tpu.memory_space<vmem>>, vector<32x32xf32>
    %c777 = arith.constant 777 : index
    %c0_74 = arith.constant 0 : index
    %177 = vector.load %arg1[%c777, %c0_74] : memref<784x128xf32, #tpu.memory_space<vmem>>, vector<1x32xf32>
    %cst_75 = arith.constant dense<0.000000e+00> : vector<64x32xf32>
    %178 = tpu.matmul %1, %174, %cst_75 {dimension_numbers = #tpu.dot_dimension_numbers<[1], [0], [0], [1], [0, 0, 1, 1], [], []>} : vector<64x16xf32>, vector<16x32xf32>, vector<64x32xf32> -> vector<64x32xf32>
    %179 = arith.mulf %178, %2 : vector<64x32xf32>
    %cst_76 = arith.constant dense<0.000000e+00> : vector<64x32xf32>
    %180 = tpu.matmul %1, %175, %cst_76 {dimension_numbers = #tpu.dot_dimension_numbers<[1], [0], [0], [1], [0, 0, 1, 1], [], []>} : vector<64x16xf32>, vector<16x32xf32>, vector<64x32xf32> -> vector<64x32xf32>
    %181 = arith.mulf %180, %2 : vector<64x32xf32>
    %cst_77 = arith.constant dense<0.000000e+00> : vector<32x64xf32>
    %182 = tpu.matmul %165, %179, %cst_77 {dimension_numbers = #tpu.dot_dimension_numbers<[1], [1], [0], [0], [0, 0, 1, 0], [], []>} : vector<32x32xf32>, vector<64x32xf32>, vector<32x64xf32> -> vector<32x64xf32>
    %cst_78 = arith.constant 5.000000e-01 : f32
    %183 = vector.broadcast %cst_78 : f32 to vector<32x64xf32>
    %184 = arith.cmpf ogt, %4, %183 : vector<32x64xf32>
    %cst_79 = arith.constant -1.000000e+30 : f32
    %185 = vector.broadcast %cst_79 : f32 to vector<32x64xf32>
    %186 = arith.select %184, %182, %185 : vector<32x64xi1>, vector<32x64xf32>
    %cst_80 = arith.constant dense<0xFF800000> : vector<32xf32>
    %187 = vector.multi_reduction <maximumf>, %186, %cst_80 [1] : vector<32x64xf32> to vector<32xf32>
    %188 = vector.shape_cast %187 : vector<32xf32> to vector<32x1xf32>
    %189 = vector.broadcast %188 : vector<32x1xf32> to vector<32x64xf32>
    %190 = arith.subf %186, %189 : vector<32x64xf32>
    %191 = math.exp %190 : vector<32x64xf32>
    %cst_81 = arith.constant dense<0.000000e+00> : vector<32x64xf32>
    %192 = tpu.matmul %191, %3, %cst_81 {dimension_numbers = #tpu.dot_dimension_numbers<[1], [0], [0], [1], [0, 0, 1, 1], [], []>} : vector<32x64xf32>, vector<64x64xf32>, vector<32x64xf32> -> vector<32x64xf32>
    %cst_82 = arith.constant 1.000000e+00 : f32
    %193 = vector.broadcast %cst_82 : f32 to vector<32x64xf32>
    %194 = arith.subf %193, %4 : vector<32x64xf32>
    %195 = arith.addf %192, %194 : vector<32x64xf32>
    %196 = arith.divf %191, %195 : vector<32x64xf32>
    %cst_83 = arith.constant dense<0.000000e+00> : vector<32x32xf32>
    %197 = tpu.matmul %196, %181, %cst_83 {dimension_numbers = #tpu.dot_dimension_numbers<[1], [0], [0], [1], [0, 0, 1, 1], [], []>} : vector<32x64xf32>, vector<64x32xf32>, vector<32x32xf32> -> vector<32x32xf32>
    %cst_84 = arith.constant dense<0.000000e+00> : vector<32x32xf32>
    %198 = tpu.matmul %197, %176, %cst_84 {dimension_numbers = #tpu.dot_dimension_numbers<[1], [0], [0], [1], [0, 0, 1, 1], [], []>} : vector<32x32xf32>, vector<32x32xf32>, vector<32x32xf32> -> vector<32x32xf32>
    %199 = vector.broadcast %177 : vector<1x32xf32> to vector<32x32xf32>
    %200 = arith.addf %198, %199 : vector<32x32xf32>
    %201 = arith.addf %138, %200 : vector<32x32xf32>
    %c778 = arith.constant 778 : index
    %c0_85 = arith.constant 0 : index
    %202 = vector.load %arg1[%c778, %c0_85] : memref<784x128xf32, #tpu.memory_space<vmem>>, vector<1x32xf32>
    %c779 = arith.constant 779 : index
    %c0_86 = arith.constant 0 : index
    %203 = vector.load %arg1[%c779, %c0_86] : memref<784x128xf32, #tpu.memory_space<vmem>>, vector<1x32xf32>
    %cst_87 = arith.constant dense<0.000000e+00> : vector<32xf32>
    %204 = vector.multi_reduction <add>, %201, %cst_87 [1] : vector<32x32xf32> to vector<32xf32>
    %205 = vector.shape_cast %204 : vector<32xf32> to vector<32x1xf32>
    %cst_88 = arith.constant 3.200000e+01 : f32
    %206 = vector.broadcast %cst_88 : f32 to vector<32x1xf32>
    %207 = arith.divf %205, %206 : vector<32x1xf32>
    %208 = vector.broadcast %207 : vector<32x1xf32> to vector<32x32xf32>
    %209 = arith.subf %201, %208 : vector<32x32xf32>
    %210 = arith.mulf %209, %209 : vector<32x32xf32>
    %cst_89 = arith.constant dense<0.000000e+00> : vector<32xf32>
    %211 = vector.multi_reduction <add>, %210, %cst_89 [1] : vector<32x32xf32> to vector<32xf32>
    %212 = vector.shape_cast %211 : vector<32xf32> to vector<32x1xf32>
    %cst_90 = arith.constant 3.200000e+01 : f32
    %213 = vector.broadcast %cst_90 : f32 to vector<32x1xf32>
    %214 = arith.divf %212, %213 : vector<32x1xf32>
    %215 = vector.broadcast %207 : vector<32x1xf32> to vector<32x32xf32>
    %216 = arith.subf %201, %215 : vector<32x32xf32>
    %cst_91 = arith.constant 9.99999974E-6 : f32
    %217 = vector.broadcast %cst_91 : f32 to vector<32x1xf32>
    %218 = arith.addf %214, %217 : vector<32x1xf32>
    %219 = math.rsqrt %218 : vector<32x1xf32>
    %220 = vector.broadcast %219 : vector<32x1xf32> to vector<32x32xf32>
    %221 = arith.mulf %216, %220 : vector<32x32xf32>
    %222 = vector.broadcast %202 : vector<1x32xf32> to vector<32x32xf32>
    %223 = arith.mulf %221, %222 : vector<32x32xf32>
    %224 = vector.broadcast %203 : vector<1x32xf32> to vector<32x32xf32>
    %225 = arith.addf %223, %224 : vector<32x32xf32>
    %c384 = arith.constant 384 : index
    %c0_92 = arith.constant 0 : index
    %226 = vector.load %arg1[%c384, %c0_92] : memref<784x128xf32, #tpu.memory_space<vmem>>, vector<32x128xf32>
    %cst_93 = arith.constant dense<0.000000e+00> : vector<32x128xf32>
    %227 = tpu.matmul %225, %226, %cst_93 {dimension_numbers = #tpu.dot_dimension_numbers<[1], [0], [0], [1], [0, 0, 1, 1], [], []>} : vector<32x32xf32>, vector<32x128xf32>, vector<32x128xf32> -> vector<32x128xf32>
    %c780 = arith.constant 780 : index
    %c0_94 = arith.constant 0 : index
    %228 = vector.load %arg1[%c780, %c0_94] : memref<784x128xf32, #tpu.memory_space<vmem>>, vector<1x128xf32>
    %229 = vector.broadcast %228 : vector<1x128xf32> to vector<32x128xf32>
    %230 = arith.addf %227, %229 : vector<32x128xf32>
    %cst_95 = arith.constant 5.000000e-01 : f32
    %231 = vector.broadcast %cst_95 : f32 to vector<32x128xf32>
    %232 = arith.mulf %231, %230 : vector<32x128xf32>
    %cst_96 = arith.constant 0.707106769 : f32
    %233 = vector.broadcast %cst_96 : f32 to vector<32x128xf32>
    %234 = arith.mulf %230, %233 : vector<32x128xf32>
    %235 = math.absf %234 : vector<32x128xf32>
    %cst_97 = arith.constant 0.327591091 : f32
    %236 = vector.broadcast %cst_97 : f32 to vector<32x128xf32>
    %237 = arith.mulf %236, %235 : vector<32x128xf32>
    %cst_98 = arith.constant 1.000000e+00 : f32
    %238 = vector.broadcast %cst_98 : f32 to vector<32x128xf32>
    %239 = arith.addf %238, %237 : vector<32x128xf32>
    %cst_99 = arith.constant 1.000000e+00 : f32
    %240 = vector.broadcast %cst_99 : f32 to vector<32x128xf32>
    %241 = arith.divf %240, %239 : vector<32x128xf32>
    %cst_100 = arith.constant 1.06140542 : f32
    %242 = vector.broadcast %cst_100 : f32 to vector<32x128xf32>
    %243 = arith.mulf %242, %241 : vector<32x128xf32>
    %cst_101 = arith.constant -1.45315206 : f32
    %244 = vector.broadcast %cst_101 : f32 to vector<32x128xf32>
    %245 = arith.addf %243, %244 : vector<32x128xf32>
    %246 = arith.mulf %245, %241 : vector<32x128xf32>
    %cst_102 = arith.constant 1.42141378 : f32
    %247 = vector.broadcast %cst_102 : f32 to vector<32x128xf32>
    %248 = arith.addf %246, %247 : vector<32x128xf32>
    %249 = arith.mulf %248, %241 : vector<32x128xf32>
    %cst_103 = arith.constant -0.284496725 : f32
    %250 = vector.broadcast %cst_103 : f32 to vector<32x128xf32>
    %251 = arith.addf %249, %250 : vector<32x128xf32>
    %252 = arith.mulf %251, %241 : vector<32x128xf32>
    %cst_104 = arith.constant 0.254829586 : f32
    %253 = vector.broadcast %cst_104 : f32 to vector<32x128xf32>
    %254 = arith.addf %252, %253 : vector<32x128xf32>
    %255 = arith.mulf %254, %241 : vector<32x128xf32>
    %cst_105 = arith.constant 0.000000e+00 : f32
    %256 = vector.broadcast %cst_105 : f32 to vector<32x128xf32>
    %257 = arith.subf %256, %235 : vector<32x128xf32>
    %258 = arith.mulf %257, %235 : vector<32x128xf32>
    %259 = math.exp %258 : vector<32x128xf32>
    %260 = arith.mulf %255, %259 : vector<32x128xf32>
    %cst_106 = arith.constant 1.000000e+00 : f32
    %261 = vector.broadcast %cst_106 : f32 to vector<32x128xf32>
    %262 = arith.subf %261, %260 : vector<32x128xf32>
    %cst_107 = arith.constant 0.000000e+00 : f32
    %263 = vector.broadcast %cst_107 : f32 to vector<32x128xf32>
    %264 = arith.cmpf oge, %234, %263 : vector<32x128xf32>
    %cst_108 = arith.constant 0.000000e+00 : f32
    %265 = vector.broadcast %cst_108 : f32 to vector<32x128xf32>
    %266 = arith.subf %265, %262 : vector<32x128xf32>
    %267 = arith.select %264, %262, %266 : vector<32x128xi1>, vector<32x128xf32>
    %cst_109 = arith.constant 1.000000e+00 : f32
    %268 = vector.broadcast %cst_109 : f32 to vector<32x128xf32>
    %269 = arith.addf %268, %267 : vector<32x128xf32>
    %270 = arith.mulf %232, %269 : vector<32x128xf32>
    %c416 = arith.constant 416 : index
    %c0_110 = arith.constant 0 : index
    %271 = vector.load %arg1[%c416, %c0_110] : memref<784x128xf32, #tpu.memory_space<vmem>>, vector<128x32xf32>
    %cst_111 = arith.constant dense<0.000000e+00> : vector<32x32xf32>
    %272 = tpu.matmul %270, %271, %cst_111 {dimension_numbers = #tpu.dot_dimension_numbers<[1], [0], [0], [1], [0, 0, 1, 1], [], []>} : vector<32x128xf32>, vector<128x32xf32>, vector<32x32xf32> -> vector<32x32xf32>
    %273 = arith.addf %201, %272 : vector<32x32xf32>
    %c781 = arith.constant 781 : index
    %c0_112 = arith.constant 0 : index
    %274 = vector.load %arg1[%c781, %c0_112] : memref<784x128xf32, #tpu.memory_space<vmem>>, vector<1x32xf32>
    %275 = vector.broadcast %274 : vector<1x32xf32> to vector<32x32xf32>
    %276 = arith.addf %273, %275 : vector<32x32xf32>
    %c0_113 = arith.constant 0 : index
    %c0_114 = arith.constant 0 : index
    %277 = vector.load %arg2[%c0_113, %c0_114] : memref<32x32xf32, #tpu.memory_space<vmem>>, vector<32x32xf32>
    tpu.vector_store %arg2[%c0_113, %c0_114], %276 {strides = array<i32>} : memref<32x32xf32, #tpu.memory_space<vmem>>, vector<32x32xf32>,
    return
  }
}

</mosaic_0001>

<llo_original>
// kernel: conv_linformer_forward.1
$region0: #{conv_linformer_forward.1}
  #allocation0 [shape = 'u32[]', space=smem, size = 0x4, offset = 0x4, fixed_abs, tag = 'smem constant byte address 0x4 - core index']
  #allocation1 [shape = 'u32[144,128]{1,0:T(1,128)}', space=vmem, size = 0x12000, scoped, tag = 'internal scratch']
  %s0 = inlined_call_operand.hbm [shape: f32[32,32], index: 0, kind: input, shape index: {}]
  %s1 = inlined_call_operand.hbm [shape: f32[784,128], index: 1, kind: input, shape index: {}]
  %s2 = inlined_call_operand.hbm [shape: f32[32,32], index: 2, kind: output, shape index: {}]
  %s3 = sld [smem:[#allocation0]]
  $region26: #{conv_linformer_forward.1} parent=0
    _
  %s5 = ssub.s32 1, %s3
  %s6 = scalar_select 0, %s5, %s3
  $region1: #{conv_linformer_forward.1} parent=0
    #allocation2 [shape = 'u8[16384]{0}', space=vmem, size = 0x4000, scoped, tag = 'input window, operand 0, single buffered']
    #allocation3 [shape = 's32[1]{0}', space=sflag, size = 0x4, scoped, tag = 'scoped memory for conv_linformer_forward.1']
    #allocation4 [shape = 's32[1]{0}', space=sflag, size = 0x4, scoped, tag = 'scoped memory for conv_linformer_forward.1']
    #allocation5 [shape = 'u8[401408]{0}', space=vmem, size = 0x62000, scoped, tag = 'input window, operand 1, single buffered']
    #allocation6 [shape = 's32[1]{0}', space=sflag, size = 0x4, scoped, tag = 'scoped memory for conv_linformer_forward.1']
    #allocation7 [shape = 'u8[16384]{0}', space=vmem, size = 0x4000, scoped, tag = 'output window, operand 0, single buffered']
    %7 = vsyncpa [#allocation3], 0
    %8 = vsyncpa [#allocation6], 0
    %9 = vsyncpa [#allocation4], 0
    // Predicated region
    $region2: #{conv_linformer_forward.1} parent=1 // pred_check
      _
    $region3: #{conv_linformer_forward.1} parent=1 // pred_check_branch
      %11 = sbr.rel (0) target = $region5
    $region4: #{conv_linformer_forward.1} parent=1 // pred_region
      %s13 = ssub.s32 512, 512
      %14 = vsyncadd [#allocation3], %s13
      %s15 = sshll.u32 [#allocation2], 4
      %s16 = int_to_ptr.vmem [resolvable:$true] %s15
      %21 = dma.hbm_to_vmem [thread:$0]  %s0, 512, %s16, [#allocation3], 128, 128, 8
    $region5: #{conv_linformer_forward.1} parent=1 // pred_fallthru
      _
    // Predicated region
    $region6: #{conv_linformer_forward.1} parent=1 // pred_check
      _
    $region7: #{conv_linformer_forward.1} parent=1 // pred_check_branch
      %23 = sbr.rel (0) target = $region9
    $region8: #{conv_linformer_forward.1} parent=1 // pred_region
      %s25 = ssub.s32 12544, 12544
      %26 = vsyncadd [#allocation6], %s25
      %s27 = sshll.u32 [#allocation5], 4
      %s28 = int_to_ptr.vmem [resolvable:$true] %s27
      %33 = dma.hbm_to_vmem [thread:$0]  %s1, 12544, %s28, [#allocation6], 128, 128, 8
    $region9: #{conv_linformer_forward.1} parent=1 // pred_fallthru
      _
    // Predicated region
    $region10: #{conv_linformer_forward.1} parent=1 // pred_check
      _
    $region11: #{conv_linformer_forward.1} parent=1 // pred_check_branch
      %35 = sbr.rel (0) target = $region13
    $region12: #{conv_linformer_forward.1} parent=1 // pred_region
      %36 = dma.done [#allocation3], 512
    $region13: #{conv_linformer_forward.1} parent=1 // pred_fallthru
      _
    // Predicated region
    $region14: #{conv_linformer_forward.1} parent=1 // pred_check
      _
    $region15: #{conv_linformer_forward.1} parent=1 // pred_check_branch
      %38 = sbr.rel (0) target = $region17
    $region16: #{conv_linformer_forward.1} parent=1 // pred_region
      %39 = dma.done [#allocation6], 12544
    $region17: #{conv_linformer_forward.1} parent=1 // pred_fallthru
      _
    %v40 = vld [vmem:[#allocation2] sm:$0xff]
    %v41 = vld [vmem:[#allocation2 + $0x8] sm:$0xff]
    %v42 = vld [vmem:[#allocation2 + $0x10] sm:$0xff]
    %v43 = vld [vmem:[#allocation2 + $0x18] sm:$0xff]
    %v44 = vld [vmem:[#allocation5 + $0x220] sm:$0xff]
    %v45 = vld [vmem:[#allocation5 + $0x228] sm:$0xff]
    %v46 = vld [vmem:[#allocation5 + $0x230] sm:$0xff]
    %v47 = vld [vmem:[#allocation5 + $0x238] sm:$0xff]
    %v48 = vld [vmem:[#allocation5 + $0x240] sm:$0xff]
    %v49 = vld [vmem:[#allocation5 + $0x248] sm:$0xff]
    %v50 = vld [vmem:[#allocation5 + $0x250] sm:$0xff]
    %v51 = vld [vmem:[#allocation5 + $0x258] sm:$0xff]
    %v52 = vld [vmem:[#allocation5 + $0x260] sm:$0xff]
    %v53 = vld [vmem:[#allocation5 + $0x268] sm:$0xff]
    %v54 = vld [vmem:[#allocation5 + $0x270] sm:$0xff]
    %v55 = vld [vmem:[#allocation5 + $0x278] sm:$0xff]
    %v56 = vld [vmem:[#allocation5 + $0x280] sm:$0xff]
    %v57 = vld [vmem:[#allocation5 + $0x288] sm:$0xff]
    %v58 = vld [vmem:[#allocation5 + $0x290] sm:$0xff]
    %v59 = vld [vmem:[#allocation5 + $0x298] sm:$0xff]
    %v60 = vld [vmem:[#allocation5 + $0x2a0] sm:$0xff]
    %v61 = vld [vmem:[#allocation5 + $0x2a8] sm:$0xff]
    %v62 = vld [vmem:[#allocation5 + $0x2b0] sm:$0xff]
    %v63 = vld [vmem:[#allocation5 + $0x2b8] sm:$0xff]
    %v64 = vld [vmem:[#allocation5 + $0x2c0] sm:$0xff]
    %v65 = vld [vmem:[#allocation5 + $0x2c8] sm:$0xff]
    %v66 = vld [vmem:[#allocation5 + $0x2d0] sm:$0xff]
    %v67 = vld [vmem:[#allocation5 + $0x2d8] sm:$0xff]
    %v68 = vld [vmem:[#allocation5 + $0x2e0] sm:$0xff]
    %v69 = vld [vmem:[#allocation5 + $0x2e8] sm:$0xff]
    %v70 = vld [vmem:[#allocation5 + $0x2f0] sm:$0xff]
    %v71 = vld [vmem:[#allocation5 + $0x2f8] sm:$0xff]
    %v72 = vld [vmem:[#allocation5 + $0x300] sm:$0x1]
    %v73 = vld [vmem:[#allocation5 + $0x301] sm:$0x1]
    %vm74 = vcmask 261120
    %v75 = vsel %vm74, %v40, 0.0
    %76 = vadd.xlane.f32.xlu0 %v75
    %v77 = vpop.xlane.xlu0 %76
    %v78 = vsel %vm74, %v41, 0.0
    %79 = vadd.xlane.f32.xlu0 %v78
    %v80 = vpop.xlane.xlu0 %79
    %v81 = vsel %vm74, %v42, 0.0
    %82 = vadd.xlane.f32.xlu0 %v81
    %v83 = vpop.xlane.xlu0 %82
    %v84 = vsel %vm74, %v43, 0.0
    %85 = vadd.xlane.f32.xlu0 %v84
    %v86 = vpop.xlane.xlu0 %85
    %v87 = vrcp.pop 32.0
    %v88 = vmul.f32 %v77, %v87
    %v89 = vmul.f32 %v80, %v87
    %v90 = vmul.f32 %v83, %v87
    %v91 = vmul.f32 %v86, %v87
    %v92 = vsub.f32 %v40, %v88
    %v93 = vsub.f32 %v41, %v89
    %v94 = vsub.f32 %v42, %v90
    %v95 = vsub.f32 %v43, %v91
    %v96 = vmul.f32 %v92, %v92
    %v97 = vmul.f32 %v93, %v93
    %v98 = vmul.f32 %v94, %v94
    %v99 = vmul.f32 %v95, %v95
    %v100 = vsel %vm74, %v96, 0.0
    %101 = vadd.xlane.f32.xlu0 %v100
    %v102 = vpop.xlane.xlu0 %101
    %v103 = vsel %vm74, %v97, 0.0
    %104 = vadd.xlane.f32.xlu0 %v103
    %v105 = vpop.xlane.xlu0 %104
    %v106 = vsel %vm74, %v98, 0.0
    %107 = vadd.xlane.f32.xlu0 %v106
    %v108 = vpop.xlane.xlu0 %107
    %v109 = vsel %vm74, %v99, 0.0
    %110 = vadd.xlane.f32.xlu0 %v109
    %v111 = vpop.xlane.xlu0 %110
    %v112 = vmul.f32 %v102, %v87
    %v113 = vmul.f32 %v105, %v87
    %v114 = vmul.f32 %v108, %v87
    %v115 = vmul.f32 %v111, %v87
    %v116 = vadd.f32 %v112, 1e-05
    %v117 = vadd.f32 %v113, 1e-05
    %v118 = vadd.f32 %v114, 1e-05
    %v119 = vadd.f32 %v115, 1e-05
    %v120 = vrsqrt.pop %v116
    %v121 = vrsqrt.pop %v117
    %v122 = vrsqrt.pop %v118
    %v123 = vrsqrt.pop %v119
    %v124 = vmul.f32 %v92, %v120
    %v125 = vmul.f32 %v93, %v121
    %v126 = vmul.f32 %v94, %v122
    %v127 = vmul.f32 %v95, %v123
    %v128 = vlaneseq
    %v129 = vshrl.u32 %v128, 7
    %v130 = vsub.s32 0, %v129
    %v131 = vrot.slane %v72, %v130
    %v132 = vmul.f32 %v124, %v131
    %v133 = vmul.f32 %v125, %v131
    %v134 = vmul.f32 %v126, %v131
    %v135 = vmul.f32 %v127, %v131
    %v136 = vlaneseq
    %v137 = vshrl.u32 %v136, 7
    %v138 = vsub.s32 0, %v137
    %v139 = vrot.slane %v73, %v138
    %v140 = vadd.f32 %v132, %v139
    %v141 = vadd.f32 %v133, %v139
    %v142 = vadd.f32 %v134, %v139
    %v143 = vadd.f32 %v135, %v139
    %v144 = vld [vmem:[#allocation5] sm:$0xff]
    %v145 = vld [vmem:[#allocation5 + $0x8] sm:$0xff]
    %v146 = vld [vmem:[#allocation5 + $0x10] sm:$0xff]
    %v147 = vld [vmem:[#allocation5 + $0x18] sm:$0xff]
    %v149 = vsel %vm74, %v140, 0
    %v152 = vsel %vm74, %v141, 0
    %v155 = vsel %vm74, %v142, 0
    %v158 = vsel %vm74, %v143, 0
    %160 = vmatprep.subr.mxu0 0.0
    %161 = vmatpush1.msra.mxu0 %v144
    %162 = vmatprep.subr.mxu0 0.0
    %163 = vmatpush1.msra.mxu0 %v145
    %164 = vmatprep.subr.mxu0 0.0
    %165 = vmatpush1.msra.mxu0 %v146
    %166 = vmatprep.subr.mxu0 0.0
    %167 = vmatpush1.msra.mxu0 %v147
    %168 = vmatprep.subr.mxu0 0.0
    %169 = vmatpush1.msra.mxu0 0.0
    %170 = vmatprep.subr.mxu0 0.0
    %171 = vmatpush1.msra.mxu0 0.0
    %172 = vmatprep.subr.mxu0 0.0
    %173 = vmatpush1.msra.mxu0 0.0
    %174 = vmatprep.subr.mxu0 0.0
    %175 = vmatpush1.msra.mxu0 0.0
    %176 = vmatprep.subr.mxu0 0.0
    %177 = vmatpush1.msra.mxu0 0.0
    %178 = vmatprep.subr.mxu0 0.0
    %179 = vmatpush1.msra.mxu0 0.0
    %180 = vmatprep.subr.mxu0 0.0
    %181 = vmatpush1.msra.mxu0 0.0
    %182 = vmatprep.subr.mxu0 0.0
    %183 = vmatpush1.msra.mxu0 0.0
    %184 = vmatprep.subr.mxu0 0.0
    %185 = vmatpush1.msra.mxu0 0.0
    %186 = vmatprep.subr.mxu0 0.0
    %187 = vmatpush1.msra.mxu0 0.0
    %188 = vmatprep.subr.mxu0 0.0
    %189 = vmatpush1.msra.mxu0 0.0
    %190 = vmatprep.subr.mxu0 0.0
    %191 = vmatpush1.msra.mxu0 0.0
    %192 = vmatprep.subr.mxu0 0.0
    %193 = vmatpush1.msra.mxu0 0.0
    %194 = vmatprep.subr.mxu0 0.0
    %195 = vmatpush1.msra.mxu0 0.0
    %196 = vmatprep.subr.mxu0 0.0
    %197 = vmatpush1.msra.mxu0 0.0
    %198 = vmatprep.subr.mxu0 0.0
    %199 = vmatpush1.msra.mxu0 0.0
    %200 = vmatprep.subr.mxu0 0.0
    %201 = vmatpush1.msra.mxu0 0.0
    %202 = vmatprep.subr.mxu0 0.0
    %203 = vmatpush1.msra.mxu0 0.0
    %204 = vmatprep.subr.mxu0 0.0
    %205 = vmatpush1.msra.mxu0 0.0
    %206 = vmatprep.subr.mxu0 0.0
    %207 = vmatpush1.msra.mxu0 0.0
    %208 = vmatprep.subr.mxu0 0.0
    %209 = vmatpush1.msra.mxu0 0.0
    %210 = vmatprep.subr.mxu0 0.0
    %211 = vmatpush1.msra.mxu0 0.0
    %212 = vmatprep.subr.mxu0 0.0
    %213 = vmatpush1.msra.mxu0 0.0
    %214 = vmatprep.subr.mxu0 0.0
    %215 = vmatpush1.msra.mxu0 0.0
    %216 = vmatprep.subr.mxu0 0.0
    %217 = vmatpush1.msra.mxu0 0.0
    %218 = vmatprep.subr.mxu0 0.0
    %219 = vmatpush1.msra.mxu0 0.0
    %220 = vmatprep.subr.mxu0 0.0
    %221 = vmatpush1.msra.mxu0 0.0
    %222 = vmatprep.subr.mxu0 0.0
    %223 = vmatpush1.msra.mxu0 0.0
    %224 = vmatprep.mubr.f32.mxu0 0.0
    %225 = vmatmul.mubr.f32.gmra.mrb[0].mxu0 %v149
    %v226 = vpop.f32.mrb[0].mxu0
    %v227 = vadd.f32 0.0, %v226
    %v228 = vpop.f32.mrb[0].mxu0
    %229 = vmatprep.mubr.f32.mxu0 0.0
    %230 = vmatmul.mubr.f32.gmra.mrb[0].mxu0 %v152
    %v231 = vpop.f32.mrb[0].mxu0
    %v232 = vadd.f32 0.0, %v231
    %v233 = vpop.f32.mrb[0].mxu0
    %234 = vmatprep.mubr.f32.mxu0 0.0
    %235 = vmatmul.mubr.f32.gmra.mrb[0].mxu0 %v155
    %v236 = vpop.f32.mrb[0].mxu0
    %v237 = vadd.f32 0.0, %v236
    %v238 = vpop.f32.mrb[0].mxu0
    %239 = vmatprep.mubr.f32.mxu0 0.0
    %240 = vmatmul.mubr.f32.gmra.mrb[0].mxu0 %v158
    %v241 = vpop.f32.mrb[0].mxu0
    %v242 = vadd.f32 0.0, %v241
    %v243 = vpop.f32.mrb[0].mxu0
    %244 = vdwg.mxu0
    %v245 = vld [vmem:[#allocation5 + $0x20] sm:$0xff]
    %v246 = vld [vmem:[#allocation5 + $0x28] sm:$0xff]
    %251 = vrot.lane.b32.xlu0 %v227, 96
    %v252 = vpop.permute.xlu0 %251
    %253 = vrot.lane.b32.xlu0 %v232, 96
    %v254 = vpop.permute.xlu0 %253
    %255 = vrot.lane.b32.xlu0 %v237, 96
    %v256 = vpop.permute.xlu0 %255
    %257 = vrot.lane.b32.xlu0 %v242, 96
    %v258 = vpop.permute.xlu0 %257
    %v264 = vsel %vm74, %v245, 0
    %v267 = vsel %vm74, %v246, 0
    %269 = vmatprep.subr.mxu0 0.0
    %270 = vmatpush1.msra.mxu0 %v252
    %271 = vmatprep.subr.mxu0 0.0
    %272 = vmatpush1.msra.mxu0 %v254
    %273 = vmatprep.subr.mxu0 0.0
    %274 = vmatpush1.msra.mxu0 %v256
    %275 = vmatprep.subr.mxu0 0.0
    %276 = vmatpush1.msra.mxu0 %v258
    %277 = vmatprep.subr.mxu0 0.0
    %278 = vmatpush1.msra.mxu0 0.0
    %279 = vmatprep.subr.mxu0 0.0
    %280 = vmatpush1.msra.mxu0 0.0
    %281 = vmatprep.subr.mxu0 0.0
    %282 = vmatpush1.msra.mxu0 0.0
    %283 = vmatprep.subr.mxu0 0.0
    %284 = vmatpush1.msra.mxu0 0.0
    %285 = vmatprep.subr.mxu0 0.0
    %286 = vmatpush1.msra.mxu0 0.0
    %287 = vmatprep.subr.mxu0 0.0
    %288 = vmatpush1.msra.mxu0 0.0
    %289 = vmatprep.subr.mxu0 0.0
    %290 = vmatpush1.msra.mxu0 0.0
    %291 = vmatprep.subr.mxu0 0.0
    %292 = vmatpush1.msra.mxu0 0.0
    %293 = vmatprep.subr.mxu0 0.0
    %294 = vmatpush1.msra.mxu0 0.0
    %295 = vmatprep.subr.mxu0 0.0
    %296 = vmatpush1.msra.mxu0 0.0
    %297 = vmatprep.subr.mxu0 0.0
    %298 = vmatpush1.msra.mxu0 0.0
    %299 = vmatprep.subr.mxu0 0.0
    %300 = vmatpush1.msra.mxu0 0.0
    %301 = vmatprep.subr.mxu0 0.0
    %302 = vmatpush1.msra.mxu0 0.0
    %303 = vmatprep.subr.mxu0 0.0
    %304 = vmatpush1.msra.mxu0 0.0
    %305 = vmatprep.subr.mxu0 0.0
    %306 = vmatpush1.msra.mxu0 0.0
    %307 = vmatprep.subr.mxu0 0.0
    %308 = vmatpush1.msra.mxu0 0.0
    %309 = vmatprep.subr.mxu0 0.0
    %310 = vmatpush1.msra.mxu0 0.0
    %311 = vmatprep.subr.mxu0 0.0
    %312 = vmatpush1.msra.mxu0 0.0
    %313 = vmatprep.subr.mxu0 0.0
    %314 = vmatpush1.msra.mxu0 0.0
    %315 = vmatprep.subr.mxu0 0.0
    %316 = vmatpush1.msra.mxu0 0.0
    %317 = vmatprep.subr.mxu0 0.0
    %318 = vmatpush1.msra.mxu0 0.0
    %319 = vmatprep.subr.mxu0 0.0
    %320 = vmatpush1.msra.mxu0 0.0
    %321 = vmatprep.subr.mxu0 0.0
    %322 = vmatpush1.msra.mxu0 0.0
    %323 = vmatprep.subr.mxu0 0.0
    %324 = vmatpush1.msra.mxu0 0.0
    %325 = vmatprep.subr.mxu0 0.0
    %326 = vmatpush1.msra.mxu0 0.0
    %327 = vmatprep.subr.mxu0 0.0
    %328 = vmatpush1.msra.mxu0 0.0
    %329 = vmatprep.subr.mxu0 0.0
    %330 = vmatpush1.msra.mxu0 0.0
    %331 = vmatprep.subr.mxu0 0.0
    %332 = vmatpush1.msra.mxu0 0.0
    %333 = vmatprep.mubr.f32.mxu0 0.0
    %334 = vmatmul.mubr.f32.gmra.mrb[0].mxu0 %v264
    %v335 = vpop.f32.mrb[0].mxu0
    %v336 = vadd.f32 0.0, %v335
    %v337 = vpop.f32.mrb[0].mxu0
    %338 = vmatprep.mubr.f32.mxu0 0.0
    %339 = vmatmul.mubr.f32.gmra.mrb[0].mxu0 %v267
    %v340 = vpop.f32.mrb[0].mxu0
    %v341 = vadd.f32 0.0, %v340
    %v342 = vpop.f32.mrb[0].mxu0
    %343 = vdwg.mxu0
    %v344 = vld [vmem:[#allocation5 + $0x30] sm:$0xff]
    %v345 = vld [vmem:[#allocation5 + $0x38] sm:$0xff]
    %346 = vrot.lane.b32.xlu0 %v227, 64
    %v347 = vpop.permute.xlu0 %346
    %348 = vrot.lane.b32.xlu0 %v232, 64
    %v349 = vpop.permute.xlu0 %348
    %350 = vrot.lane.b32.xlu0 %v237, 64
    %v351 = vpop.permute.xlu0 %350
    %352 = vrot.lane.b32.xlu0 %v242, 64
    %v353 = vpop.permute.xlu0 %352
    %v359 = vsel %vm74, %v344, 0
    %v362 = vsel %vm74, %v345, 0
    %364 = vmatprep.subr.mxu0 0.0
    %365 = vmatpush1.msra.mxu0 %v347
    %366 = vmatprep.subr.mxu0 0.0
    %367 = vmatpush1.msra.mxu0 %v349
    %368 = vmatprep.subr.mxu0 0.0
    %369 = vmatpush1.msra.mxu0 %v351
    %370 = vmatprep.subr.mxu0 0.0
    %371 = vmatpush1.msra.mxu0 %v353
    %372 = vmatprep.subr.mxu0 0.0
    %373 = vmatpush1.msra.mxu0 0.0
    %374 = vmatprep.subr.mxu0 0.0
    %375 = vmatpush1.msra.mxu0 0.0
    %376 = vmatprep.subr.mxu0 0.0
    %377 = vmatpush1.msra.mxu0 0.0
    %378 = vmatprep.subr.mxu0 0.0
    %379 = vmatpush1.msra.mxu0 0.0
    %380 = vmatprep.subr.mxu0 0.0
    %381 = vmatpush1.msra.mxu0 0.0
    %382 = vmatprep.subr.mxu0 0.0
    %383 = vmatpush1.msra.mxu0 0.0
    %384 = vmatprep.subr.mxu0 0.0
    %385 = vmatpush1.msra.mxu0 0.0
    %386 = vmatprep.subr.mxu0 0.0
    %387 = vmatpush1.msra.mxu0 0.0
    %388 = vmatprep.subr.mxu0 0.0
    %389 = vmatpush1.msra.mxu0 0.0
    %390 = vmatprep.subr.mxu0 0.0
    %391 = vmatpush1.msra.mxu0 0.0
    %392 = vmatprep.subr.mxu0 0.0
    %393 = vmatpush1.msra.mxu0 0.0
    %394 = vmatprep.subr.mxu0 0.0
    %395 = vmatpush1.msra.mxu0 0.0
    %396 = vmatprep.subr.mxu0 0.0
    %397 = vmatpush1.msra.mxu0 0.0
    %398 = vmatprep.subr.mxu0 0.0
    %399 = vmatpush1.msra.mxu0 0.0
    %400 = vmatprep.subr.mxu0 0.0
    %401 = vmatpush1.msra.mxu0 0.0
    %402 = vmatprep.subr.mxu0 0.0
    %403 = vmatpush1.msra.mxu0 0.0
    %404 = vmatprep.subr.mxu0 0.0
    %405 = vmatpush1.msra.mxu0 0.0
    %406 = vmatprep.subr.mxu0 0.0
    %407 = vmatpush1.msra.mxu0 0.0
    %408 = vmatprep.subr.mxu0 0.0
    %409 = vmatpush1.msra.mxu0 0.0
    %410 = vmatprep.subr.mxu0 0.0
    %411 = vmatpush1.msra.mxu0 0.0
    %412 = vmatprep.subr.mxu0 0.0
    %413 = vmatpush1.msra.mxu0 0.0
    %414 = vmatprep.subr.mxu0 0.0
    %415 = vmatpush1.msra.mxu0 0.0
    %416 = vmatprep.subr.mxu0 0.0
    %417 = vmatpush1.msra.mxu0 0.0
    %418 = vmatprep.subr.mxu0 0.0
    %419 = vmatpush1.msra.mxu0 0.0
    %420 = vmatprep.subr.mxu0 0.0
    %421 = vmatpush1.msra.mxu0 0.0
    %422 = vmatprep.subr.mxu0 0.0
    %423 = vmatpush1.msra.mxu0 0.0
    %424 = vmatprep.subr.mxu0 0.0
    %425 = vmatpush1.msra.mxu0 0.0
    %426 = vmatprep.subr.mxu0 0.0
    %427 = vmatpush1.msra.mxu0 0.0
    %428 = vmatprep.mubr.f32.mxu0 0.0
    %429 = vmatmul.mubr.f32.gmra.mrb[0].mxu0 %v359
    %v430 = vpop.f32.mrb[0].mxu0
    %v431 = vadd.f32 0.0, %v430
    %v432 = vpop.f32.mrb[0].mxu0
    %433 = vmatprep.mubr.f32.mxu0 0.0
    %434 = vmatmul.mubr.f32.gmra.mrb[0].mxu0 %v362
    %v435 = vpop.f32.mrb[0].mxu0
    %v436 = vadd.f32 0.0, %v435
    %v437 = vpop.f32.mrb[0].mxu0
    %438 = vdwg.mxu0
    %v439 = vld [vmem:[#allocation5 + $0x40] sm:$0xff]
    %v440 = vld [vmem:[#allocation5 + $0x48] sm:$0xff]
    %v441 = vld [vmem:[#allocation5 + $0x50] sm:$0xff]
    %v442 = vld [vmem:[#allocation5 + $0x58] sm:$0xff]
    %v443 = vld [vmem:[#allocation5 + $0x302] sm:$0x1]
    %vm444 = vcmask 130048
    %v446 = vsel %vm444, %v44, 0
    %v449 = vsel %vm444, %v45, 0
    %v452 = vsel %vm444, %v46, 0
    %v455 = vsel %vm444, %v47, 0
    %v458 = vsel %vm444, %v48, 0
    %v461 = vsel %vm444, %v49, 0
    %v464 = vsel %vm444, %v50, 0
    %v467 = vsel %vm444, %v51, 0
    %469 = vmatprep.subr.mxu0 0.0
    %470 = vmatpush1.msra.mxu0 %v336
    %471 = vmatprep.subr.mxu0 0.0
    %472 = vmatpush1.msra.mxu0 %v341
    %473 = vmatprep.subr.mxu0 0.0
    %474 = vmatpush1.msra.mxu0 0.0
    %475 = vmatprep.subr.mxu0 0.0
    %476 = vmatpush1.msra.mxu0 0.0
    %477 = vmatprep.subr.mxu0 0.0
    %478 = vmatpush1.msra.mxu0 0.0
    %479 = vmatprep.subr.mxu0 0.0
    %480 = vmatpush1.msra.mxu0 0.0
    %481 = vmatprep.subr.mxu0 0.0
    %482 = vmatpush1.msra.mxu0 0.0
    %483 = vmatprep.subr.mxu0 0.0
    %484 = vmatpush1.msra.mxu0 0.0
    %485 = vmatprep.subr.mxu0 0.0
    %486 = vmatpush1.msra.mxu0 0.0
    %487 = vmatprep.subr.mxu0 0.0
    %488 = vmatpush1.msra.mxu0 0.0
    %489 = vmatprep.subr.mxu0 0.0
    %490 = vmatpush1.msra.mxu0 0.0
    %491 = vmatprep.subr.mxu0 0.0
    %492 = vmatpush1.msra.mxu0 0.0
    %493 = vmatprep.subr.mxu0 0.0
    %494 = vmatpush1.msra.mxu0 0.0
    %495 = vmatprep.subr.mxu0 0.0
    %496 = vmatpush1.msra.mxu0 0.0
    %497 = vmatprep.subr.mxu0 0.0
    %498 = vmatpush1.msra.mxu0 0.0
    %499 = vmatprep.subr.mxu0 0.0
    %500 = vmatpush1.msra.mxu0 0.0
    %501 = vmatprep.subr.mxu0 0.0
    %502 = vmatpush1.msra.mxu0 0.0
    %503 = vmatprep.subr.mxu0 0.0
    %504 = vmatpush1.msra.mxu0 0.0
    %505 = vmatprep.subr.mxu0 0.0
    %506 = vmatpush1.msra.mxu0 0.0
    %507 = vmatprep.subr.mxu0 0.0
    %508 = vmatpush1.msra.mxu0 0.0
    %509 = vmatprep.subr.mxu0 0.0
    %510 = vmatpush1.msra.mxu0 0.0
    %511 = vmatprep.subr.mxu0 0.0
    %512 = vmatpush1.msra.mxu0 0.0
    %513 = vmatprep.subr.mxu0 0.0
    %514 = vmatpush1.msra.mxu0 0.0
    %515 = vmatprep.subr.mxu0 0.0
    %516 = vmatpush1.msra.mxu0 0.0
    %517 = vmatprep.subr.mxu0 0.0
    %518 = vmatpush1.msra.mxu0 0.0
    %519 = vmatprep.subr.mxu0 0.0
    %520 = vmatpush1.msra.mxu0 0.0
    %521 = vmatprep.subr.mxu0 0.0
    %522 = vmatpush1.msra.mxu0 0.0
    %523 = vmatprep.subr.mxu0 0.0
    %524 = vmatpush1.msra.mxu0 0.0
    %525 = vmatprep.subr.mxu0 0.0
    %526 = vmatpush1.msra.mxu0 0.0
    %527 = vmatprep.subr.mxu0 0.0
    %528 = vmatpush1.msra.mxu0 0.0
    %529 = vmatprep.subr.mxu0 0.0
    %530 = vmatpush1.msra.mxu0 0.0
    %531 = vmatprep.subr.mxu0 0.0
    %532 = vmatpush1.msra.mxu0 0.0
    %533 = vmatprep.mubr.f32.mxu0 0.0
    %534 = vmatmul.mubr.f32.gmra.mrb[0].mxu0 %v446
    %v535 = vpop.f32.mrb[0].mxu0
    %v536 = vadd.f32 0.0, %v535
    %v537 = vpop.f32.mrb[0].mxu0
    %538 = vmatprep.mubr.f32.mxu0 0.0
    %539 = vmatmul.mubr.f32.gmra.mrb[0].mxu0 %v449
    %v540 = vpop.f32.mrb[0].mxu0
    %v541 = vadd.f32 0.0, %v540
    %v542 = vpop.f32.mrb[0].mxu0
    %543 = vmatprep.mubr.f32.mxu0 0.0
    %544 = vmatmul.mubr.f32.gmra.mrb[0].mxu0 %v452
    %v545 = vpop.f32.mrb[0].mxu0
    %v546 = vadd.f32 0.0, %v545
    %v547 = vpop.f32.mrb[0].mxu0
    %548 = vmatprep.mubr.f32.mxu0 0.0
    %549 = vmatmul.mubr.f32.gmra.mrb[0].mxu0 %v455
    %v550 = vpop.f32.mrb[0].mxu0
    %v551 = vadd.f32 0.0, %v550
    %v552 = vpop.f32.mrb[0].mxu0
    %553 = vmatprep.mubr.f32.mxu0 0.0
    %554 = vmatmul.mubr.f32.gmra.mrb[0].mxu0 %v458
    %v555 = vpop.f32.mrb[0].mxu0
    %v556 = vadd.f32 0.0, %v555
    %v557 = vpop.f32.mrb[0].mxu0
    %558 = vmatprep.mubr.f32.mxu0 0.0
    %559 = vmatmul.mubr.f32.gmra.mrb[0].mxu0 %v461
    %v560 = vpop.f32.mrb[0].mxu0
    %v561 = vadd.f32 0.0, %v560
    %v562 = vpop.f32.mrb[0].mxu0
    %563 = vmatprep.mubr.f32.mxu0 0.0
    %564 = vmatmul.mubr.f32.gmra.mrb[0].mxu0 %v464
    %v565 = vpop.f32.mrb[0].mxu0
    %v566 = vadd.f32 0.0, %v565
    %v567 = vpop.f32.mrb[0].mxu0
    %568 = vmatprep.mubr.f32.mxu0 0.0
    %569 = vmatmul.mubr.f32.gmra.mrb[0].mxu0 %v467
    %v570 = vpop.f32.mrb[0].mxu0
    %v571 = vadd.f32 0.0, %v570
    %v572 = vpop.f32.mrb[0].mxu0
    %573 = vdwg.mxu0
    %v574 = vmul.f32 %v536, %v52
    %v575 = vmul.f32 %v541, %v53
    %v576 = vmul.f32 %v546, %v54
    %v577 = vmul.f32 %v551, %v55
    %v578 = vmul.f32 %v556, %v56
    %v579 = vmul.f32 %v561, %v57
    %v580 = vmul.f32 %v566, %v58
    %v581 = vmul.f32 %v571, %v59
    %582 = vmatprep.subr.mxu0 0.0
    %583 = vmatpush1.msra.mxu0 %v431
    %584 = vmatprep.subr.mxu0 0.0
    %585 = vmatpush1.msra.mxu0 %v436
    %586 = vmatprep.subr.mxu0 0.0
    %587 = vmatpush1.msra.mxu0 0.0
    %588 = vmatprep.subr.mxu0 0.0
    %589 = vmatpush1.msra.mxu0 0.0
    %590 = vmatprep.subr.mxu0 0.0
    %591 = vmatpush1.msra.mxu0 0.0
    %592 = vmatprep.subr.mxu0 0.0
    %593 = vmatpush1.msra.mxu0 0.0
    %594 = vmatprep.subr.mxu0 0.0
    %595 = vmatpush1.msra.mxu0 0.0
    %596 = vmatprep.subr.mxu0 0.0
    %597 = vmatpush1.msra.mxu0 0.0
    %598 = vmatprep.subr.mxu0 0.0
    %599 = vmatpush1.msra.mxu0 0.0
    %600 = vmatprep.subr.mxu0 0.0
    %601 = vmatpush1.msra.mxu0 0.0
    %602 = vmatprep.subr.mxu0 0.0
    %603 = vmatpush1.msra.mxu0 0.0
    %604 = vmatprep.subr.mxu0 0.0
    %605 = vmatpush1.msra.mxu0 0.0
    %606 = vmatprep.subr.mxu0 0.0
    %607 = vmatpush1.msra.mxu0 0.0
    %608 = vmatprep.subr.mxu0 0.0
    %609 = vmatpush1.msra.mxu0 0.0
    %610 = vmatprep.subr.mxu0 0.0
    %611 = vmatpush1.msra.mxu0 0.0
    %612 = vmatprep.subr.mxu0 0.0
    %613 = vmatpush1.msra.mxu0 0.0
    %614 = vmatprep.subr.mxu0 0.0
    %615 = vmatpush1.msra.mxu0 0.0
    %616 = vmatprep.subr.mxu0 0.0
    %617 = vmatpush1.msra.mxu0 0.0
    %618 = vmatprep.subr.mxu0 0.0
    %619 = vmatpush1.msra.mxu0 0.0
    %620 = vmatprep.subr.mxu0 0.0
    %621 = vmatpush1.msra.mxu0 0.0
    %622 = vmatprep.subr.mxu0 0.0
    %623 = vmatpush1.msra.mxu0 0.0
    %624 = vmatprep.subr.mxu0 0.0
    %625 = vmatpush1.msra.mxu0 0.0
    %626 = vmatprep.subr.mxu0 0.0
    %627 = vmatpush1.msra.mxu0 0.0
    %628 = vmatprep.subr.mxu0 0.0
    %629 = vmatpush1.msra.mxu0 0.0
    %630 = vmatprep.subr.mxu0 0.0
    %631 = vmatpush1.msra.mxu0 0.0
    %632 = vmatprep.subr.mxu0 0.0
    %633 = vmatpush1.msra.mxu0 0.0
    %634 = vmatprep.subr.mxu0 0.0
    %635 = vmatpush1.msra.mxu0 0.0
    %636 = vmatprep.subr.mxu0 0.0
    %637 = vmatpush1.msra.mxu0 0.0
    %638 = vmatprep.subr.mxu0 0.0
    %639 = vmatpush1.msra.mxu0 0.0
    %640 = vmatprep.subr.mxu0 0.0
    %641 = vmatpush1.msra.mxu0 0.0
    %642 = vmatprep.subr.mxu0 0.0
    %643 = vmatpush1.msra.mxu0 0.0
    %644 = vmatprep.subr.mxu0 0.0
    %645 = vmatpush1.msra.mxu0 0.0
    %646 = vmatprep.mubr.f32.mxu0 0.0
    %647 = vmatmul.mubr.f32.gmra.mrb[0].mxu0 %v446
    %v648 = vpop.f32.mrb[0].mxu0
    %v649 = vadd.f32 0.0, %v648
    %v650 = vpop.f32.mrb[0].mxu0
    %651 = vmatprep.mubr.f32.mxu0 0.0
    %652 = vmatmul.mubr.f32.gmra.mrb[0].mxu0 %v449
    %v653 = vpop.f32.mrb[0].mxu0
    %v654 = vadd.f32 0.0, %v653
    %v655 = vpop.f32.mrb[0].mxu0
    %656 = vmatprep.mubr.f32.mxu0 0.0
    %657 = vmatmul.mubr.f32.gmra.mrb[0].mxu0 %v452
    %v658 = vpop.f32.mrb[0].mxu0
    %v659 = vadd.f32 0.0, %v658
    %v660 = vpop.f32.mrb[0].mxu0
    %661 = vmatprep.mubr.f32.mxu0 0.0
    %662 = vmatmul.mubr.f32.gmra.mrb[0].mxu0 %v455
    %v663 = vpop.f32.mrb[0].mxu0
    %v664 = vadd.f32 0.0, %v663
    %v665 = vpop.f32.mrb[0].mxu0
    %666 = vmatprep.mubr.f32.mxu0 0.0
    %667 = vmatmul.mubr.f32.gmra.mrb[0].mxu0 %v458
    %v668 = vpop.f32.mrb[0].mxu0
    %v669 = vadd.f32 0.0, %v668
    %v670 = vpop.f32.mrb[0].mxu0
    %671 = vmatprep.mubr.f32.mxu0 0.0
    %672 = vmatmul.mubr.f32.gmra.mrb[0].mxu0 %v461
    %v673 = vpop.f32.mrb[0].mxu0
    %v674 = vadd.f32 0.0, %v673
    %v675 = vpop.f32.mrb[0].mxu0
    %676 = vmatprep.mubr.f32.mxu0 0.0
    %677 = vmatmul.mubr.f32.gmra.mrb[0].mxu0 %v464
    %v678 = vpop.f32.mrb[0].mxu0
    %v679 = vadd.f32 0.0, %v678
    %v680 = vpop.f32.mrb[0].mxu0
    %681 = vmatprep.mubr.f32.mxu0 0.0
    %682 = vmatmul.mubr.f32.gmra.mrb[0].mxu0 %v467
    %v683 = vpop.f32.mrb[0].mxu0
    %v684 = vadd.f32 0.0, %v683
    %v685 = vpop.f32.mrb[0].mxu0
    %686 = vdwg.mxu0
    %v687 = vmul.f32 %v649, %v52
    %v688 = vmul.f32 %v654, %v53
    %v689 = vmul.f32 %v659, %v54
    %v690 = vmul.f32 %v664, %v55
    %v691 = vmul.f32 %v669, %v56
    %v692 = vmul.f32 %v674, %v57
    %v693 = vmul.f32 %v679, %v58
    %v694 = vmul.f32 %v684, %v59
    %v695 = vsel %vm74, %v227, 0
    %v697 = vsel %vm74, %v232, 0
    %v699 = vsel %vm74, %v237, 0
    %v701 = vsel %vm74, %v242, 0
    %v704 = vsel %vm74, %v574, 0
    %v707 = vsel %vm74, %v575, 0
    %v710 = vsel %vm74, %v576, 0
    %v713 = vsel %vm74, %v577, 0
    %v716 = vsel %vm74, %v578, 0
    %v719 = vsel %vm74, %v579, 0
    %v722 = vsel %vm74, %v580, 0
    %v725 = vsel %vm74, %v581, 0
    %727 = vmatprep.subr.mxu0 0.0
    %728 = vmatpush1.xpose.msra.mxu0 %v704
    %729 = vmatprep.subr.mxu0 0.0
    %730 = vmatpush1.xpose.msra.mxu0 %v707
    %731 = vmatprep.subr.mxu0 0.0
    %732 = vmatpush1.xpose.msra.mxu0 %v710
    %733 = vmatprep.subr.mxu0 0.0
    %734 = vmatpush1.xpose.msra.mxu0 %v713
    %735 = vmatprep.subr.mxu0 0.0
    %736 = vmatpush1.xpose.msra.mxu0 %v716
    %737 = vmatprep.subr.mxu0 0.0
    %738 = vmatpush1.xpose.msra.mxu0 %v719
    %739 = vmatprep.subr.mxu0 0.0
    %740 = vmatpush1.xpose.msra.mxu0 %v722
    %741 = vmatprep.subr.mxu0 0.0
    %742 = vmatpush1.xpose.msra.mxu0 %v725
    %743 = vmatprep.subr.mxu0 0.0
    %744 = vmatpush1.xpose.msra.mxu0 0.0
    %745 = vmatprep.subr.mxu0 0.0
    %746 = vmatpush1.xpose.msra.mxu0 0.0
    %747 = vmatprep.subr.mxu0 0.0
    %748 = vmatpush1.xpose.msra.mxu0 0.0
    %749 = vmatprep.subr.mxu0 0.0
    %750 = vmatpush1.xpose.msra.mxu0 0.0
    %751 = vmatprep.subr.mxu0 0.0
    %752 = vmatpush1.xpose.msra.mxu0 0.0
    %753 = vmatprep.subr.mxu0 0.0
    %754 = vmatpush1.xpose.msra.mxu0 0.0
    %755 = vmatprep.subr.mxu0 0.0
    %756 = vmatpush1.xpose.msra.mxu0 0.0
    %757 = vmatprep.subr.mxu0 0.0
    %758 = vmatpush1.xpose.msra.mxu0 0.0
    %759 = vmatprep.subr.mxu0 0.0
    %760 = vmatpush1.xpose.msra.mxu0 0.0
    %761 = vmatprep.subr.mxu0 0.0
    %762 = vmatpush1.xpose.msra.mxu0 0.0
    %763 = vmatprep.subr.mxu0 0.0
    %764 = vmatpush1.xpose.msra.mxu0 0.0
    %765 = vmatprep.subr.mxu0 0.0
    %766 = vmatpush1.xpose.msra.mxu0 0.0
    %767 = vmatprep.subr.mxu0 0.0
    %768 = vmatpush1.xpose.msra.mxu0 0.0
    %769 = vmatprep.subr.mxu0 0.0
    %770 = vmatpush1.xpose.msra.mxu0 0.0
    %771 = vmatprep.subr.mxu0 0.0
    %772 = vmatpush1.xpose.msra.mxu0 0.0
    %773 = vmatprep.subr.mxu0 0.0
    %774 = vmatpush1.xpose.msra.mxu0 0.0
    %775 = vmatprep.subr.mxu0 0.0
    %776 = vmatpush1.xpose.msra.mxu0 0.0
    %777 = vmatprep.subr.mxu0 0.0
    %778 = vmatpush1.xpose.msra.mxu0 0.0
    %779 = vmatprep.subr.mxu0 0.0
    %780 = vmatpush1.xpose.msra.mxu0 0.0
    %781 = vmatprep.subr.mxu0 0.0
    %782 = vmatpush1.xpose.msra.mxu0 0.0
    %783 = vmatprep.subr.mxu0 0.0
    %784 = vmatpush1.xpose.msra.mxu0 0.0
    %785 = vmatprep.subr.mxu0 0.0
    %786 = vmatpush1.xpose.msra.mxu0 0.0
    %787 = vmatprep.subr.mxu0 0.0
    %788 = vmatpush1.xpose.msra.mxu0 0.0
    %789 = vmatprep.subr.mxu0 0.0
    %790 = vmatpush1.xpose.msra.mxu0 0.0
    %791 = vmatprep.mubr.f32.mxu0 0.0
    %792 = vmatmul.mubr.f32.gmra.mrb[0].mxu0 %v695
    %v793 = vpop.f32.mrb[0].mxu0
    %v794 = vadd.f32 0.0, %v793
    %v795 = vpop.f32.mrb[0].mxu0
    %796 = vmatprep.mubr.f32.mxu0 0.0
    %797 = vmatmul.mubr.f32.gmra.mrb[0].mxu0 %v697
    %v798 = vpop.f32.mrb[0].mxu0
    %v799 = vadd.f32 0.0, %v798
    %v800 = vpop.f32.mrb[0].mxu0
    %801 = vmatprep.mubr.f32.mxu0 0.0
    %802 = vmatmul.mubr.f32.gmra.mrb[0].mxu0 %v699
    %v803 = vpop.f32.mrb[0].mxu0
    %v804 = vadd.f32 0.0, %v803
    %v805 = vpop.f32.mrb[0].mxu0
    %806 = vmatprep.mubr.f32.mxu0 0.0
    %807 = vmatmul.mubr.f32.gmra.mrb[0].mxu0 %v701
    %v808 = vpop.f32.mrb[0].mxu0
    %v809 = vadd.f32 0.0, %v808
    %v810 = vpop.f32.mrb[0].mxu0
    %811 = vdwg.mxu0
    %vm812 = vcmp.gt.f32.partialorder %v68, 0.5
    %vm813 = vcmp.gt.f32.partialorder %v69, 0.5
    %vm814 = vcmp.gt.f32.partialorder %v70, 0.5
    %vm815 = vcmp.gt.f32.partialorder %v71, 0.5
    %v816 = vsel %vm812, %v794, -1e+30
    %v817 = vsel %vm813, %v799, -1e+30
    %v818 = vsel %vm814, %v804, -1e+30
    %v819 = vsel %vm815, %v809, -1e+30
    %vm820 = vcmask 523264
    %v821 = vsel %vm820, %v816, -inf
    %822 = vmax.xlane.f32.xlu0 %v821
    %v823 = vpop.xlane.xlu0 %822
    %v824 = vsel %vm820, %v817, -inf
    %825 = vmax.xlane.f32.xlu0 %v824
    %v826 = vpop.xlane.xlu0 %825
    %v827 = vsel %vm820, %v818, -inf
    %828 = vmax.xlane.f32.xlu0 %v827
    %v829 = vpop.xlane.xlu0 %828
    %v830 = vsel %vm820, %v819, -inf
    %831 = vmax.xlane.f32.xlu0 %v830
    %v832 = vpop.xlane.xlu0 %831
    %v833 = vsub.f32 %v816, %v823
    %v834 = vsub.f32 %v817, %v826
    %v835 = vsub.f32 %v818, %v829
    %v836 = vsub.f32 %v819, %v832
    %v837 = vmul.f32 %v833, 1.442695
    %v838 = vpow.pop %v837
    %v839 = vmul.f32 %v834, 1.442695
    %v840 = vpow.pop %v839
    %v841 = vmul.f32 %v835, 1.442695
    %v842 = vpow.pop %v841
    %v843 = vmul.f32 %v836, 1.442695
    %v844 = vpow.pop %v843
    %v845 = vsub.f32 1.0, %v68
    %v846 = vsub.f32 1.0, %v69
    %v847 = vsub.f32 1.0, %v70
    %v848 = vsub.f32 1.0, %v71
    %v850 = vsel %vm820, %v838, 0
    %v853 = vsel %vm820, %v840, 0
    %v856 = vsel %vm820, %v842, 0
    %v859 = vsel %vm820, %v844, 0
    %861 = vmatprep.subr.mxu0 0.0
    %862 = vmatpush1.msra.mxu0 %v60
    %863 = vmatprep.subr.mxu0 0.0
    %864 = vmatpush1.msra.mxu0 %v61
    %865 = vmatprep.subr.mxu0 0.0
    %866 = vmatpush1.msra.mxu0 %v62
    %867 = vmatprep.subr.mxu0 0.0
    %868 = vmatpush1.msra.mxu0 %v63
    %869 = vmatprep.subr.mxu0 0.0
    %870 = vmatpush1.msra.mxu0 %v64
    %871 = vmatprep.subr.mxu0 0.0
    %872 = vmatpush1.msra.mxu0 %v65
    %873 = vmatprep.subr.mxu0 0.0
    %874 = vmatpush1.msra.mxu0 %v66
    %875 = vmatprep.subr.mxu0 0.0
    %876 = vmatpush1.msra.mxu0 %v67
    %877 = vmatprep.subr.mxu0 0.0
    %878 = vmatpush1.msra.mxu0 0.0
    %879 = vmatprep.subr.mxu0 0.0
    %880 = vmatpush1.msra.mxu0 0.0
    %881 = vmatprep.subr.mxu0 0.0
    %882 = vmatpush1.msra.mxu0 0.0
    %883 = vmatprep.subr.mxu0 0.0
    %884 = vmatpush1.msra.mxu0 0.0
    %885 = vmatprep.subr.mxu0 0.0
    %886 = vmatpush1.msra.mxu0 0.0
    %887 = vmatprep.subr.mxu0 0.0
    %888 = vmatpush1.msra.mxu0 0.0
    %889 = vmatprep.subr.mxu0 0.0
    %890 = vmatpush1.msra.mxu0 0.0
    %891 = vmatprep.subr.mxu0 0.0
    %892 = vmatpush1.msra.mxu0 0.0
    %893 = vmatprep.subr.mxu0 0.0
    %894 = vmatpush1.msra.mxu0 0.0
    %895 = vmatprep.subr.mxu0 0.0
    %896 = vmatpush1.msra.mxu0 0.0
    %897 = vmatprep.subr.mxu0 0.0
    %898 = vmatpush1.msra.mxu0 0.0
    %899 = vmatprep.subr.mxu0 0.0
    %900 = vmatpush1.msra.mxu0 0.0
    %901 = vmatprep.subr.mxu0 0.0
    %902 = vmatpush1.msra.mxu0 0.0
    %903 = vmatprep.subr.mxu0 0.0
    %904 = vmatpush1.msra.mxu0 0.0
    %905 = vmatprep.subr.mxu0 0.0
    %906 = vmatpush1.msra.mxu0 0.0
    %907 = vmatprep.subr.mxu0 0.0
    %908 = vmatpush1.msra.mxu0 0.0
    %909 = vmatprep.subr.mxu0 0.0
    %910 = vmatpush1.msra.mxu0 0.0
    %911 = vmatprep.subr.mxu0 0.0
    %912 = vmatpush1.msra.mxu0 0.0
    %913 = vmatprep.subr.mxu0 0.0
    %914 = vmatpush1.msra.mxu0 0.0
    %915 = vmatprep.subr.mxu0 0.0
    %916 = vmatpush1.msra.mxu0 0.0
    %917 = vmatprep.subr.mxu0 0.0
    %918 = vmatpush1.msra.mxu0 0.0
    %919 = vmatprep.subr.mxu0 0.0
    %920 = vmatpush1.msra.mxu0 0.0
    %921 = vmatprep.subr.mxu0 0.0
    %922 = vmatpush1.msra.mxu0 0.0
    %923 = vmatprep.subr.mxu0 0.0
    %924 = vmatpush1.msra.mxu0 0.0
    %925 = vmatprep.mubr.f32.mxu0 0.0
    %926 = vmatmul.mubr.f32.gmra.mrb[0].mxu0 %v850
    %v927 = vpop.f32.mrb[0].mxu0
    %v928 = vadd.f32 %v845, %v927
    %v929 = vpop.f32.mrb[0].mxu0
    %930 = vmatprep.mubr.f32.mxu0 0.0
    %931 = vmatmul.mubr.f32.gmra.mrb[0].mxu0 %v853
    %v932 = vpop.f32.mrb[0].mxu0
    %v933 = vadd.f32 %v846, %v932
    %v934 = vpop.f32.mrb[0].mxu0
    %935 = vmatprep.mubr.f32.mxu0 0.0
    %936 = vmatmul.mubr.f32.gmra.mrb[0].mxu0 %v856
    %v937 = vpop.f32.mrb[0].mxu0
    %v938 = vadd.f32 %v847, %v937
    %v939 = vpop.f32.mrb[0].mxu0
    %940 = vmatprep.mubr.f32.mxu0 0.0
    %941 = vmatmul.mubr.f32.gmra.mrb[0].mxu0 %v859
    %v942 = vpop.f32.mrb[0].mxu0
    %v943 = vadd.f32 %v848, %v942
    %v944 = vpop.f32.mrb[0].mxu0
    %945 = vdwg.mxu0
    %v946 = vrcp.pop %v928
    %v947 = vmul.f32 %v838, %v946
    %v948 = vrcp.pop %v933
    %v949 = vmul.f32 %v840, %v948
    %v950 = vrcp.pop %v938
    %v951 = vmul.f32 %v842, %v950
    %v952 = vrcp.pop %v943
    %v953 = vmul.f32 %v844, %v952
    %v955 = vsel %vm820, %v947, 0
    %v958 = vsel %vm820, %v949, 0
    %v961 = vsel %vm820, %v951, 0
    %v964 = vsel %vm820, %v953, 0
    %966 = vmatprep.subr.mxu0 0.0
    %967 = vmatpush1.msra.mxu0 %v687
    %968 = vmatprep.subr.mxu0 0.0
    %969 = vmatpush1.msra.mxu0 %v688
    %970 = vmatprep.subr.mxu0 0.0
    %971 = vmatpush1.msra.mxu0 %v689
    %972 = vmatprep.subr.mxu0 0.0
    %973 = vmatpush1.msra.mxu0 %v690
    %974 = vmatprep.subr.mxu0 0.0
    %975 = vmatpush1.msra.mxu0 %v691
    %976 = vmatprep.subr.mxu0 0.0
    %977 = vmatpush1.msra.mxu0 %v692
    %978 = vmatprep.subr.mxu0 0.0
    %979 = vmatpush1.msra.mxu0 %v693
    %980 = vmatprep.subr.mxu0 0.0
    %981 = vmatpush1.msra.mxu0 %v694
    %982 = vmatprep.subr.mxu0 0.0
    %983 = vmatpush1.msra.mxu0 0.0
    %984 = vmatprep.subr.mxu0 0.0
    %985 = vmatpush1.msra.mxu0 0.0
    %986 = vmatprep.subr.mxu0 0.0
    %987 = vmatpush1.msra.mxu0 0.0
    %988 = vmatprep.subr.mxu0 0.0
    %989 = vmatpush1.msra.mxu0 0.0
    %990 = vmatprep.subr.mxu0 0.0
    %991 = vmatpush1.msra.mxu0 0.0
    %992 = vmatprep.subr.mxu0 0.0
    %993 = vmatpush1.msra.mxu0 0.0
    %994 = vmatprep.subr.mxu0 0.0
    %995 = vmatpush1.msra.mxu0 0.0
    %996 = vmatprep.subr.mxu0 0.0
    %997 = vmatpush1.msra.mxu0 0.0
    %998 = vmatprep.subr.mxu0 0.0
    %999 = vmatpush1.msra.mxu0 0.0
    %1000 = vmatprep.subr.mxu0 0.0
    %1001 = vmatpush1.msra.mxu0 0.0
    %1002 = vmatprep.subr.mxu0 0.0
    %1003 = vmatpush1.msra.mxu0 0.0
    %1004 = vmatprep.subr.mxu0 0.0
    %1005 = vmatpush1.msra.mxu0 0.0
    %1006 = vmatprep.subr.mxu0 0.0
    %1007 = vmatpush1.msra.mxu0 0.0
    %1008 = vmatprep.subr.mxu0 0.0
    %1009 = vmatpush1.msra.mxu0 0.0
    %1010 = vmatprep.subr.mxu0 0.0
    %1011 = vmatpush1.msra.mxu0 0.0
    %1012 = vmatprep.subr.mxu0 0.0
    %1013 = vmatpush1.msra.mxu0 0.0
    %1014 = vmatprep.subr.mxu0 0.0
    %1015 = vmatpush1.msra.mxu0 0.0
    %1016 = vmatprep.subr.mxu0 0.0
    %1017 = vmatpush1.msra.mxu0 0.0
    %1018 = vmatprep.subr.mxu0 0.0
    %1019 = vmatpush1.msra.mxu0 0.0
    %1020 = vmatprep.subr.mxu0 0.0
    %1021 = vmatpush1.msra.mxu0 0.0
    %1022 = vmatprep.subr.mxu0 0.0
    %1023 = vmatpush1.msra.mxu0 0.0
    %1024 = vmatprep.subr.mxu0 0.0
    %1025 = vmatpush1.msra.mxu0 0.0
    %1026 = vmatprep.subr.mxu0 0.0
    %1027 = vmatpush1.msra.mxu0 0.0
    %1028 = vmatprep.subr.mxu0 0.0
    %1029 = vmatpush1.msra.mxu0 0.0
    %1030 = vmatprep.mubr.f32.mxu0 0.0
    %1031 = vmatmul.mubr.f32.gmra.mrb[0].mxu0 %v955
    %v1032 = vpop.f32.mrb[0].mxu0
    %v1033 = vadd.f32 0.0, %v1032
    %v1034 = vpop.f32.mrb[0].mxu0
    %1035 = vmatprep.mubr.f32.mxu0 0.0
    %1036 = vmatmul.mubr.f32.gmra.mrb[0].mxu0 %v958
    %v1037 = vpop.f32.mrb[0].mxu0
    %v1038 = vadd.f32 0.0, %v1037
    %v1039 = vpop.f32.mrb[0].mxu0
    %1040 = vmatprep.mubr.f32.mxu0 0.0
    %1041 = vmatmul.mubr.f32.gmra.mrb[0].mxu0 %v961
    %v1042 = vpop.f32.mrb[0].mxu0
    %v1043 = vadd.f32 0.0, %v1042
    %v1044 = vpop.f32.mrb[0].mxu0
    %1045 = vmatprep.mubr.f32.mxu0 0.0
    %1046 = vmatmul.mubr.f32.gmra.mrb[0].mxu0 %v964
    %v1047 = vpop.f32.mrb[0].mxu0
    %v1048 = vadd.f32 0.0, %v1047
    %v1049 = vpop.f32.mrb[0].mxu0
    %1050 = vdwg.mxu0
    %v1051 = vlaneseq
    %v1052 = vshrl.u32 %v1051, 7
    %v1053 = vsub.s32 0, %v1052
    %v1054 = vrot.slane %v443, %v1053
    %v1056 = vsel %vm74, %v1033, 0
    %v1059 = vsel %vm74, %v1038, 0
    %v1062 = vsel %vm74, %v1043, 0
    %v1065 = vsel %vm74, %v1048, 0
    %1067 = vmatprep.subr.mxu0 0.0
    %1068 = vmatpush1.msra.mxu0 %v439
    %1069 = vmatprep.subr.mxu0 0.0
    %1070 = vmatpush1.msra.mxu0 %v440
    %1071 = vmatprep.subr.mxu0 0.0
    %1072 = vmatpush1.msra.mxu0 %v441
    %1073 = vmatprep.subr.mxu0 0.0
    %1074 = vmatpush1.msra.mxu0 %v442
    %1075 = vmatprep.subr.mxu0 0.0
    %1076 = vmatpush1.msra.mxu0 0.0
    %1077 = vmatprep.subr.mxu0 0.0
    %1078 = vmatpush1.msra.mxu0 0.0
    %1079 = vmatprep.subr.mxu0 0.0
    %1080 = vmatpush1.msra.mxu0 0.0
    %1081 = vmatprep.subr.mxu0 0.0
    %1082 = vmatpush1.msra.mxu0 0.0
    %1083 = vmatprep.subr.mxu0 0.0
    %1084 = vmatpush1.msra.mxu0 0.0
    %1085 = vmatprep.subr.mxu0 0.0
    %1086 = vmatpush1.msra.mxu0 0.0
    %1087 = vmatprep.subr.mxu0 0.0
    %1088 = vmatpush1.msra.mxu0 0.0
    %1089 = vmatprep.subr.mxu0 0.0
    %1090 = vmatpush1.msra.mxu0 0.0
    %1091 = vmatprep.subr.mxu0 0.0
    %1092 = vmatpush1.msra.mxu0 0.0
    %1093 = vmatprep.subr.mxu0 0.0
    %1094 = vmatpush1.msra.mxu0 0.0
    %1095 = vmatprep.subr.mxu0 0.0
    %1096 = vmatpush1.msra.mxu0 0.0
    %1097 = vmatprep.subr.mxu0 0.0
    %1098 = vmatpush1.msra.mxu0 0.0
    %1099 = vmatprep.subr.mxu0 0.0
    %1100 = vmatpush1.msra.mxu0 0.0
    %1101 = vmatprep.subr.mxu0 0.0
    %1102 = vmatpush1.msra.mxu0 0.0
    %1103 = vmatprep.subr.mxu0 0.0
    %1104 = vmatpush1.msra.mxu0 0.0
    %1105 = vmatprep.subr.mxu0 0.0
    %1106 = vmatpush1.msra.mxu0 0.0
    %1107 = vmatprep.subr.mxu0 0.0
    %1108 = vmatpush1.msra.mxu0 0.0
    %1109 = vmatprep.subr.mxu0 0.0
    %1110 = vmatpush1.msra.mxu0 0.0
    %1111 = vmatprep.subr.mxu0 0.0
    %1112 = vmatpush1.msra.mxu0 0.0
    %1113 = vmatprep.subr.mxu0 0.0
    %1114 = vmatpush1.msra.mxu0 0.0
    %1115 = vmatprep.subr.mxu0 0.0
    %1116 = vmatpush1.msra.mxu0 0.0
    %1117 = vmatprep.subr.mxu0 0.0
    %1118 = vmatpush1.msra.mxu0 0.0
    %1119 = vmatprep.subr.mxu0 0.0
    %1120 = vmatpush1.msra.mxu0 0.0
    %1121 = vmatprep.subr.mxu0 0.0
    %1122 = vmatpush1.msra.mxu0 0.0
    %1123 = vmatprep.subr.mxu0 0.0
    %1124 = vmatpush1.msra.mxu0 0.0
    %1125 = vmatprep.subr.mxu0 0.0
    %1126 = vmatpush1.msra.mxu0 0.0
    %1127 = vmatprep.subr.mxu0 0.0
    %1128 = vmatpush1.msra.mxu0 0.0
    %1129 = vmatprep.subr.mxu0 0.0
    %1130 = vmatpush1.msra.mxu0 0.0
    %1131 = vmatprep.mubr.f32.mxu0 0.0
    %1132 = vmatmul.mubr.f32.gmra.mrb[0].mxu0 %v1056
    %v1133 = vpop.f32.mrb[0].mxu0
    %v1134 = vadd.f32 %v1054, %v1133
    %v1135 = vpop.f32.mrb[0].mxu0
    %1136 = vmatprep.mubr.f32.mxu0 0.0
    %1137 = vmatmul.mubr.f32.gmra.mrb[0].mxu0 %v1059
    %v1138 = vpop.f32.mrb[0].mxu0
    %v1139 = vadd.f32 %v1054, %v1138
    %v1140 = vpop.f32.mrb[0].mxu0
    %1141 = vmatprep.mubr.f32.mxu0 0.0
    %1142 = vmatmul.mubr.f32.gmra.mrb[0].mxu0 %v1062
    %v1143 = vpop.f32.mrb[0].mxu0
    %v1144 = vadd.f32 %v1054, %v1143
    %v1145 = vpop.f32.mrb[0].mxu0
    %1146 = vmatprep.mubr.f32.mxu0 0.0
    %1147 = vmatmul.mubr.f32.gmra.mrb[0].mxu0 %v1065
    %v1148 = vpop.f32.mrb[0].mxu0
    %v1149 = vadd.f32 %v1054, %v1148
    %v1150 = vpop.f32.mrb[0].mxu0
    %1151 = vdwg.mxu0
    %v1152 = vadd.f32 %v40, %v1134
    %v1153 = vadd.f32 %v41, %v1139
    %v1154 = vadd.f32 %v42, %v1144
    %v1155 = vadd.f32 %v43, %v1149
    %v1156 = vld [vmem:[#allocation5 + $0x303] sm:$0x1]
    %v1157 = vld [vmem:[#allocation5 + $0x304] sm:$0x1]
    %v1158 = vsel %vm74, %v1152, 0.0
    %1159 = vadd.xlane.f32.xlu0 %v1158
    %v1160 = vpop.xlane.xlu0 %1159
    %v1161 = vsel %vm74, %v1153, 0.0
    %1162 = vadd.xlane.f32.xlu0 %v1161
    %v1163 = vpop.xlane.xlu0 %1162
    %v1164 = vsel %vm74, %v1154, 0.0
    %1165 = vadd.xlane.f32.xlu0 %v1164
    %v1166 = vpop.xlane.xlu0 %1165
    %v1167 = vsel %vm74, %v1155, 0.0
    %1168 = vadd.xlane.f32.xlu0 %v1167
    %v1169 = vpop.xlane.xlu0 %1168
    %v1170 = vmul.f32 %v1160, %v87
    %v1171 = vmul.f32 %v1163, %v87
    %v1172 = vmul.f32 %v1166, %v87
    %v1173 = vmul.f32 %v1169, %v87
    %v1174 = vsub.f32 %v1152, %v1170
    %v1175 = vsub.f32 %v1153, %v1171
    %v1176 = vsub.f32 %v1154, %v1172
    %v1177 = vsub.f32 %v1155, %v1173
    %v1178 = vmul.f32 %v1174, %v1174
    %v1179 = vmul.f32 %v1175, %v1175
    %v1180 = vmul.f32 %v1176, %v1176
    %v1181 = vmul.f32 %v1177, %v1177
    %v1182 = vsel %vm74, %v1178, 0.0
    %1183 = vadd.xlane.f32.xlu0 %v1182
    %v1184 = vpop.xlane.xlu0 %1183
    %v1185 = vsel %vm74, %v1179, 0.0
    %1186 = vadd.xlane.f32.xlu0 %v1185
    %v1187 = vpop.xlane.xlu0 %1186
    %v1188 = vsel %vm74, %v1180, 0.0
    %1189 = vadd.xlane.f32.xlu0 %v1188
    %v1190 = vpop.xlane.xlu0 %1189
    %v1191 = vsel %vm74, %v1181, 0.0
    %1192 = vadd.xlane.f32.xlu0 %v1191
    %v1193 = vpop.xlane.xlu0 %1192
    %v1194 = vmul.f32 %v1184, %v87
    %v1195 = vmul.f32 %v1187, %v87
    %v1196 = vmul.f32 %v1190, %v87
    %v1197 = vmul.f32 %v1193, %v87
    %v1198 = vadd.f32 %v1194, 1e-05
    %v1199 = vadd.f32 %v1195, 1e-05
    %v1200 = vadd.f32 %v1196, 1e-05
    %v1201 = vadd.f32 %v1197, 1e-05
    %v1202 = vrsqrt.pop %v1198
    %v1203 = vrsqrt.pop %v1199
    %v1204 = vrsqrt.pop %v1200
    %v1205 = vrsqrt.pop %v1201
    %v1206 = vmul.f32 %v1174, %v1202
    %v1207 = vmul.f32 %v1175, %v1203
    %v1208 = vmul.f32 %v1176, %v1204
    %v1209 = vmul.f32 %v1177, %v1205
    %v1210 = vlaneseq
    %v1211 = vshrl.u32 %v1210, 7
    %v1212 = vsub.s32 0, %v1211
    %v1213 = vrot.slane %v1156, %v1212
    %v1214 = vmul.f32 %v1206, %v1213
    %v1215 = vmul.f32 %v1207, %v1213
    %v1216 = vmul.f32 %v1208, %v1213
    %v1217 = vmul.f32 %v1209, %v1213
    %v1218 = vlaneseq
    %v1219 = vshrl.u32 %v1218, 7
    %v1220 = vsub.s32 0, %v1219
    %v1221 = vrot.slane %v1157, %v1220
    %v1222 = vadd.f32 %v1214, %v1221
    %v1223 = vadd.f32 %v1215, %v1221
    %v1224 = vadd.f32 %v1216, %v1221
    %v1225 = vadd.f32 %v1217, %v1221
    %v1226 = vld [vmem:[#allocation5 + $0x60] sm:$0xff]
    %v1227 = vld [vmem:[#allocation5 + $0x68] sm:$0xff]
    %v1228 = vld [vmem:[#allocation5 + $0x70] sm:$0xff]
    %v1229 = vld [vmem:[#allocation5 + $0x78] sm:$0xff]
    %v1230 = vld [vmem:[#allocation5 + $0x305] sm:$0x1]
    %v1231 = vlaneseq
    %v1232 = vshrl.u32 %v1231, 7
    %v1233 = vsub.s32 0, %v1232
    %v1234 = vrot.slane %v1230, %v1233
    %v1236 = vsel %vm74, %v1222, 0
    %v1239 = vsel %vm74, %v1223, 0
    %v1242 = vsel %vm74, %v1224, 0
    %v1245 = vsel %vm74, %v1225, 0
    %1247 = vmatprep.subr.mxu0 0.0
    %1248 = vmatpush1.msra.mxu0 %v1226
    %1249 = vmatprep.subr.mxu0 0.0
    %1250 = vmatpush1.msra.mxu0 %v1227
    %1251 = vmatprep.subr.mxu0 0.0
    %1252 = vmatpush1.msra.mxu0 %v1228
    %1253 = vmatprep.subr.mxu0 0.0
    %1254 = vmatpush1.msra.mxu0 %v1229
    %1255 = vmatprep.subr.mxu0 0.0
    %1256 = vmatpush1.msra.mxu0 0.0
    %1257 = vmatprep.subr.mxu0 0.0
    %1258 = vmatpush1.msra.mxu0 0.0
    %1259 = vmatprep.subr.mxu0 0.0
    %1260 = vmatpush1.msra.mxu0 0.0
    %1261 = vmatprep.subr.mxu0 0.0
    %1262 = vmatpush1.msra.mxu0 0.0
    %1263 = vmatprep.subr.mxu0 0.0
    %1264 = vmatpush1.msra.mxu0 0.0
    %1265 = vmatprep.subr.mxu0 0.0
    %1266 = vmatpush1.msra.mxu0 0.0
    %1267 = vmatprep.subr.mxu0 0.0
    %1268 = vmatpush1.msra.mxu0 0.0
    %1269 = vmatprep.subr.mxu0 0.0
    %1270 = vmatpush1.msra.mxu0 0.0
    %1271 = vmatprep.subr.mxu0 0.0
    %1272 = vmatpush1.msra.mxu0 0.0
    %1273 = vmatprep.subr.mxu0 0.0
    %1274 = vmatpush1.msra.mxu0 0.0
    %1275 = vmatprep.subr.mxu0 0.0
    %1276 = vmatpush1.msra.mxu0 0.0
    %1277 = vmatprep.subr.mxu0 0.0
    %1278 = vmatpush1.msra.mxu0 0.0
    %1279 = vmatprep.subr.mxu0 0.0
    %1280 = vmatpush1.msra.mxu0 0.0
    %1281 = vmatprep.subr.mxu0 0.0
    %1282 = vmatpush1.msra.mxu0 0.0
    %1283 = vmatprep.subr.mxu0 0.0
    %1284 = vmatpush1.msra.mxu0 0.0
    %1285 = vmatprep.subr.mxu0 0.0
    %1286 = vmatpush1.msra.mxu0 0.0
    %1287 = vmatprep.subr.mxu0 0.0
    %1288 = vmatpush1.msra.mxu0 0.0
    %1289 = vmatprep.subr.mxu0 0.0
    %1290 = vmatpush1.msra.mxu0 0.0
    %1291 = vmatprep.subr.mxu0 0.0
    %1292 = vmatpush1.msra.mxu0 0.0
    %1293 = vmatprep.subr.mxu0 0.0
    %1294 = vmatpush1.msra.mxu0 0.0
    %1295 = vmatprep.subr.mxu0 0.0
    %1296 = vmatpush1.msra.mxu0 0.0
    %1297 = vmatprep.subr.mxu0 0.0
    %1298 = vmatpush1.msra.mxu0 0.0
    %1299 = vmatprep.subr.mxu0 0.0
    %1300 = vmatpush1.msra.mxu0 0.0
    %1301 = vmatprep.subr.mxu0 0.0
    %1302 = vmatpush1.msra.mxu0 0.0
    %1303 = vmatprep.subr.mxu0 0.0
    %1304 = vmatpush1.msra.mxu0 0.0
    %1305 = vmatprep.subr.mxu0 0.0
    %1306 = vmatpush1.msra.mxu0 0.0
    %1307 = vmatprep.subr.mxu0 0.0
    %1308 = vmatpush1.msra.mxu0 0.0
    %1309 = vmatprep.subr.mxu0 0.0
    %1310 = vmatpush1.msra.mxu0 0.0
    %1311 = vmatprep.mubr.f32.mxu0 0.0
    %1312 = vmatmul.mubr.f32.gmra.mrb[0].mxu0 %v1236
    %v1313 = vpop.f32.mrb[0].mxu0
    %v1314 = vadd.f32 %v1234, %v1313
    %v1315 = vpop.f32.mrb[0].mxu0
    %1316 = vmatprep.mubr.f32.mxu0 0.0
    %1317 = vmatmul.mubr.f32.gmra.mrb[0].mxu0 %v1239
    %v1318 = vpop.f32.mrb[0].mxu0
    %v1319 = vadd.f32 %v1234, %v1318
    %v1320 = vpop.f32.mrb[0].mxu0
    %1321 = vmatprep.mubr.f32.mxu0 0.0
    %1322 = vmatmul.mubr.f32.gmra.mrb[0].mxu0 %v1242
    %v1323 = vpop.f32.mrb[0].mxu0
    %v1324 = vadd.f32 %v1234, %v1323
    %v1325 = vpop.f32.mrb[0].mxu0
    %1326 = vmatprep.mubr.f32.mxu0 0.0
    %1327 = vmatmul.mubr.f32.gmra.mrb[0].mxu0 %v1245
    %v1328 = vpop.f32.mrb[0].mxu0
    %v1329 = vadd.f32 %v1234, %v1328
    %v1330 = vpop.f32.mrb[0].mxu0
    %1331 = vdwg.mxu0
    %v1332 = vmul.f32 %v1314, 0.5
    %v1333 = vmul.f32 %v1319, 0.5
    %v1334 = vmul.f32 %v1324, 0.5
    %v1335 = vmul.f32 %v1329, 0.5
    %v1336 = vmul.f32 %v1314, 0.70710677
    %v1337 = vmul.f32 %v1319, 0.70710677
    %v1338 = vmul.f32 %v1324, 0.70710677
    %v1339 = vmul.f32 %v1329, 0.70710677
    %v1340 = vand.u32 2147483647, %v1336
    %v1341 = vand.u32 2147483647, %v1337
    %v1342 = vand.u32 2147483647, %v1338
    %v1343 = vand.u32 2147483647, %v1339
    %v1344 = vmul.f32 %v1340, 0.3275911
    %v1345 = vmul.f32 %v1341, 0.3275911
    %v1346 = vmul.f32 %v1342, 0.3275911
    %v1347 = vmul.f32 %v1343, 0.3275911
    %v1348 = vadd.f32 %v1344, 1.0
    %v1349 = vadd.f32 %v1345, 1.0
    %v1350 = vadd.f32 %v1346, 1.0
    %v1351 = vadd.f32 %v1347, 1.0
    %v1352 = vrcp.pop %v1348
    %v1353 = vmul.f32 1.0, %v1352
    %v1354 = vrcp.pop %v1349
    %v1355 = vmul.f32 1.0, %v1354
    %v1356 = vrcp.pop %v1350
    %v1357 = vmul.f32 1.0, %v1356
    %v1358 = vrcp.pop %v1351
    %v1359 = vmul.f32 1.0, %v1358
    %v1360 = vmul.f32 %v1353, 1.0614054
    %v1361 = vmul.f32 %v1355, 1.0614054
    %v1362 = vmul.f32 %v1357, 1.0614054
    %v1363 = vmul.f32 %v1359, 1.0614054
    %v1364 = vadd.f32 %v1360, -1.4531521
    %v1365 = vadd.f32 %v1361, -1.4531521
    %v1366 = vadd.f32 %v1362, -1.4531521
    %v1367 = vadd.f32 %v1363, -1.4531521
    %v1368 = vmul.f32 %v1364, %v1353
    %v1369 = vmul.f32 %v1365, %v1355
    %v1370 = vmul.f32 %v1366, %v1357
    %v1371 = vmul.f32 %v1367, %v1359
    %v1372 = vadd.f32 %v1368, 1.4214138
    %v1373 = vadd.f32 %v1369, 1.4214138
    %v1374 = vadd.f32 %v1370, 1.4214138
    %v1375 = vadd.f32 %v1371, 1.4214138
    %v1376 = vmul.f32 %v1372, %v1353
    %v1377 = vmul.f32 %v1373, %v1355
    %v1378 = vmul.f32 %v1374, %v1357
    %v1379 = vmul.f32 %v1375, %v1359
    %v1380 = vadd.f32 %v1376, -0.28449672
    %v1381 = vadd.f32 %v1377, -0.28449672
    %v1382 = vadd.f32 %v1378, -0.28449672
    %v1383 = vadd.f32 %v1379, -0.28449672
    %v1384 = vmul.f32 %v1380, %v1353
    %v1385 = vmul.f32 %v1381, %v1355
    %v1386 = vmul.f32 %v1382, %v1357
    %v1387 = vmul.f32 %v1383, %v1359
    %v1388 = vadd.f32 %v1384, 0.2548296
    %v1389 = vadd.f32 %v1385, 0.2548296
    %v1390 = vadd.f32 %v1386, 0.2548296
    %v1391 = vadd.f32 %v1387, 0.2548296
    %v1392 = vmul.f32 %v1388, %v1353
    %v1393 = vmul.f32 %v1389, %v1355
    %v1394 = vmul.f32 %v1390, %v1357
    %v1395 = vmul.f32 %v1391, %v1359
    %v1396 = vsub.f32 0.0, %v1340
    %v1397 = vsub.f32 0.0, %v1341
    %v1398 = vsub.f32 0.0, %v1342
    %v1399 = vsub.f32 0.0, %v1343
    %v1400 = vmul.f32 %v1396, %v1340
    %v1401 = vmul.f32 %v1397, %v1341
    %v1402 = vmul.f32 %v1398, %v1342
    %v1403 = vmul.f32 %v1399, %v1343
    %v1404 = vmul.f32 %v1400, 1.442695
    %v1405 = vpow.pop %v1404
    %v1406 = vmul.f32 %v1401, 1.442695
    %v1407 = vpow.pop %v1406
    %v1408 = vmul.f32 %v1402, 1.442695
    %v1409 = vpow.pop %v1408
    %v1410 = vmul.f32 %v1403, 1.442695
    %v1411 = vpow.pop %v1410
    %v1412 = vmul.f32 %v1392, %v1405
    %v1413 = vmul.f32 %v1393, %v1407
    %v1414 = vmul.f32 %v1394, %v1409
    %v1415 = vmul.f32 %v1395, %v1411
    %v1416 = vsub.f32 1.0, %v1412
    %v1417 = vsub.f32 1.0, %v1413
    %v1418 = vsub.f32 1.0, %v1414
    %v1419 = vsub.f32 1.0, %v1415
    %vm1420 = vcmp.ge.f32.partialorder %v1336, 0.0
    %vm1421 = vcmp.ge.f32.partialorder %v1337, 0.0
    %vm1422 = vcmp.ge.f32.partialorder %v1338, 0.0
    %vm1423 = vcmp.ge.f32.partialorder %v1339, 0.0
    %v1424 = vsub.f32 0.0, %v1416
    %v1425 = vsub.f32 0.0, %v1417
    %v1426 = vsub.f32 0.0, %v1418
    %v1427 = vsub.f32 0.0, %v1419
    %v1428 = vsel %vm1420, %v1416, %v1424
    %v1429 = vsel %vm1421, %v1417, %v1425
    %v1430 = vsel %vm1422, %v1418, %v1426
    %v1431 = vsel %vm1423, %v1419, %v1427
    %v1432 = vadd.f32 %v1428, 1.0
    %v1433 = vadd.f32 %v1429, 1.0
    %v1434 = vadd.f32 %v1430, 1.0
    %v1435 = vadd.f32 %v1431, 1.0
    %v1436 = vmul.f32 %v1332, %v1432
    %v1437 = vmul.f32 %v1333, %v1433
    %v1438 = vmul.f32 %v1334, %v1434
    %v1439 = vmul.f32 %v1335, %v1435
    %v1440 = vld [vmem:[#allocation5 + $0x80] sm:$0xff]
    %v1441 = vld [vmem:[#allocation5 + $0x88] sm:$0xff]
    %v1442 = vld [vmem:[#allocation5 + $0x90] sm:$0xff]
    %v1443 = vld [vmem:[#allocation5 + $0x98] sm:$0xff]
    %v1444 = vld [vmem:[#allocation5 + $0xa0] sm:$0xff]
    %v1445 = vld [vmem:[#allocation5 + $0xa8] sm:$0xff]
    %v1446 = vld [vmem:[#allocation5 + $0xb0] sm:$0xff]
    %v1447 = vld [vmem:[#allocation5 + $0xb8] sm:$0xff]
    %v1448 = vld [vmem:[#allocation5 + $0xc0] sm:$0xff]
    %v1449 = vld [vmem:[#allocation5 + $0xc8] sm:$0xff]
    %v1450 = vld [vmem:[#allocation5 + $0xd0] sm:$0xff]
    %v1451 = vld [vmem:[#allocation5 + $0xd8] sm:$0xff]
    %v1452 = vld [vmem:[#allocation5 + $0xe0] sm:$0xff]
    %v1453 = vld [vmem:[#allocation5 + $0xe8] sm:$0xff]
    %v1454 = vld [vmem:[#allocation5 + $0xf0] sm:$0xff]
    %v1455 = vld [vmem:[#allocation5 + $0xf8] sm:$0xff]
    %1456 = vmatprep.subr.mxu0 0.0
    %1457 = vmatpush1.msra.mxu0 %v1440
    %1458 = vmatprep.subr.mxu0 0.0
    %1459 = vmatpush1.msra.mxu0 %v1441
    %1460 = vmatprep.subr.mxu0 0.0
    %1461 = vmatpush1.msra.mxu0 %v1442
    %1462 = vmatprep.subr.mxu0 0.0
    %1463 = vmatpush1.msra.mxu0 %v1443
    %1464 = vmatprep.subr.mxu0 0.0
    %1465 = vmatpush1.msra.mxu0 %v1444
    %1466 = vmatprep.subr.mxu0 0.0
    %1467 = vmatpush1.msra.mxu0 %v1445
    %1468 = vmatprep.subr.mxu0 0.0
    %1469 = vmatpush1.msra.mxu0 %v1446
    %1470 = vmatprep.subr.mxu0 0.0
    %1471 = vmatpush1.msra.mxu0 %v1447
    %1472 = vmatprep.subr.mxu0 0.0
    %1473 = vmatpush1.msra.mxu0 %v1448
    %1474 = vmatprep.subr.mxu0 0.0
    %1475 = vmatpush1.msra.mxu0 %v1449
    %1476 = vmatprep.subr.mxu0 0.0
    %1477 = vmatpush1.msra.mxu0 %v1450
    %1478 = vmatprep.subr.mxu0 0.0
    %1479 = vmatpush1.msra.mxu0 %v1451
    %1480 = vmatprep.subr.mxu0 0.0
    %1481 = vmatpush1.msra.mxu0 %v1452
    %1482 = vmatprep.subr.mxu0 0.0
    %1483 = vmatpush1.msra.mxu0 %v1453
    %1484 = vmatprep.subr.mxu0 0.0
    %1485 = vmatpush1.msra.mxu0 %v1454
    %1486 = vmatprep.subr.mxu0 0.0
    %1487 = vmatpush1.msra.mxu0 %v1455
    %1488 = vmatprep.subr.mxu0 0.0
    %1489 = vmatpush1.msra.mxu0 0.0
    %1490 = vmatprep.subr.mxu0 0.0
    %1491 = vmatpush1.msra.mxu0 0.0
    %1492 = vmatprep.subr.mxu0 0.0
    %1493 = vmatpush1.msra.mxu0 0.0
    %1494 = vmatprep.subr.mxu0 0.0
    %1495 = vmatpush1.msra.mxu0 0.0
    %1496 = vmatprep.subr.mxu0 0.0
    %1497 = vmatpush1.msra.mxu0 0.0
    %1498 = vmatprep.subr.mxu0 0.0
    %1499 = vmatpush1.msra.mxu0 0.0
    %1500 = vmatprep.subr.mxu0 0.0
    %1501 = vmatpush1.msra.mxu0 0.0
    %1502 = vmatprep.subr.mxu0 0.0
    %1503 = vmatpush1.msra.mxu0 0.0
    %1504 = vmatprep.subr.mxu0 0.0
    %1505 = vmatpush1.msra.mxu0 0.0
    %1506 = vmatprep.subr.mxu0 0.0
    %1507 = vmatpush1.msra.mxu0 0.0
    %1508 = vmatprep.subr.mxu0 0.0
    %1509 = vmatpush1.msra.mxu0 0.0
    %1510 = vmatprep.subr.mxu0 0.0
    %1511 = vmatpush1.msra.mxu0 0.0
    %1512 = vmatprep.subr.mxu0 0.0
    %1513 = vmatpush1.msra.mxu0 0.0
    %1514 = vmatprep.subr.mxu0 0.0
    %1515 = vmatpush1.msra.mxu0 0.0
    %1516 = vmatprep.subr.mxu0 0.0
    %1517 = vmatpush1.msra.mxu0 0.0
    %1518 = vmatprep.subr.mxu0 0.0
    %1519 = vmatpush1.msra.mxu0 0.0
    %1520 = vmatprep.mubr.f32.mxu0 0.0
    %1521 = vmatmul.mubr.f32.gmra.mrb[0].mxu0 %v1436
    %v1522 = vpop.f32.mrb[0].mxu0
    %v1523 = vadd.f32 0.0, %v1522
    %v1524 = vpop.f32.mrb[0].mxu0
    %1525 = vmatprep.mubr.f32.mxu0 0.0
    %1526 = vmatmul.mubr.f32.gmra.mrb[0].mxu0 %v1437
    %v1527 = vpop.f32.mrb[0].mxu0
    %v1528 = vadd.f32 0.0, %v1527
    %v1529 = vpop.f32.mrb[0].mxu0
    %1530 = vmatprep.mubr.f32.mxu0 0.0
    %1531 = vmatmul.mubr.f32.gmra.mrb[0].mxu0 %v1438
    %v1532 = vpop.f32.mrb[0].mxu0
    %v1533 = vadd.f32 0.0, %v1532
    %v1534 = vpop.f32.mrb[0].mxu0
    %1535 = vmatprep.mubr.f32.mxu0 0.0
    %1536 = vmatmul.mubr.f32.gmra.mrb[0].mxu0 %v1439
    %v1537 = vpop.f32.mrb[0].mxu0
    %v1538 = vadd.f32 0.0, %v1537
    %v1539 = vpop.f32.mrb[0].mxu0
    %1540 = vdwg.mxu0
    %v1541 = vadd.f32 %v1152, %v1523
    %v1542 = vadd.f32 %v1153, %v1528
    %v1543 = vadd.f32 %v1154, %v1533
    %v1544 = vadd.f32 %v1155, %v1538
    %v1545 = vld [vmem:[#allocation5 + $0x306] sm:$0x1]
    %v1546 = vlaneseq
    %v1547 = vshrl.u32 %v1546, 7
    %v1548 = vsub.s32 0, %v1547
    %v1549 = vrot.slane %v1545, %v1548
    %v1550 = vadd.f32 %v1541, %v1549
    %v1551 = vadd.f32 %v1542, %v1549
    %v1552 = vadd.f32 %v1543, %v1549
    %v1553 = vadd.f32 %v1544, %v1549
    %v1554 = vld [vmem:[#allocation5 + $0x307] sm:$0x1]
    %v1555 = vld [vmem:[#allocation5 + $0x308] sm:$0x1]
    %v1556 = vsel %vm74, %v1550, 0.0
    %1557 = vadd.xlane.f32.xlu0 %v1556
    %v1558 = vpop.xlane.xlu0 %1557
    %v1559 = vsel %vm74, %v1551, 0.0
    %1560 = vadd.xlane.f32.xlu0 %v1559
    %v1561 = vpop.xlane.xlu0 %1560
    %v1562 = vsel %vm74, %v1552, 0.0
    %1563 = vadd.xlane.f32.xlu0 %v1562
    %v1564 = vpop.xlane.xlu0 %1563
    %v1565 = vsel %vm74, %v1553, 0.0
    %1566 = vadd.xlane.f32.xlu0 %v1565
    %v1567 = vpop.xlane.xlu0 %1566
    %v1568 = vmul.f32 %v1558, %v87
    %v1569 = vmul.f32 %v1561, %v87
    %v1570 = vmul.f32 %v1564, %v87
    %v1571 = vmul.f32 %v1567, %v87
    %v1572 = vsub.f32 %v1550, %v1568
    %v1573 = vsub.f32 %v1551, %v1569
    %v1574 = vsub.f32 %v1552, %v1570
    %v1575 = vsub.f32 %v1553, %v1571
    %v1576 = vmul.f32 %v1572, %v1572
    %v1577 = vmul.f32 %v1573, %v1573
    %v1578 = vmul.f32 %v1574, %v1574
    %v1579 = vmul.f32 %v1575, %v1575
    %v1580 = vsel %vm74, %v1576, 0.0
    %1581 = vadd.xlane.f32.xlu0 %v1580
    %v1582 = vpop.xlane.xlu0 %1581
    %v1583 = vsel %vm74, %v1577, 0.0
    %1584 = vadd.xlane.f32.xlu0 %v1583
    %v1585 = vpop.xlane.xlu0 %1584
    %v1586 = vsel %vm74, %v1578, 0.0
    %1587 = vadd.xlane.f32.xlu0 %v1586
    %v1588 = vpop.xlane.xlu0 %1587
    %v1589 = vsel %vm74, %v1579, 0.0
    %1590 = vadd.xlane.f32.xlu0 %v1589
    %v1591 = vpop.xlane.xlu0 %1590
    %v1592 = vmul.f32 %v1582, %v87
    %v1593 = vmul.f32 %v1585, %v87
    %v1594 = vmul.f32 %v1588, %v87
    %v1595 = vmul.f32 %v1591, %v87
    %v1596 = vadd.f32 %v1592, 1e-05
    %v1597 = vadd.f32 %v1593, 1e-05
    %v1598 = vadd.f32 %v1594, 1e-05
    %v1599 = vadd.f32 %v1595, 1e-05
    %v1600 = vrsqrt.pop %v1596
    %v1601 = vrsqrt.pop %v1597
    %v1602 = vrsqrt.pop %v1598
    %v1603 = vrsqrt.pop %v1599
    %v1604 = vmul.f32 %v1572, %v1600
    %v1605 = vmul.f32 %v1573, %v1601
    %v1606 = vmul.f32 %v1574, %v1602
    %v1607 = vmul.f32 %v1575, %v1603
    %v1608 = vlaneseq
    %v1609 = vshrl.u32 %v1608, 7
    %v1610 = vsub.s32 0, %v1609
    %v1611 = vrot.slane %v1554, %v1610
    %v1612 = vmul.f32 %v1604, %v1611
    %v1613 = vmul.f32 %v1605, %v1611
    %v1614 = vmul.f32 %v1606, %v1611
    %v1615 = vmul.f32 %v1607, %v1611
    %v1616 = vlaneseq
    %v1617 = vshrl.u32 %v1616, 7
    %v1618 = vsub.s32 0, %v1617
    %v1619 = vrot.slane %v1555, %v1618
    %v1620 = vadd.f32 %v1612, %v1619
    %v1621 = vadd.f32 %v1613, %v1619
    %v1622 = vadd.f32 %v1614, %v1619
    %v1623 = vadd.f32 %v1615, %v1619
    %v1624 = vld [vmem:[#allocation5 + $0x100] sm:$0xff]
    %v1625 = vld [vmem:[#allocation5 + $0x108] sm:$0xff]
    %v1626 = vld [vmem:[#allocation5 + $0x110] sm:$0xff]
    %v1627 = vld [vmem:[#allocation5 + $0x118] sm:$0xff]
    %v1629 = vsel %vm74, %v1620, 0
    %v1632 = vsel %vm74, %v1621, 0
    %v1635 = vsel %vm74, %v1622, 0
    %v1638 = vsel %vm74, %v1623, 0
    %1640 = vmatprep.subr.mxu0 0.0
    %1641 = vmatpush1.msra.mxu0 %v1624
    %1642 = vmatprep.subr.mxu0 0.0
    %1643 = vmatpush1.msra.mxu0 %v1625
    %1644 = vmatprep.subr.mxu0 0.0
    %1645 = vmatpush1.msra.mxu0 %v1626
    %1646 = vmatprep.subr.mxu0 0.0
    %1647 = vmatpush1.msra.mxu0 %v1627
    %1648 = vmatprep.subr.mxu0 0.0
    %1649 = vmatpush1.msra.mxu0 0.0
    %1650 = vmatprep.subr.mxu0 0.0
    %1651 = vmatpush1.msra.mxu0 0.0
    %1652 = vmatprep.subr.mxu0 0.0
    %1653 = vmatpush1.msra.mxu0 0.0
    %1654 = vmatprep.subr.mxu0 0.0
    %1655 = vmatpush1.msra.mxu0 0.0
    %1656 = vmatprep.subr.mxu0 0.0
    %1657 = vmatpush1.msra.mxu0 0.0
    %1658 = vmatprep.subr.mxu0 0.0
    %1659 = vmatpush1.msra.mxu0 0.0
    %1660 = vmatprep.subr.mxu0 0.0
    %1661 = vmatpush1.msra.mxu0 0.0
    %1662 = vmatprep.subr.mxu0 0.0
    %1663 = vmatpush1.msra.mxu0 0.0
    %1664 = vmatprep.subr.mxu0 0.0
    %1665 = vmatpush1.msra.mxu0 0.0
    %1666 = vmatprep.subr.mxu0 0.0
    %1667 = vmatpush1.msra.mxu0 0.0
    %1668 = vmatprep.subr.mxu0 0.0
    %1669 = vmatpush1.msra.mxu0 0.0
    %1670 = vmatprep.subr.mxu0 0.0
    %1671 = vmatpush1.msra.mxu0 0.0
    %1672 = vmatprep.subr.mxu0 0.0
    %1673 = vmatpush1.msra.mxu0 0.0
    %1674 = vmatprep.subr.mxu0 0.0
    %1675 = vmatpush1.msra.mxu0 0.0
    %1676 = vmatprep.subr.mxu0 0.0
    %1677 = vmatpush1.msra.mxu0 0.0
    %1678 = vmatprep.subr.mxu0 0.0
    %1679 = vmatpush1.msra.mxu0 0.0
    %1680 = vmatprep.subr.mxu0 0.0
    %1681 = vmatpush1.msra.mxu0 0.0
    %1682 = vmatprep.subr.mxu0 0.0
    %1683 = vmatpush1.msra.mxu0 0.0
    %1684 = vmatprep.subr.mxu0 0.0
    %1685 = vmatpush1.msra.mxu0 0.0
    %1686 = vmatprep.subr.mxu0 0.0
    %1687 = vmatpush1.msra.mxu0 0.0
    %1688 = vmatprep.subr.mxu0 0.0
    %1689 = vmatpush1.msra.mxu0 0.0
    %1690 = vmatprep.subr.mxu0 0.0
    %1691 = vmatpush1.msra.mxu0 0.0
    %1692 = vmatprep.subr.mxu0 0.0
    %1693 = vmatpush1.msra.mxu0 0.0
    %1694 = vmatprep.subr.mxu0 0.0
    %1695 = vmatpush1.msra.mxu0 0.0
    %1696 = vmatprep.subr.mxu0 0.0
    %1697 = vmatpush1.msra.mxu0 0.0
    %1698 = vmatprep.subr.mxu0 0.0
    %1699 = vmatpush1.msra.mxu0 0.0
    %1700 = vmatprep.subr.mxu0 0.0
    %1701 = vmatpush1.msra.mxu0 0.0
    %1702 = vmatprep.subr.mxu0 0.0
    %1703 = vmatpush1.msra.mxu0 0.0
    %1704 = vmatprep.mubr.f32.mxu0 0.0
    %1705 = vmatmul.mubr.f32.gmra.mrb[0].mxu0 %v1629
    %v1706 = vpop.f32.mrb[0].mxu0
    %v1707 = vadd.f32 0.0, %v1706
    %v1708 = vpop.f32.mrb[0].mxu0
    %1709 = vmatprep.mubr.f32.mxu0 0.0
    %1710 = vmatmul.mubr.f32.gmra.mrb[0].mxu0 %v1632
    %v1711 = vpop.f32.mrb[0].mxu0
    %v1712 = vadd.f32 0.0, %v1711
    %v1713 = vpop.f32.mrb[0].mxu0
    %1714 = vmatprep.mubr.f32.mxu0 0.0
    %1715 = vmatmul.mubr.f32.gmra.mrb[0].mxu0 %v1635
    %v1716 = vpop.f32.mrb[0].mxu0
    %v1717 = vadd.f32 0.0, %v1716
    %v1718 = vpop.f32.mrb[0].mxu0
    %1719 = vmatprep.mubr.f32.mxu0 0.0
    %1720 = vmatmul.mubr.f32.gmra.mrb[0].mxu0 %v1638
    %v1721 = vpop.f32.mrb[0].mxu0
    %v1722 = vadd.f32 0.0, %v1721
    %v1723 = vpop.f32.mrb[0].mxu0
    %1724 = vdwg.mxu0
    %v1725 = vld [vmem:[#allocation5 + $0x120] sm:$0xff]
    %v1726 = vld [vmem:[#allocation5 + $0x128] sm:$0xff]
    %v1727 = vld [vmem:[#allocation5 + $0x130] sm:$0xff]
    %v1728 = vld [vmem:[#allocation5 + $0x138] sm:$0xff]
    %1729 = vmatprep.subr.mxu0 0.0
    %1730 = vmatpush1.msra.mxu0 %v1725
    %1731 = vmatprep.subr.mxu0 0.0
    %1732 = vmatpush1.msra.mxu0 %v1726
    %1733 = vmatprep.subr.mxu0 0.0
    %1734 = vmatpush1.msra.mxu0 %v1727
    %1735 = vmatprep.subr.mxu0 0.0
    %1736 = vmatpush1.msra.mxu0 %v1728
    %1737 = vmatprep.subr.mxu0 0.0
    %1738 = vmatpush1.msra.mxu0 0.0
    %1739 = vmatprep.subr.mxu0 0.0
    %1740 = vmatpush1.msra.mxu0 0.0
    %1741 = vmatprep.subr.mxu0 0.0
    %1742 = vmatpush1.msra.mxu0 0.0
    %1743 = vmatprep.subr.mxu0 0.0
    %1744 = vmatpush1.msra.mxu0 0.0
    %1745 = vmatprep.subr.mxu0 0.0
    %1746 = vmatpush1.msra.mxu0 0.0
    %1747 = vmatprep.subr.mxu0 0.0
    %1748 = vmatpush1.msra.mxu0 0.0
    %1749 = vmatprep.subr.mxu0 0.0
    %1750 = vmatpush1.msra.mxu0 0.0
    %1751 = vmatprep.subr.mxu0 0.0
    %1752 = vmatpush1.msra.mxu0 0.0
    %1753 = vmatprep.subr.mxu0 0.0
    %1754 = vmatpush1.msra.mxu0 0.0
    %1755 = vmatprep.subr.mxu0 0.0
    %1756 = vmatpush1.msra.mxu0 0.0
    %1757 = vmatprep.subr.mxu0 0.0
    %1758 = vmatpush1.msra.mxu0 0.0
    %1759 = vmatprep.subr.mxu0 0.0
    %1760 = vmatpush1.msra.mxu0 0.0
    %1761 = vmatprep.subr.mxu0 0.0
    %1762 = vmatpush1.msra.mxu0 0.0
    %1763 = vmatprep.subr.mxu0 0.0
    %1764 = vmatpush1.msra.mxu0 0.0
    %1765 = vmatprep.subr.mxu0 0.0
    %1766 = vmatpush1.msra.mxu0 0.0
    %1767 = vmatprep.subr.mxu0 0.0
    %1768 = vmatpush1.msra.mxu0 0.0
    %1769 = vmatprep.subr.mxu0 0.0
    %1770 = vmatpush1.msra.mxu0 0.0
    %1771 = vmatprep.subr.mxu0 0.0
    %1772 = vmatpush1.msra.mxu0 0.0
    %1773 = vmatprep.subr.mxu0 0.0
    %1774 = vmatpush1.msra.mxu0 0.0
    %1775 = vmatprep.subr.mxu0 0.0
    %1776 = vmatpush1.msra.mxu0 0.0
    %1777 = vmatprep.subr.mxu0 0.0
    %1778 = vmatpush1.msra.mxu0 0.0
    %1779 = vmatprep.subr.mxu0 0.0
    %1780 = vmatpush1.msra.mxu0 0.0
    %1781 = vmatprep.subr.mxu0 0.0
    %1782 = vmatpush1.msra.mxu0 0.0
    %1783 = vmatprep.subr.mxu0 0.0
    %1784 = vmatpush1.msra.mxu0 0.0
    %1785 = vmatprep.subr.mxu0 0.0
    %1786 = vmatpush1.msra.mxu0 0.0
    %1787 = vmatprep.subr.mxu0 0.0
    %1788 = vmatpush1.msra.mxu0 0.0
    %1789 = vmatprep.subr.mxu0 0.0
    %1790 = vmatpush1.msra.mxu0 0.0
    %1791 = vmatprep.subr.mxu0 0.0
    %1792 = vmatpush1.msra.mxu0 0.0
    %1793 = vmatprep.mubr.f32.mxu0 0.0
    %1794 = vmatmul.mubr.f32.gmra.mrb[0].mxu0 %v1629
    %v1795 = vpop.f32.mrb[0].mxu0
    %v1796 = vadd.f32 0.0, %v1795
    %v1797 = vpop.f32.mrb[0].mxu0
    %1798 = vmatprep.mubr.f32.mxu0 0.0
    %1799 = vmatmul.mubr.f32.gmra.mrb[0].mxu0 %v1632
    %v1800 = vpop.f32.mrb[0].mxu0
    %v1801 = vadd.f32 0.0, %v1800
    %v1802 = vpop.f32.mrb[0].mxu0
    %1803 = vmatprep.mubr.f32.mxu0 0.0
    %1804 = vmatmul.mubr.f32.gmra.mrb[0].mxu0 %v1635
    %v1805 = vpop.f32.mrb[0].mxu0
    %v1806 = vadd.f32 0.0, %v1805
    %v1807 = vpop.f32.mrb[0].mxu0
    %1808 = vmatprep.mubr.f32.mxu0 0.0
    %1809 = vmatmul.mubr.f32.gmra.mrb[0].mxu0 %v1638
    %v1810 = vpop.f32.mrb[0].mxu0
    %v1811 = vadd.f32 0.0, %v1810
    %v1812 = vpop.f32.mrb[0].mxu0
    %1813 = vdwg.mxu0
    %v1814 = vld [vmem:[#allocation5 + $0x140] sm:$0xff]
    %v1815 = vld [vmem:[#allocation5 + $0x148] sm:$0xff]
    %v1816 = vld [vmem:[#allocation5 + $0x150] sm:$0xff]
    %v1817 = vld [vmem:[#allocation5 + $0x158] sm:$0xff]
    %v1819 = vsel %vm74, %v1816, 0
    %v1822 = vsel %vm74, %v1817, 0
    %1824 = vmatprep.subr.mxu0 0.0
    %1825 = vmatpush1.msra.mxu0 %v1796
    %1826 = vmatprep.subr.mxu0 0.0
    %1827 = vmatpush1.msra.mxu0 %v1801
    %1828 = vmatprep.subr.mxu0 0.0
    %1829 = vmatpush1.msra.mxu0 %v1806
    %1830 = vmatprep.subr.mxu0 0.0
    %1831 = vmatpush1.msra.mxu0 %v1811
    %1832 = vmatprep.subr.mxu0 0.0
    %1833 = vmatpush1.msra.mxu0 0.0
    %1834 = vmatprep.subr.mxu0 0.0
    %1835 = vmatpush1.msra.mxu0 0.0
    %1836 = vmatprep.subr.mxu0 0.0
    %1837 = vmatpush1.msra.mxu0 0.0
    %1838 = vmatprep.subr.mxu0 0.0
    %1839 = vmatpush1.msra.mxu0 0.0
    %1840 = vmatprep.subr.mxu0 0.0
    %1841 = vmatpush1.msra.mxu0 0.0
    %1842 = vmatprep.subr.mxu0 0.0
    %1843 = vmatpush1.msra.mxu0 0.0
    %1844 = vmatprep.subr.mxu0 0.0
    %1845 = vmatpush1.msra.mxu0 0.0
    %1846 = vmatprep.subr.mxu0 0.0
    %1847 = vmatpush1.msra.mxu0 0.0
    %1848 = vmatprep.subr.mxu0 0.0
    %1849 = vmatpush1.msra.mxu0 0.0
    %1850 = vmatprep.subr.mxu0 0.0
    %1851 = vmatpush1.msra.mxu0 0.0
    %1852 = vmatprep.subr.mxu0 0.0
    %1853 = vmatpush1.msra.mxu0 0.0
    %1854 = vmatprep.subr.mxu0 0.0
    %1855 = vmatpush1.msra.mxu0 0.0
    %1856 = vmatprep.subr.mxu0 0.0
    %1857 = vmatpush1.msra.mxu0 0.0
    %1858 = vmatprep.subr.mxu0 0.0
    %1859 = vmatpush1.msra.mxu0 0.0
    %1860 = vmatprep.subr.mxu0 0.0
    %1861 = vmatpush1.msra.mxu0 0.0
    %1862 = vmatprep.subr.mxu0 0.0
    %1863 = vmatpush1.msra.mxu0 0.0
    %1864 = vmatprep.subr.mxu0 0.0
    %1865 = vmatpush1.msra.mxu0 0.0
    %1866 = vmatprep.subr.mxu0 0.0
    %1867 = vmatpush1.msra.mxu0 0.0
    %1868 = vmatprep.subr.mxu0 0.0
    %1869 = vmatpush1.msra.mxu0 0.0
    %1870 = vmatprep.subr.mxu0 0.0
    %1871 = vmatpush1.msra.mxu0 0.0
    %1872 = vmatprep.subr.mxu0 0.0
    %1873 = vmatpush1.msra.mxu0 0.0
    %1874 = vmatprep.subr.mxu0 0.0
    %1875 = vmatpush1.msra.mxu0 0.0
    %1876 = vmatprep.subr.mxu0 0.0
    %1877 = vmatpush1.msra.mxu0 0.0
    %1878 = vmatprep.subr.mxu0 0.0
    %1879 = vmatpush1.msra.mxu0 0.0
    %1880 = vmatprep.subr.mxu0 0.0
    %1881 = vmatpush1.msra.mxu0 0.0
    %1882 = vmatprep.subr.mxu0 0.0
    %1883 = vmatpush1.msra.mxu0 0.0
    %1884 = vmatprep.subr.mxu0 0.0
    %1885 = vmatpush1.msra.mxu0 0.0
    %1886 = vmatprep.subr.mxu0 0.0
    %1887 = vmatpush1.msra.mxu0 0.0
    %1888 = vmatprep.mubr.f32.mxu0 0.0
    %1889 = vmatmul.mubr.f32.gmra.mrb[0].mxu0 %v1819
    %v1890 = vpop.f32.mrb[0].mxu0
    %v1891 = vadd.f32 0.0, %v1890
    %v1892 = vpop.f32.mrb[0].mxu0
    %1893 = vmatprep.mubr.f32.mxu0 0.0
    %1894 = vmatmul.mubr.f32.gmra.mrb[0].mxu0 %v1822
    %v1895 = vpop.f32.mrb[0].mxu0
    %v1896 = vadd.f32 0.0, %v1895
    %v1897 = vpop.f32.mrb[0].mxu0
    %1898 = vdwg.mxu0
    %1903 = vrot.lane.b32.xlu0 %v1707, 96
    %v1904 = vpop.permute.xlu0 %1903
    %1905 = vrot.lane.b32.xlu0 %v1712, 96
    %v1906 = vpop.permute.xlu0 %1905
    %1907 = vrot.lane.b32.xlu0 %v1717, 96
    %v1908 = vpop.permute.xlu0 %1907
    %1909 = vrot.lane.b32.xlu0 %v1722, 96
    %v1910 = vpop.permute.xlu0 %1909
    %v1916 = vsel %vm74, %v1814, 0
    %v1919 = vsel %vm74, %v1815, 0
    %1921 = vmatprep.subr.mxu0 0.0
    %1922 = vmatpush1.msra.mxu0 %v1904
    %1923 = vmatprep.subr.mxu0 0.0
    %1924 = vmatpush1.msra.mxu0 %v1906
    %1925 = vmatprep.subr.mxu0 0.0
    %1926 = vmatpush1.msra.mxu0 %v1908
    %1927 = vmatprep.subr.mxu0 0.0
    %1928 = vmatpush1.msra.mxu0 %v1910
    %1929 = vmatprep.subr.mxu0 0.0
    %1930 = vmatpush1.msra.mxu0 0.0
    %1931 = vmatprep.subr.mxu0 0.0
    %1932 = vmatpush1.msra.mxu0 0.0
    %1933 = vmatprep.subr.mxu0 0.0
    %1934 = vmatpush1.msra.mxu0 0.0
    %1935 = vmatprep.subr.mxu0 0.0
    %1936 = vmatpush1.msra.mxu0 0.0
    %1937 = vmatprep.subr.mxu0 0.0
    %1938 = vmatpush1.msra.mxu0 0.0
    %1939 = vmatprep.subr.mxu0 0.0
    %1940 = vmatpush1.msra.mxu0 0.0
    %1941 = vmatprep.subr.mxu0 0.0
    %1942 = vmatpush1.msra.mxu0 0.0
    %1943 = vmatprep.subr.mxu0 0.0
    %1944 = vmatpush1.msra.mxu0 0.0
    %1945 = vmatprep.subr.mxu0 0.0
    %1946 = vmatpush1.msra.mxu0 0.0
    %1947 = vmatprep.subr.mxu0 0.0
    %1948 = vmatpush1.msra.mxu0 0.0
    %1949 = vmatprep.subr.mxu0 0.0
    %1950 = vmatpush1.msra.mxu0 0.0
    %1951 = vmatprep.subr.mxu0 0.0
    %1952 = vmatpush1.msra.mxu0 0.0
    %1953 = vmatprep.subr.mxu0 0.0
    %1954 = vmatpush1.msra.mxu0 0.0
    %1955 = vmatprep.subr.mxu0 0.0
    %1956 = vmatpush1.msra.mxu0 0.0
    %1957 = vmatprep.subr.mxu0 0.0
    %1958 = vmatpush1.msra.mxu0 0.0
    %1959 = vmatprep.subr.mxu0 0.0
    %1960 = vmatpush1.msra.mxu0 0.0
    %1961 = vmatprep.subr.mxu0 0.0
    %1962 = vmatpush1.msra.mxu0 0.0
    %1963 = vmatprep.subr.mxu0 0.0
    %1964 = vmatpush1.msra.mxu0 0.0
    %1965 = vmatprep.subr.mxu0 0.0
    %1966 = vmatpush1.msra.mxu0 0.0
    %1967 = vmatprep.subr.mxu0 0.0
    %1968 = vmatpush1.msra.mxu0 0.0
    %1969 = vmatprep.subr.mxu0 0.0
    %1970 = vmatpush1.msra.mxu0 0.0
    %1971 = vmatprep.subr.mxu0 0.0
    %1972 = vmatpush1.msra.mxu0 0.0
    %1973 = vmatprep.subr.mxu0 0.0
    %1974 = vmatpush1.msra.mxu0 0.0
    %1975 = vmatprep.subr.mxu0 0.0
    %1976 = vmatpush1.msra.mxu0 0.0
    %1977 = vmatprep.subr.mxu0 0.0
    %1978 = vmatpush1.msra.mxu0 0.0
    %1979 = vmatprep.subr.mxu0 0.0
    %1980 = vmatpush1.msra.mxu0 0.0
    %1981 = vmatprep.subr.mxu0 0.0
    %1982 = vmatpush1.msra.mxu0 0.0
    %1983 = vmatprep.subr.mxu0 0.0
    %1984 = vmatpush1.msra.mxu0 0.0
    %1985 = vmatprep.mubr.f32.mxu0 0.0
    %1986 = vmatmul.mubr.f32.gmra.mrb[0].mxu0 %v1916
    %v1987 = vpop.f32.mrb[0].mxu0
    %v1988 = vadd.f32 %v1891, %v1987
    %v1989 = vpop.f32.mrb[0].mxu0
    %1990 = vmatprep.mubr.f32.mxu0 0.0
    %1991 = vmatmul.mubr.f32.gmra.mrb[0].mxu0 %v1919
    %v1992 = vpop.f32.mrb[0].mxu0
    %v1993 = vadd.f32 %v1896, %v1992
    %v1994 = vpop.f32.mrb[0].mxu0
    %1995 = vdwg.mxu0
    %v1996 = vld [vmem:[#allocation5 + $0x160] sm:$0xff]
    %v1997 = vld [vmem:[#allocation5 + $0x168] sm:$0xff]
    %v1998 = vld [vmem:[#allocation5 + $0x170] sm:$0xff]
    %v1999 = vld [vmem:[#allocation5 + $0x178] sm:$0xff]
    %v2000 = vld [vmem:[#allocation5 + $0x309] sm:$0x1]
    %2001 = vmatprep.subr.mxu0 0.0
    %2002 = vmatpush1.msra.mxu0 %v1988
    %2003 = vmatprep.subr.mxu0 0.0
    %2004 = vmatpush1.msra.mxu0 %v1993
    %2005 = vmatprep.subr.mxu0 0.0
    %2006 = vmatpush1.msra.mxu0 0.0
    %2007 = vmatprep.subr.mxu0 0.0
    %2008 = vmatpush1.msra.mxu0 0.0
    %2009 = vmatprep.subr.mxu0 0.0
    %2010 = vmatpush1.msra.mxu0 0.0
    %2011 = vmatprep.subr.mxu0 0.0
    %2012 = vmatpush1.msra.mxu0 0.0
    %2013 = vmatprep.subr.mxu0 0.0
    %2014 = vmatpush1.msra.mxu0 0.0
    %2015 = vmatprep.subr.mxu0 0.0
    %2016 = vmatpush1.msra.mxu0 0.0
    %2017 = vmatprep.subr.mxu0 0.0
    %2018 = vmatpush1.msra.mxu0 0.0
    %2019 = vmatprep.subr.mxu0 0.0
    %2020 = vmatpush1.msra.mxu0 0.0
    %2021 = vmatprep.subr.mxu0 0.0
    %2022 = vmatpush1.msra.mxu0 0.0
    %2023 = vmatprep.subr.mxu0 0.0
    %2024 = vmatpush1.msra.mxu0 0.0
    %2025 = vmatprep.subr.mxu0 0.0
    %2026 = vmatpush1.msra.mxu0 0.0
    %2027 = vmatprep.subr.mxu0 0.0
    %2028 = vmatpush1.msra.mxu0 0.0
    %2029 = vmatprep.subr.mxu0 0.0
    %2030 = vmatpush1.msra.mxu0 0.0
    %2031 = vmatprep.subr.mxu0 0.0
    %2032 = vmatpush1.msra.mxu0 0.0
    %2033 = vmatprep.subr.mxu0 0.0
    %2034 = vmatpush1.msra.mxu0 0.0
    %2035 = vmatprep.subr.mxu0 0.0
    %2036 = vmatpush1.msra.mxu0 0.0
    %2037 = vmatprep.subr.mxu0 0.0
    %2038 = vmatpush1.msra.mxu0 0.0
    %2039 = vmatprep.subr.mxu0 0.0
    %2040 = vmatpush1.msra.mxu0 0.0
    %2041 = vmatprep.subr.mxu0 0.0
    %2042 = vmatpush1.msra.mxu0 0.0
    %2043 = vmatprep.subr.mxu0 0.0
    %2044 = vmatpush1.msra.mxu0 0.0
    %2045 = vmatprep.subr.mxu0 0.0
    %2046 = vmatpush1.msra.mxu0 0.0
    %2047 = vmatprep.subr.mxu0 0.0
    %2048 = vmatpush1.msra.mxu0 0.0
    %2049 = vmatprep.subr.mxu0 0.0
    %2050 = vmatpush1.msra.mxu0 0.0
    %2051 = vmatprep.subr.mxu0 0.0
    %2052 = vmatpush1.msra.mxu0 0.0
    %2053 = vmatprep.subr.mxu0 0.0
    %2054 = vmatpush1.msra.mxu0 0.0
    %2055 = vmatprep.subr.mxu0 0.0
    %2056 = vmatpush1.msra.mxu0 0.0
    %2057 = vmatprep.subr.mxu0 0.0
    %2058 = vmatpush1.msra.mxu0 0.0
    %2059 = vmatprep.subr.mxu0 0.0
    %2060 = vmatpush1.msra.mxu0 0.0
    %2061 = vmatprep.subr.mxu0 0.0
    %2062 = vmatpush1.msra.mxu0 0.0
    %2063 = vmatprep.subr.mxu0 0.0
    %2064 = vmatpush1.msra.mxu0 0.0
    %2065 = vmatprep.mubr.f32.mxu0 0.0
    %2066 = vmatmul.mubr.f32.gmra.mrb[0].mxu0 %v446
    %v2067 = vpop.f32.mrb[0].mxu0
    %v2068 = vadd.f32 0.0, %v2067
    %v2069 = vpop.f32.mrb[0].mxu0
    %2070 = vmatprep.mubr.f32.mxu0 0.0
    %2071 = vmatmul.mubr.f32.gmra.mrb[0].mxu0 %v449
    %v2072 = vpop.f32.mrb[0].mxu0
    %v2073 = vadd.f32 0.0, %v2072
    %v2074 = vpop.f32.mrb[0].mxu0
    %2075 = vmatprep.mubr.f32.mxu0 0.0
    %2076 = vmatmul.mubr.f32.gmra.mrb[0].mxu0 %v452
    %v2077 = vpop.f32.mrb[0].mxu0
    %v2078 = vadd.f32 0.0, %v2077
    %v2079 = vpop.f32.mrb[0].mxu0
    %2080 = vmatprep.mubr.f32.mxu0 0.0
    %2081 = vmatmul.mubr.f32.gmra.mrb[0].mxu0 %v455
    %v2082 = vpop.f32.mrb[0].mxu0
    %v2083 = vadd.f32 0.0, %v2082
    %v2084 = vpop.f32.mrb[0].mxu0
    %2085 = vmatprep.mubr.f32.mxu0 0.0
    %2086 = vmatmul.mubr.f32.gmra.mrb[0].mxu0 %v458
    %v2087 = vpop.f32.mrb[0].mxu0
    %v2088 = vadd.f32 0.0, %v2087
    %v2089 = vpop.f32.mrb[0].mxu0
    %2090 = vmatprep.mubr.f32.mxu0 0.0
    %2091 = vmatmul.mubr.f32.gmra.mrb[0].mxu0 %v461
    %v2092 = vpop.f32.mrb[0].mxu0
    %v2093 = vadd.f32 0.0, %v2092
    %v2094 = vpop.f32.mrb[0].mxu0
    %2095 = vmatprep.mubr.f32.mxu0 0.0
    %2096 = vmatmul.mubr.f32.gmra.mrb[0].mxu0 %v464
    %v2097 = vpop.f32.mrb[0].mxu0
    %v2098 = vadd.f32 0.0, %v2097
    %v2099 = vpop.f32.mrb[0].mxu0
    %2100 = vmatprep.mubr.f32.mxu0 0.0
    %2101 = vmatmul.mubr.f32.gmra.mrb[0].mxu0 %v467
    %v2102 = vpop.f32.mrb[0].mxu0
    %v2103 = vadd.f32 0.0, %v2102
    %v2104 = vpop.f32.mrb[0].mxu0
    %2105 = vdwg.mxu0
    %v2106 = vmul.f32 %v2068, %v52
    %v2107 = vmul.f32 %v2073, %v53
    %v2108 = vmul.f32 %v2078, %v54
    %v2109 = vmul.f32 %v2083, %v55
    %v2110 = vmul.f32 %v2088, %v56
    %v2111 = vmul.f32 %v2093, %v57
    %v2112 = vmul.f32 %v2098, %v58
    %v2113 = vmul.f32 %v2103, %v59
    %2116 = vrot.lane.b32.xlu0 %v1988, 96
    %v2117 = vpop.permute.xlu0 %2116
    %2118 = vrot.lane.b32.xlu0 %v1993, 96
    %v2119 = vpop.permute.xlu0 %2118
    %2122 = vmatprep.subr.mxu0 0.0
    %2123 = vmatpush1.msra.mxu0 %v2117
    %2124 = vmatprep.subr.mxu0 0.0
    %2125 = vmatpush1.msra.mxu0 %v2119
    %2126 = vmatprep.subr.mxu0 0.0
    %2127 = vmatpush1.msra.mxu0 0.0
    %2128 = vmatprep.subr.mxu0 0.0
    %2129 = vmatpush1.msra.mxu0 0.0
    %2130 = vmatprep.subr.mxu0 0.0
    %2131 = vmatpush1.msra.mxu0 0.0
    %2132 = vmatprep.subr.mxu0 0.0
    %2133 = vmatpush1.msra.mxu0 0.0
    %2134 = vmatprep.subr.mxu0 0.0
    %2135 = vmatpush1.msra.mxu0 0.0
    %2136 = vmatprep.subr.mxu0 0.0
    %2137 = vmatpush1.msra.mxu0 0.0
    %2138 = vmatprep.subr.mxu0 0.0
    %2139 = vmatpush1.msra.mxu0 0.0
    %2140 = vmatprep.subr.mxu0 0.0
    %2141 = vmatpush1.msra.mxu0 0.0
    %2142 = vmatprep.subr.mxu0 0.0
    %2143 = vmatpush1.msra.mxu0 0.0
    %2144 = vmatprep.subr.mxu0 0.0
    %2145 = vmatpush1.msra.mxu0 0.0
    %2146 = vmatprep.subr.mxu0 0.0
    %2147 = vmatpush1.msra.mxu0 0.0
    %2148 = vmatprep.subr.mxu0 0.0
    %2149 = vmatpush1.msra.mxu0 0.0
    %2150 = vmatprep.subr.mxu0 0.0
    %2151 = vmatpush1.msra.mxu0 0.0
    %2152 = vmatprep.subr.mxu0 0.0
    %2153 = vmatpush1.msra.mxu0 0.0
    %2154 = vmatprep.subr.mxu0 0.0
    %2155 = vmatpush1.msra.mxu0 0.0
    %2156 = vmatprep.subr.mxu0 0.0
    %2157 = vmatpush1.msra.mxu0 0.0
    %2158 = vmatprep.subr.mxu0 0.0
    %2159 = vmatpush1.msra.mxu0 0.0
    %2160 = vmatprep.subr.mxu0 0.0
    %2161 = vmatpush1.msra.mxu0 0.0
    %2162 = vmatprep.subr.mxu0 0.0
    %2163 = vmatpush1.msra.mxu0 0.0
    %2164 = vmatprep.subr.mxu0 0.0
    %2165 = vmatpush1.msra.mxu0 0.0
    %2166 = vmatprep.subr.mxu0 0.0
    %2167 = vmatpush1.msra.mxu0 0.0
    %2168 = vmatprep.subr.mxu0 0.0
    %2169 = vmatpush1.msra.mxu0 0.0
    %2170 = vmatprep.subr.mxu0 0.0
    %2171 = vmatpush1.msra.mxu0 0.0
    %2172 = vmatprep.subr.mxu0 0.0
    %2173 = vmatpush1.msra.mxu0 0.0
    %2174 = vmatprep.subr.mxu0 0.0
    %2175 = vmatpush1.msra.mxu0 0.0
    %2176 = vmatprep.subr.mxu0 0.0
    %2177 = vmatpush1.msra.mxu0 0.0
    %2178 = vmatprep.subr.mxu0 0.0
    %2179 = vmatpush1.msra.mxu0 0.0
    %2180 = vmatprep.subr.mxu0 0.0
    %2181 = vmatpush1.msra.mxu0 0.0
    %2182 = vmatprep.subr.mxu0 0.0
    %2183 = vmatpush1.msra.mxu0 0.0
    %2184 = vmatprep.subr.mxu0 0.0
    %2185 = vmatpush1.msra.mxu0 0.0
    %2186 = vmatprep.mubr.f32.mxu0 0.0
    %2187 = vmatmul.mubr.f32.gmra.mrb[0].mxu0 %v446
    %v2188 = vpop.f32.mrb[0].mxu0
    %v2189 = vadd.f32 0.0, %v2188
    %v2190 = vpop.f32.mrb[0].mxu0
    %2191 = vmatprep.mubr.f32.mxu0 0.0
    %2192 = vmatmul.mubr.f32.gmra.mrb[0].mxu0 %v449
    %v2193 = vpop.f32.mrb[0].mxu0
    %v2194 = vadd.f32 0.0, %v2193
    %v2195 = vpop.f32.mrb[0].mxu0
    %2196 = vmatprep.mubr.f32.mxu0 0.0
    %2197 = vmatmul.mubr.f32.gmra.mrb[0].mxu0 %v452
    %v2198 = vpop.f32.mrb[0].mxu0
    %v2199 = vadd.f32 0.0, %v2198
    %v2200 = vpop.f32.mrb[0].mxu0
    %2201 = vmatprep.mubr.f32.mxu0 0.0
    %2202 = vmatmul.mubr.f32.gmra.mrb[0].mxu0 %v455
    %v2203 = vpop.f32.mrb[0].mxu0
    %v2204 = vadd.f32 0.0, %v2203
    %v2205 = vpop.f32.mrb[0].mxu0
    %2206 = vmatprep.mubr.f32.mxu0 0.0
    %2207 = vmatmul.mubr.f32.gmra.mrb[0].mxu0 %v458
    %v2208 = vpop.f32.mrb[0].mxu0
    %v2209 = vadd.f32 0.0, %v2208
    %v2210 = vpop.f32.mrb[0].mxu0
    %2211 = vmatprep.mubr.f32.mxu0 0.0
    %2212 = vmatmul.mubr.f32.gmra.mrb[0].mxu0 %v461
    %v2213 = vpop.f32.mrb[0].mxu0
    %v2214 = vadd.f32 0.0, %v2213
    %v2215 = vpop.f32.mrb[0].mxu0
    %2216 = vmatprep.mubr.f32.mxu0 0.0
    %2217 = vmatmul.mubr.f32.gmra.mrb[0].mxu0 %v464
    %v2218 = vpop.f32.mrb[0].mxu0
    %v2219 = vadd.f32 0.0, %v2218
    %v2220 = vpop.f32.mrb[0].mxu0
    %2221 = vmatprep.mubr.f32.mxu0 0.0
    %2222 = vmatmul.mubr.f32.gmra.mrb[0].mxu0 %v467
    %v2223 = vpop.f32.mrb[0].mxu0
    %v2224 = vadd.f32 0.0, %v2223
    %v2225 = vpop.f32.mrb[0].mxu0
    %2226 = vdwg.mxu0
    %v2227 = vmul.f32 %v2189, %v52
    %v2228 = vmul.f32 %v2194, %v53
    %v2229 = vmul.f32 %v2199, %v54
    %v2230 = vmul.f32 %v2204, %v55
    %v2231 = vmul.f32 %v2209, %v56
    %v2232 = vmul.f32 %v2214, %v57
    %v2233 = vmul.f32 %v2219, %v58
    %v2234 = vmul.f32 %v2224, %v59
    %v2235 = vsel %vm74, %v1707, 0
    %v2237 = vsel %vm74, %v1712, 0
    %v2239 = vsel %vm74, %v1717, 0
    %v2241 = vsel %vm74, %v1722, 0
    %v2244 = vsel %vm74, %v2106, 0
    %v2247 = vsel %vm74, %v2107, 0
    %v2250 = vsel %vm74, %v2108, 0
    %v2253 = vsel %vm74, %v2109, 0
    %v2256 = vsel %vm74, %v2110, 0
    %v2259 = vsel %vm74, %v2111, 0
    %v2262 = vsel %vm74, %v2112, 0
    %v2265 = vsel %vm74, %v2113, 0
    %2267 = vmatprep.subr.mxu0 0.0
    %2268 = vmatpush1.xpose.msra.mxu0 %v2244
    %2269 = vmatprep.subr.mxu0 0.0
    %2270 = vmatpush1.xpose.msra.mxu0 %v2247
    %2271 = vmatprep.subr.mxu0 0.0
    %2272 = vmatpush1.xpose.msra.mxu0 %v2250
    %2273 = vmatprep.subr.mxu0 0.0
    %2274 = vmatpush1.xpose.msra.mxu0 %v2253
    %2275 = vmatprep.subr.mxu0 0.0
    %2276 = vmatpush1.xpose.msra.mxu0 %v2256
    %2277 = vmatprep.subr.mxu0 0.0
    %2278 = vmatpush1.xpose.msra.mxu0 %v2259
    %2279 = vmatprep.subr.mxu0 0.0
    %2280 = vmatpush1.xpose.msra.mxu0 %v2262
    %2281 = vmatprep.subr.mxu0 0.0
    %2282 = vmatpush1.xpose.msra.mxu0 %v2265
    %2283 = vmatprep.subr.mxu0 0.0
    %2284 = vmatpush1.xpose.msra.mxu0 0.0
    %2285 = vmatprep.subr.mxu0 0.0
    %2286 = vmatpush1.xpose.msra.mxu0 0.0
    %2287 = vmatprep.subr.mxu0 0.0
    %2288 = vmatpush1.xpose.msra.mxu0 0.0
    %2289 = vmatprep.subr.mxu0 0.0
    %2290 = vmatpush1.xpose.msra.mxu0 0.0
    %2291 = vmatprep.subr.mxu0 0.0
    %2292 = vmatpush1.xpose.msra.mxu0 0.0
    %2293 = vmatprep.subr.mxu0 0.0
    %2294 = vmatpush1.xpose.msra.mxu0 0.0
    %2295 = vmatprep.subr.mxu0 0.0
    %2296 = vmatpush1.xpose.msra.mxu0 0.0
    %2297 = vmatprep.subr.mxu0 0.0
    %2298 = vmatpush1.xpose.msra.mxu0 0.0
    %2299 = vmatprep.subr.mxu0 0.0
    %2300 = vmatpush1.xpose.msra.mxu0 0.0
    %2301 = vmatprep.subr.mxu0 0.0
    %2302 = vmatpush1.xpose.msra.mxu0 0.0
    %2303 = vmatprep.subr.mxu0 0.0
    %2304 = vmatpush1.xpose.msra.mxu0 0.0
    %2305 = vmatprep.subr.mxu0 0.0
    %2306 = vmatpush1.xpose.msra.mxu0 0.0
    %2307 = vmatprep.subr.mxu0 0.0
    %2308 = vmatpush1.xpose.msra.mxu0 0.0
    %2309 = vmatprep.subr.mxu0 0.0
    %2310 = vmatpush1.xpose.msra.mxu0 0.0
    %2311 = vmatprep.subr.mxu0 0.0
    %2312 = vmatpush1.xpose.msra.mxu0 0.0
    %2313 = vmatprep.subr.mxu0 0.0
    %2314 = vmatpush1.xpose.msra.mxu0 0.0
    %2315 = vmatprep.subr.mxu0 0.0
    %2316 = vmatpush1.xpose.msra.mxu0 0.0
    %2317 = vmatprep.subr.mxu0 0.0
    %2318 = vmatpush1.xpose.msra.mxu0 0.0
    %2319 = vmatprep.subr.mxu0 0.0
    %2320 = vmatpush1.xpose.msra.mxu0 0.0
    %2321 = vmatprep.subr.mxu0 0.0
    %2322 = vmatpush1.xpose.msra.mxu0 0.0
    %2323 = vmatprep.subr.mxu0 0.0
    %2324 = vmatpush1.xpose.msra.mxu0 0.0
    %2325 = vmatprep.subr.mxu0 0.0
    %2326 = vmatpush1.xpose.msra.mxu0 0.0
    %2327 = vmatprep.subr.mxu0 0.0
    %2328 = vmatpush1.xpose.msra.mxu0 0.0
    %2329 = vmatprep.subr.mxu0 0.0
    %2330 = vmatpush1.xpose.msra.mxu0 0.0
    %2331 = vmatprep.mubr.f32.mxu0 0.0
    %2332 = vmatmul.mubr.f32.gmra.mrb[0].mxu0 %v2235
    %v2333 = vpop.f32.mrb[0].mxu0
    %v2334 = vadd.f32 0.0, %v2333
    %v2335 = vpop.f32.mrb[0].mxu0
    %2336 = vmatprep.mubr.f32.mxu0 0.0
    %2337 = vmatmul.mubr.f32.gmra.mrb[0].mxu0 %v2237
    %v2338 = vpop.f32.mrb[0].mxu0
    %v2339 = vadd.f32 0.0, %v2338
    %v2340 = vpop.f32.mrb[0].mxu0
    %2341 = vmatprep.mubr.f32.mxu0 0.0
    %2342 = vmatmul.mubr.f32.gmra.mrb[0].mxu0 %v2239
    %v2343 = vpop.f32.mrb[0].mxu0
    %v2344 = vadd.f32 0.0, %v2343
    %v2345 = vpop.f32.mrb[0].mxu0
    %2346 = vmatprep.mubr.f32.mxu0 0.0
    %2347 = vmatmul.mubr.f32.gmra.mrb[0].mxu0 %v2241
    %v2348 = vpop.f32.mrb[0].mxu0
    %v2349 = vadd.f32 0.0, %v2348
    %v2350 = vpop.f32.mrb[0].mxu0
    %2351 = vdwg.mxu0
    %v2352 = vsel %vm812, %v2334, -1e+30
    %v2353 = vsel %vm813, %v2339, -1e+30
    %v2354 = vsel %vm814, %v2344, -1e+30
    %v2355 = vsel %vm815, %v2349, -1e+30
    %v2356 = vsel %vm820, %v2352, -inf
    %2357 = vmax.xlane.f32.xlu0 %v2356
    %v2358 = vpop.xlane.xlu0 %2357
    %v2359 = vsel %vm820, %v2353, -inf
    %2360 = vmax.xlane.f32.xlu0 %v2359
    %v2361 = vpop.xlane.xlu0 %2360
    %v2362 = vsel %vm820, %v2354, -inf
    %2363 = vmax.xlane.f32.xlu0 %v2362
    %v2364 = vpop.xlane.xlu0 %2363
    %v2365 = vsel %vm820, %v2355, -inf
    %2366 = vmax.xlane.f32.xlu0 %v2365
    %v2367 = vpop.xlane.xlu0 %2366
    %v2368 = vsub.f32 %v2352, %v2358
    %v2369 = vsub.f32 %v2353, %v2361
    %v2370 = vsub.f32 %v2354, %v2364
    %v2371 = vsub.f32 %v2355, %v2367
    %v2372 = vmul.f32 %v2368, 1.442695
    %v2373 = vpow.pop %v2372
    %v2374 = vmul.f32 %v2369, 1.442695
    %v2375 = vpow.pop %v2374
    %v2376 = vmul.f32 %v2370, 1.442695
    %v2377 = vpow.pop %v2376
    %v2378 = vmul.f32 %v2371, 1.442695
    %v2379 = vpow.pop %v2378
    %v2381 = vsel %vm820, %v2373, 0
    %v2384 = vsel %vm820, %v2375, 0
    %v2387 = vsel %vm820, %v2377, 0
    %v2390 = vsel %vm820, %v2379, 0
    %2392 = vmatprep.subr.mxu0 0.0
    %2393 = vmatpush1.msra.mxu0 %v60
    %2394 = vmatprep.subr.mxu0 0.0
    %2395 = vmatpush1.msra.mxu0 %v61
    %2396 = vmatprep.subr.mxu0 0.0
    %2397 = vmatpush1.msra.mxu0 %v62
    %2398 = vmatprep.subr.mxu0 0.0
    %2399 = vmatpush1.msra.mxu0 %v63
    %2400 = vmatprep.subr.mxu0 0.0
    %2401 = vmatpush1.msra.mxu0 %v64
    %2402 = vmatprep.subr.mxu0 0.0
    %2403 = vmatpush1.msra.mxu0 %v65
    %2404 = vmatprep.subr.mxu0 0.0
    %2405 = vmatpush1.msra.mxu0 %v66
    %2406 = vmatprep.subr.mxu0 0.0
    %2407 = vmatpush1.msra.mxu0 %v67
    %2408 = vmatprep.subr.mxu0 0.0
    %2409 = vmatpush1.msra.mxu0 0.0
    %2410 = vmatprep.subr.mxu0 0.0
    %2411 = vmatpush1.msra.mxu0 0.0
    %2412 = vmatprep.subr.mxu0 0.0
    %2413 = vmatpush1.msra.mxu0 0.0
    %2414 = vmatprep.subr.mxu0 0.0
    %2415 = vmatpush1.msra.mxu0 0.0
    %2416 = vmatprep.subr.mxu0 0.0
    %2417 = vmatpush1.msra.mxu0 0.0
    %2418 = vmatprep.subr.mxu0 0.0
    %2419 = vmatpush1.msra.mxu0 0.0
    %2420 = vmatprep.subr.mxu0 0.0
    %2421 = vmatpush1.msra.mxu0 0.0
    %2422 = vmatprep.subr.mxu0 0.0
    %2423 = vmatpush1.msra.mxu0 0.0
    %2424 = vmatprep.subr.mxu0 0.0
    %2425 = vmatpush1.msra.mxu0 0.0
    %2426 = vmatprep.subr.mxu0 0.0
    %2427 = vmatpush1.msra.mxu0 0.0
    %2428 = vmatprep.subr.mxu0 0.0
    %2429 = vmatpush1.msra.mxu0 0.0
    %2430 = vmatprep.subr.mxu0 0.0
    %2431 = vmatpush1.msra.mxu0 0.0
    %2432 = vmatprep.subr.mxu0 0.0
    %2433 = vmatpush1.msra.mxu0 0.0
    %2434 = vmatprep.subr.mxu0 0.0
    %2435 = vmatpush1.msra.mxu0 0.0
    %2436 = vmatprep.subr.mxu0 0.0
    %2437 = vmatpush1.msra.mxu0 0.0
    %2438 = vmatprep.subr.mxu0 0.0
    %2439 = vmatpush1.msra.mxu0 0.0
    %2440 = vmatprep.subr.mxu0 0.0
    %2441 = vmatpush1.msra.mxu0 0.0
    %2442 = vmatprep.subr.mxu0 0.0
    %2443 = vmatpush1.msra.mxu0 0.0
    %2444 = vmatprep.subr.mxu0 0.0
    %2445 = vmatpush1.msra.mxu0 0.0
    %2446 = vmatprep.subr.mxu0 0.0
    %2447 = vmatpush1.msra.mxu0 0.0
    %2448 = vmatprep.subr.mxu0 0.0
    %2449 = vmatpush1.msra.mxu0 0.0
    %2450 = vmatprep.subr.mxu0 0.0
    %2451 = vmatpush1.msra.mxu0 0.0
    %2452 = vmatprep.subr.mxu0 0.0
    %2453 = vmatpush1.msra.mxu0 0.0
    %2454 = vmatprep.subr.mxu0 0.0
    %2455 = vmatpush1.msra.mxu0 0.0
    %2456 = vmatprep.mubr.f32.mxu0 0.0
    %2457 = vmatmul.mubr.f32.gmra.mrb[0].mxu0 %v2381
    %v2458 = vpop.f32.mrb[0].mxu0
    %v2459 = vadd.f32 %v845, %v2458
    %v2460 = vpop.f32.mrb[0].mxu0
    %2461 = vmatprep.mubr.f32.mxu0 0.0
    %2462 = vmatmul.mubr.f32.gmra.mrb[0].mxu0 %v2384
    %v2463 = vpop.f32.mrb[0].mxu0
    %v2464 = vadd.f32 %v846, %v2463
    %v2465 = vpop.f32.mrb[0].mxu0
    %2466 = vmatprep.mubr.f32.mxu0 0.0
    %2467 = vmatmul.mubr.f32.gmra.mrb[0].mxu0 %v2387
    %v2468 = vpop.f32.mrb[0].mxu0
    %v2469 = vadd.f32 %v847, %v2468
    %v2470 = vpop.f32.mrb[0].mxu0
    %2471 = vmatprep.mubr.f32.mxu0 0.0
    %2472 = vmatmul.mubr.f32.gmra.mrb[0].mxu0 %v2390
    %v2473 = vpop.f32.mrb[0].mxu0
    %v2474 = vadd.f32 %v848, %v2473
    %v2475 = vpop.f32.mrb[0].mxu0
    %2476 = vdwg.mxu0
    %v2477 = vrcp.pop %v2459
    %v2478 = vmul.f32 %v2373, %v2477
    %v2479 = vrcp.pop %v2464
    %v2480 = vmul.f32 %v2375, %v2479
    %v2481 = vrcp.pop %v2469
    %v2482 = vmul.f32 %v2377, %v2481
    %v2483 = vrcp.pop %v2474
    %v2484 = vmul.f32 %v2379, %v2483
    %v2486 = vsel %vm820, %v2478, 0
    %v2489 = vsel %vm820, %v2480, 0
    %v2492 = vsel %vm820, %v2482, 0
    %v2495 = vsel %vm820, %v2484, 0
    %2497 = vmatprep.subr.mxu0 0.0
    %2498 = vmatpush1.msra.mxu0 %v2227
    %2499 = vmatprep.subr.mxu0 0.0
    %2500 = vmatpush1.msra.mxu0 %v2228
    %2501 = vmatprep.subr.mxu0 0.0
    %2502 = vmatpush1.msra.mxu0 %v2229
    %2503 = vmatprep.subr.mxu0 0.0
    %2504 = vmatpush1.msra.mxu0 %v2230
    %2505 = vmatprep.subr.mxu0 0.0
    %2506 = vmatpush1.msra.mxu0 %v2231
    %2507 = vmatprep.subr.mxu0 0.0
    %2508 = vmatpush1.msra.mxu0 %v2232
    %2509 = vmatprep.subr.mxu0 0.0
    %2510 = vmatpush1.msra.mxu0 %v2233
    %2511 = vmatprep.subr.mxu0 0.0
    %2512 = vmatpush1.msra.mxu0 %v2234
    %2513 = vmatprep.subr.mxu0 0.0
    %2514 = vmatpush1.msra.mxu0 0.0
    %2515 = vmatprep.subr.mxu0 0.0
    %2516 = vmatpush1.msra.mxu0 0.0
    %2517 = vmatprep.subr.mxu0 0.0
    %2518 = vmatpush1.msra.mxu0 0.0
    %2519 = vmatprep.subr.mxu0 0.0
    %2520 = vmatpush1.msra.mxu0 0.0
    %2521 = vmatprep.subr.mxu0 0.0
    %2522 = vmatpush1.msra.mxu0 0.0
    %2523 = vmatprep.subr.mxu0 0.0
    %2524 = vmatpush1.msra.mxu0 0.0
    %2525 = vmatprep.subr.mxu0 0.0
    %2526 = vmatpush1.msra.mxu0 0.0
    %2527 = vmatprep.subr.mxu0 0.0
    %2528 = vmatpush1.msra.mxu0 0.0
    %2529 = vmatprep.subr.mxu0 0.0
    %2530 = vmatpush1.msra.mxu0 0.0
    %2531 = vmatprep.subr.mxu0 0.0
    %2532 = vmatpush1.msra.mxu0 0.0
    %2533 = vmatprep.subr.mxu0 0.0
    %2534 = vmatpush1.msra.mxu0 0.0
    %2535 = vmatprep.subr.mxu0 0.0
    %2536 = vmatpush1.msra.mxu0 0.0
    %2537 = vmatprep.subr.mxu0 0.0
    %2538 = vmatpush1.msra.mxu0 0.0
    %2539 = vmatprep.subr.mxu0 0.0
    %2540 = vmatpush1.msra.mxu0 0.0
    %2541 = vmatprep.subr.mxu0 0.0
    %2542 = vmatpush1.msra.mxu0 0.0
    %2543 = vmatprep.subr.mxu0 0.0
    %2544 = vmatpush1.msra.mxu0 0.0
    %2545 = vmatprep.subr.mxu0 0.0
    %2546 = vmatpush1.msra.mxu0 0.0
    %2547 = vmatprep.subr.mxu0 0.0
    %2548 = vmatpush1.msra.mxu0 0.0
    %2549 = vmatprep.subr.mxu0 0.0
    %2550 = vmatpush1.msra.mxu0 0.0
    %2551 = vmatprep.subr.mxu0 0.0
    %2552 = vmatpush1.msra.mxu0 0.0
    %2553 = vmatprep.subr.mxu0 0.0
    %2554 = vmatpush1.msra.mxu0 0.0
    %2555 = vmatprep.subr.mxu0 0.0
    %2556 = vmatpush1.msra.mxu0 0.0
    %2557 = vmatprep.subr.mxu0 0.0
    %2558 = vmatpush1.msra.mxu0 0.0
    %2559 = vmatprep.subr.mxu0 0.0
    %2560 = vmatpush1.msra.mxu0 0.0
    %2561 = vmatprep.mubr.f32.mxu0 0.0
    %2562 = vmatmul.mubr.f32.gmra.mrb[0].mxu0 %v2486
    %v2563 = vpop.f32.mrb[0].mxu0
    %v2564 = vadd.f32 0.0, %v2563
    %v2565 = vpop.f32.mrb[0].mxu0
    %2566 = vmatprep.mubr.f32.mxu0 0.0
    %2567 = vmatmul.mubr.f32.gmra.mrb[0].mxu0 %v2489
    %v2568 = vpop.f32.mrb[0].mxu0
    %v2569 = vadd.f32 0.0, %v2568
    %v2570 = vpop.f32.mrb[0].mxu0
    %2571 = vmatprep.mubr.f32.mxu0 0.0
    %2572 = vmatmul.mubr.f32.gmra.mrb[0].mxu0 %v2492
    %v2573 = vpop.f32.mrb[0].mxu0
    %v2574 = vadd.f32 0.0, %v2573
    %v2575 = vpop.f32.mrb[0].mxu0
    %2576 = vmatprep.mubr.f32.mxu0 0.0
    %2577 = vmatmul.mubr.f32.gmra.mrb[0].mxu0 %v2495
    %v2578 = vpop.f32.mrb[0].mxu0
    %v2579 = vadd.f32 0.0, %v2578
    %v2580 = vpop.f32.mrb[0].mxu0
    %2581 = vdwg.mxu0
    %v2582 = vlaneseq
    %v2583 = vshrl.u32 %v2582, 7
    %v2584 = vsub.s32 0, %v2583
    %v2585 = vrot.slane %v2000, %v2584
    %v2587 = vsel %vm74, %v2564, 0
    %v2590 = vsel %vm74, %v2569, 0
    %v2593 = vsel %vm74, %v2574, 0
    %v2596 = vsel %vm74, %v2579, 0
    %2598 = vmatprep.subr.mxu0 0.0
    %2599 = vmatpush1.msra.mxu0 %v1996
    %2600 = vmatprep.subr.mxu0 0.0
    %2601 = vmatpush1.msra.mxu0 %v1997
    %2602 = vmatprep.subr.mxu0 0.0
    %2603 = vmatpush1.msra.mxu0 %v1998
    %2604 = vmatprep.subr.mxu0 0.0
    %2605 = vmatpush1.msra.mxu0 %v1999
    %2606 = vmatprep.subr.mxu0 0.0
    %2607 = vmatpush1.msra.mxu0 0.0
    %2608 = vmatprep.subr.mxu0 0.0
    %2609 = vmatpush1.msra.mxu0 0.0
    %2610 = vmatprep.subr.mxu0 0.0
    %2611 = vmatpush1.msra.mxu0 0.0
    %2612 = vmatprep.subr.mxu0 0.0
    %2613 = vmatpush1.msra.mxu0 0.0
    %2614 = vmatprep.subr.mxu0 0.0
    %2615 = vmatpush1.msra.mxu0 0.0
    %2616 = vmatprep.subr.mxu0 0.0
    %2617 = vmatpush1.msra.mxu0 0.0
    %2618 = vmatprep.subr.mxu0 0.0
    %2619 = vmatpush1.msra.mxu0 0.0
    %2620 = vmatprep.subr.mxu0 0.0
    %2621 = vmatpush1.msra.mxu0 0.0
    %2622 = vmatprep.subr.mxu0 0.0
    %2623 = vmatpush1.msra.mxu0 0.0
    %2624 = vmatprep.subr.mxu0 0.0
    %2625 = vmatpush1.msra.mxu0 0.0
    %2626 = vmatprep.subr.mxu0 0.0
    %2627 = vmatpush1.msra.mxu0 0.0
    %2628 = vmatprep.subr.mxu0 0.0
    %2629 = vmatpush1.msra.mxu0 0.0
    %2630 = vmatprep.subr.mxu0 0.0
    %2631 = vmatpush1.msra.mxu0 0.0
    %2632 = vmatprep.subr.mxu0 0.0
    %2633 = vmatpush1.msra.mxu0 0.0
    %2634 = vmatprep.subr.mxu0 0.0
    %2635 = vmatpush1.msra.mxu0 0.0
    %2636 = vmatprep.subr.mxu0 0.0
    %2637 = vmatpush1.msra.mxu0 0.0
    %2638 = vmatprep.subr.mxu0 0.0
    %2639 = vmatpush1.msra.mxu0 0.0
    %2640 = vmatprep.subr.mxu0 0.0
    %2641 = vmatpush1.msra.mxu0 0.0
    %2642 = vmatprep.subr.mxu0 0.0
    %2643 = vmatpush1.msra.mxu0 0.0
    %2644 = vmatprep.subr.mxu0 0.0
    %2645 = vmatpush1.msra.mxu0 0.0
    %2646 = vmatprep.subr.mxu0 0.0
    %2647 = vmatpush1.msra.mxu0 0.0
    %2648 = vmatprep.subr.mxu0 0.0
    %2649 = vmatpush1.msra.mxu0 0.0
    %2650 = vmatprep.subr.mxu0 0.0
    %2651 = vmatpush1.msra.mxu0 0.0
    %2652 = vmatprep.subr.mxu0 0.0
    %2653 = vmatpush1.msra.mxu0 0.0
    %2654 = vmatprep.subr.mxu0 0.0
    %2655 = vmatpush1.msra.mxu0 0.0
    %2656 = vmatprep.subr.mxu0 0.0
    %2657 = vmatpush1.msra.mxu0 0.0
    %2658 = vmatprep.subr.mxu0 0.0
    %2659 = vmatpush1.msra.mxu0 0.0
    %2660 = vmatprep.subr.mxu0 0.0
    %2661 = vmatpush1.msra.mxu0 0.0
    %2662 = vmatprep.mubr.f32.mxu0 0.0
    %2663 = vmatmul.mubr.f32.gmra.mrb[0].mxu0 %v2587
    %v2664 = vpop.f32.mrb[0].mxu0
    %v2665 = vadd.f32 %v2585, %v2664
    %v2666 = vpop.f32.mrb[0].mxu0
    %2667 = vmatprep.mubr.f32.mxu0 0.0
    %2668 = vmatmul.mubr.f32.gmra.mrb[0].mxu0 %v2590
    %v2669 = vpop.f32.mrb[0].mxu0
    %v2670 = vadd.f32 %v2585, %v2669
    %v2671 = vpop.f32.mrb[0].mxu0
    %2672 = vmatprep.mubr.f32.mxu0 0.0
    %2673 = vmatmul.mubr.f32.gmra.mrb[0].mxu0 %v2593
    %v2674 = vpop.f32.mrb[0].mxu0
    %v2675 = vadd.f32 %v2585, %v2674
    %v2676 = vpop.f32.mrb[0].mxu0
    %2677 = vmatprep.mubr.f32.mxu0 0.0
    %2678 = vmatmul.mubr.f32.gmra.mrb[0].mxu0 %v2596
    %v2679 = vpop.f32.mrb[0].mxu0
    %v2680 = vadd.f32 %v2585, %v2679
    %v2681 = vpop.f32.mrb[0].mxu0
    %2682 = vdwg.mxu0
    %v2683 = vadd.f32 %v1550, %v2665
    %v2684 = vadd.f32 %v1551, %v2670
    %v2685 = vadd.f32 %v1552, %v2675
    %v2686 = vadd.f32 %v1553, %v2680
    %v2687 = vld [vmem:[#allocation5 + $0x30a] sm:$0x1]
    %v2688 = vld [vmem:[#allocation5 + $0x30b] sm:$0x1]
    %v2689 = vsel %vm74, %v2683, 0.0
    %2690 = vadd.xlane.f32.xlu0 %v2689
    %v2691 = vpop.xlane.xlu0 %2690
    %v2692 = vsel %vm74, %v2684, 0.0
    %2693 = vadd.xlane.f32.xlu0 %v2692
    %v2694 = vpop.xlane.xlu0 %2693
    %v2695 = vsel %vm74, %v2685, 0.0
    %2696 = vadd.xlane.f32.xlu0 %v2695
    %v2697 = vpop.xlane.xlu0 %2696
    %v2698 = vsel %vm74, %v2686, 0.0
    %2699 = vadd.xlane.f32.xlu0 %v2698
    %v2700 = vpop.xlane.xlu0 %2699
    %v2701 = vmul.f32 %v2691, %v87
    %v2702 = vmul.f32 %v2694, %v87
    %v2703 = vmul.f32 %v2697, %v87
    %v2704 = vmul.f32 %v2700, %v87
    %v2705 = vsub.f32 %v2683, %v2701
    %v2706 = vsub.f32 %v2684, %v2702
    %v2707 = vsub.f32 %v2685, %v2703
    %v2708 = vsub.f32 %v2686, %v2704
    %v2709 = vmul.f32 %v2705, %v2705
    %v2710 = vmul.f32 %v2706, %v2706
    %v2711 = vmul.f32 %v2707, %v2707
    %v2712 = vmul.f32 %v2708, %v2708
    %v2713 = vsel %vm74, %v2709, 0.0
    %2714 = vadd.xlane.f32.xlu0 %v2713
    %v2715 = vpop.xlane.xlu0 %2714
    %v2716 = vsel %vm74, %v2710, 0.0
    %2717 = vadd.xlane.f32.xlu0 %v2716
    %v2718 = vpop.xlane.xlu0 %2717
    %v2719 = vsel %vm74, %v2711, 0.0
    %2720 = vadd.xlane.f32.xlu0 %v2719
    %v2721 = vpop.xlane.xlu0 %2720
    %v2722 = vsel %vm74, %v2712, 0.0
    %2723 = vadd.xlane.f32.xlu0 %v2722
    %v2724 = vpop.xlane.xlu0 %2723
    %v2725 = vmul.f32 %v2715, %v87
    %v2726 = vmul.f32 %v2718, %v87
    %v2727 = vmul.f32 %v2721, %v87
    %v2728 = vmul.f32 %v2724, %v87
    %v2729 = vadd.f32 %v2725, 1e-05
    %v2730 = vadd.f32 %v2726, 1e-05
    %v2731 = vadd.f32 %v2727, 1e-05
    %v2732 = vadd.f32 %v2728, 1e-05
    %v2733 = vrsqrt.pop %v2729
    %v2734 = vrsqrt.pop %v2730
    %v2735 = vrsqrt.pop %v2731
    %v2736 = vrsqrt.pop %v2732
    %v2737 = vmul.f32 %v2705, %v2733
    %v2738 = vmul.f32 %v2706, %v2734
    %v2739 = vmul.f32 %v2707, %v2735
    %v2740 = vmul.f32 %v2708, %v2736
    %v2741 = vlaneseq
    %v2742 = vshrl.u32 %v2741, 7
    %v2743 = vsub.s32 0, %v2742
    %v2744 = vrot.slane %v2687, %v2743
    %v2745 = vmul.f32 %v2737, %v2744
    %v2746 = vmul.f32 %v2738, %v2744
    %v2747 = vmul.f32 %v2739, %v2744
    %v2748 = vmul.f32 %v2740, %v2744
    %v2749 = vlaneseq
    %v2750 = vshrl.u32 %v2749, 7
    %v2751 = vsub.s32 0, %v2750
    %v2752 = vrot.slane %v2688, %v2751
    %v2753 = vadd.f32 %v2745, %v2752
    %v2754 = vadd.f32 %v2746, %v2752
    %v2755 = vadd.f32 %v2747, %v2752
    %v2756 = vadd.f32 %v2748, %v2752
    %v2757 = vld [vmem:[#allocation5 + $0x180] sm:$0xff]
    %v2758 = vld [vmem:[#allocation5 + $0x188] sm:$0xff]
    %v2759 = vld [vmem:[#allocation5 + $0x190] sm:$0xff]
    %v2760 = vld [vmem:[#allocation5 + $0x198] sm:$0xff]
    %v2761 = vld [vmem:[#allocation5 + $0x30c] sm:$0x1]
    %v2762 = vlaneseq
    %v2763 = vshrl.u32 %v2762, 7
    %v2764 = vsub.s32 0, %v2763
    %v2765 = vrot.slane %v2761, %v2764
    %v2767 = vsel %vm74, %v2753, 0
    %v2770 = vsel %vm74, %v2754, 0
    %v2773 = vsel %vm74, %v2755, 0
    %v2776 = vsel %vm74, %v2756, 0
    %2778 = vmatprep.subr.mxu0 0.0
    %2779 = vmatpush1.msra.mxu0 %v2757
    %2780 = vmatprep.subr.mxu0 0.0
    %2781 = vmatpush1.msra.mxu0 %v2758
    %2782 = vmatprep.subr.mxu0 0.0
    %2783 = vmatpush1.msra.mxu0 %v2759
    %2784 = vmatprep.subr.mxu0 0.0
    %2785 = vmatpush1.msra.mxu0 %v2760
    %2786 = vmatprep.subr.mxu0 0.0
    %2787 = vmatpush1.msra.mxu0 0.0
    %2788 = vmatprep.subr.mxu0 0.0
    %2789 = vmatpush1.msra.mxu0 0.0
    %2790 = vmatprep.subr.mxu0 0.0
    %2791 = vmatpush1.msra.mxu0 0.0
    %2792 = vmatprep.subr.mxu0 0.0
    %2793 = vmatpush1.msra.mxu0 0.0
    %2794 = vmatprep.subr.mxu0 0.0
    %2795 = vmatpush1.msra.mxu0 0.0
    %2796 = vmatprep.subr.mxu0 0.0
    %2797 = vmatpush1.msra.mxu0 0.0
    %2798 = vmatprep.subr.mxu0 0.0
    %2799 = vmatpush1.msra.mxu0 0.0
    %2800 = vmatprep.subr.mxu0 0.0
    %2801 = vmatpush1.msra.mxu0 0.0
    %2802 = vmatprep.subr.mxu0 0.0
    %2803 = vmatpush1.msra.mxu0 0.0
    %2804 = vmatprep.subr.mxu0 0.0
    %2805 = vmatpush1.msra.mxu0 0.0
    %2806 = vmatprep.subr.mxu0 0.0
    %2807 = vmatpush1.msra.mxu0 0.0
    %2808 = vmatprep.subr.mxu0 0.0
    %2809 = vmatpush1.msra.mxu0 0.0
    %2810 = vmatprep.subr.mxu0 0.0
    %2811 = vmatpush1.msra.mxu0 0.0
    %2812 = vmatprep.subr.mxu0 0.0
    %2813 = vmatpush1.msra.mxu0 0.0
    %2814 = vmatprep.subr.mxu0 0.0
    %2815 = vmatpush1.msra.mxu0 0.0
    %2816 = vmatprep.subr.mxu0 0.0
    %2817 = vmatpush1.msra.mxu0 0.0
    %2818 = vmatprep.subr.mxu0 0.0
    %2819 = vmatpush1.msra.mxu0 0.0
    %2820 = vmatprep.subr.mxu0 0.0
    %2821 = vmatpush1.msra.mxu0 0.0
    %2822 = vmatprep.subr.mxu0 0.0
    %2823 = vmatpush1.msra.mxu0 0.0
    %2824 = vmatprep.subr.mxu0 0.0
    %2825 = vmatpush1.msra.mxu0 0.0
    %2826 = vmatprep.subr.mxu0 0.0
    %2827 = vmatpush1.msra.mxu0 0.0
    %2828 = vmatprep.subr.mxu0 0.0
    %2829 = vmatpush1.msra.mxu0 0.0
    %2830 = vmatprep.subr.mxu0 0.0
    %2831 = vmatpush1.msra.mxu0 0.0
    %2832 = vmatprep.subr.mxu0 0.0
    %2833 = vmatpush1.msra.mxu0 0.0
    %2834 = vmatprep.subr.mxu0 0.0
    %2835 = vmatpush1.msra.mxu0 0.0
    %2836 = vmatprep.subr.mxu0 0.0
    %2837 = vmatpush1.msra.mxu0 0.0
    %2838 = vmatprep.subr.mxu0 0.0
    %2839 = vmatpush1.msra.mxu0 0.0
    %2840 = vmatprep.subr.mxu0 0.0
    %2841 = vmatpush1.msra.mxu0 0.0
    %2842 = vmatprep.mubr.f32.mxu0 0.0
    %2843 = vmatmul.mubr.f32.gmra.mrb[0].mxu0 %v2767
    %v2844 = vpop.f32.mrb[0].mxu0
    %v2845 = vadd.f32 %v2765, %v2844
    %v2846 = vpop.f32.mrb[0].mxu0
    %2847 = vmatprep.mubr.f32.mxu0 0.0
    %2848 = vmatmul.mubr.f32.gmra.mrb[0].mxu0 %v2770
    %v2849 = vpop.f32.mrb[0].mxu0
    %v2850 = vadd.f32 %v2765, %v2849
    %v2851 = vpop.f32.mrb[0].mxu0
    %2852 = vmatprep.mubr.f32.mxu0 0.0
    %2853 = vmatmul.mubr.f32.gmra.mrb[0].mxu0 %v2773
    %v2854 = vpop.f32.mrb[0].mxu0
    %v2855 = vadd.f32 %v2765, %v2854
    %v2856 = vpop.f32.mrb[0].mxu0
    %2857 = vmatprep.mubr.f32.mxu0 0.0
    %2858 = vmatmul.mubr.f32.gmra.mrb[0].mxu0 %v2776
    %v2859 = vpop.f32.mrb[0].mxu0
    %v2860 = vadd.f32 %v2765, %v2859
    %v2861 = vpop.f32.mrb[0].mxu0
    %2862 = vdwg.mxu0
    %v2863 = vmul.f32 %v2845, 0.5
    %v2864 = vmul.f32 %v2850, 0.5
    %v2865 = vmul.f32 %v2855, 0.5
    %v2866 = vmul.f32 %v2860, 0.5
    %v2867 = vmul.f32 %v2845, 0.70710677
    %v2868 = vmul.f32 %v2850, 0.70710677
    %v2869 = vmul.f32 %v2855, 0.70710677
    %v2870 = vmul.f32 %v2860, 0.70710677
    %v2871 = vand.u32 2147483647, %v2867
    %v2872 = vand.u32 2147483647, %v2868
    %v2873 = vand.u32 2147483647, %v2869
    %v2874 = vand.u32 2147483647, %v2870
    %v2875 = vmul.f32 %v2871, 0.3275911
    %v2876 = vmul.f32 %v2872, 0.3275911
    %v2877 = vmul.f32 %v2873, 0.3275911
    %v2878 = vmul.f32 %v2874, 0.3275911
    %v2879 = vadd.f32 %v2875, 1.0
    %v2880 = vadd.f32 %v2876, 1.0
    %v2881 = vadd.f32 %v2877, 1.0
    %v2882 = vadd.f32 %v2878, 1.0
    %v2883 = vrcp.pop %v2879
    %v2884 = vmul.f32 1.0, %v2883
    %v2885 = vrcp.pop %v2880
    %v2886 = vmul.f32 1.0, %v2885
    %v2887 = vrcp.pop %v2881
    %v2888 = vmul.f32 1.0, %v2887
    %v2889 = vrcp.pop %v2882
    %v2890 = vmul.f32 1.0, %v2889
    %v2891 = vmul.f32 %v2884, 1.0614054
    %v2892 = vmul.f32 %v2886, 1.0614054
    %v2893 = vmul.f32 %v2888, 1.0614054
    %v2894 = vmul.f32 %v2890, 1.0614054
    %v2895 = vadd.f32 %v2891, -1.4531521
    %v2896 = vadd.f32 %v2892, -1.4531521
    %v2897 = vadd.f32 %v2893, -1.4531521
    %v2898 = vadd.f32 %v2894, -1.4531521
    %v2899 = vmul.f32 %v2895, %v2884
    %v2900 = vmul.f32 %v2896, %v2886
    %v2901 = vmul.f32 %v2897, %v2888
    %v2902 = vmul.f32 %v2898, %v2890
    %v2903 = vadd.f32 %v2899, 1.4214138
    %v2904 = vadd.f32 %v2900, 1.4214138
    %v2905 = vadd.f32 %v2901, 1.4214138
    %v2906 = vadd.f32 %v2902, 1.4214138
    %v2907 = vmul.f32 %v2903, %v2884
    %v2908 = vmul.f32 %v2904, %v2886
    %v2909 = vmul.f32 %v2905, %v2888
    %v2910 = vmul.f32 %v2906, %v2890
    %v2911 = vadd.f32 %v2907, -0.28449672
    %v2912 = vadd.f32 %v2908, -0.28449672
    %v2913 = vadd.f32 %v2909, -0.28449672
    %v2914 = vadd.f32 %v2910, -0.28449672
    %v2915 = vmul.f32 %v2911, %v2884
    %v2916 = vmul.f32 %v2912, %v2886
    %v2917 = vmul.f32 %v2913, %v2888
    %v2918 = vmul.f32 %v2914, %v2890
    %v2919 = vadd.f32 %v2915, 0.2548296
    %v2920 = vadd.f32 %v2916, 0.2548296
    %v2921 = vadd.f32 %v2917, 0.2548296
    %v2922 = vadd.f32 %v2918, 0.2548296
    %v2923 = vmul.f32 %v2919, %v2884
    %v2924 = vmul.f32 %v2920, %v2886
    %v2925 = vmul.f32 %v2921, %v2888
    %v2926 = vmul.f32 %v2922, %v2890
    %v2927 = vsub.f32 0.0, %v2871
    %v2928 = vsub.f32 0.0, %v2872
    %v2929 = vsub.f32 0.0, %v2873
    %v2930 = vsub.f32 0.0, %v2874
    %v2931 = vmul.f32 %v2927, %v2871
    %v2932 = vmul.f32 %v2928, %v2872
    %v2933 = vmul.f32 %v2929, %v2873
    %v2934 = vmul.f32 %v2930, %v2874
    %v2935 = vmul.f32 %v2931, 1.442695
    %v2936 = vpow.pop %v2935
    %v2937 = vmul.f32 %v2932, 1.442695
    %v2938 = vpow.pop %v2937
    %v2939 = vmul.f32 %v2933, 1.442695
    %v2940 = vpow.pop %v2939
    %v2941 = vmul.f32 %v2934, 1.442695
    %v2942 = vpow.pop %v2941
    %v2943 = vmul.f32 %v2923, %v2936
    %v2944 = vmul.f32 %v2924, %v2938
    %v2945 = vmul.f32 %v2925, %v2940
    %v2946 = vmul.f32 %v2926, %v2942
    %v2947 = vsub.f32 1.0, %v2943
    %v2948 = vsub.f32 1.0, %v2944
    %v2949 = vsub.f32 1.0, %v2945
    %v2950 = vsub.f32 1.0, %v2946
    %vm2951 = vcmp.ge.f32.partialorder %v2867, 0.0
    %vm2952 = vcmp.ge.f32.partialorder %v2868, 0.0
    %vm2953 = vcmp.ge.f32.partialorder %v2869, 0.0
    %vm2954 = vcmp.ge.f32.partialorder %v2870, 0.0
    %v2955 = vsub.f32 0.0, %v2947
    %v2956 = vsub.f32 0.0, %v2948
    %v2957 = vsub.f32 0.0, %v2949
    %v2958 = vsub.f32 0.0, %v2950
    %v2959 = vsel %vm2951, %v2947, %v2955
    %v2960 = vsel %vm2952, %v2948, %v2956
    %v2961 = vsel %vm2953, %v2949, %v2957
    %v2962 = vsel %vm2954, %v2950, %v2958
    %v2963 = vadd.f32 %v2959, 1.0
    %v2964 = vadd.f32 %v2960, 1.0
    %v2965 = vadd.f32 %v2961, 1.0
    %v2966 = vadd.f32 %v2962, 1.0
    %v2967 = vmul.f32 %v2863, %v2963
    %v2968 = vmul.f32 %v2864, %v2964
    %v2969 = vmul.f32 %v2865, %v2965
    %v2970 = vmul.f32 %v2866, %v2966
    %v2971 = vld [vmem:[#allocation5 + $0x1a0] sm:$0xff]
    %v2972 = vld [vmem:[#allocation5 + $0x1a8] sm:$0xff]
    %v2973 = vld [vmem:[#allocation5 + $0x1b0] sm:$0xff]
    %v2974 = vld [vmem:[#allocation5 + $0x1b8] sm:$0xff]
    %v2975 = vld [vmem:[#allocation5 + $0x1c0] sm:$0xff]
    %v2976 = vld [vmem:[#allocation5 + $0x1c8] sm:$0xff]
    %v2977 = vld [vmem:[#allocation5 + $0x1d0] sm:$0xff]
    %v2978 = vld [vmem:[#allocation5 + $0x1d8] sm:$0xff]
    %v2979 = vld [vmem:[#allocation5 + $0x1e0] sm:$0xff]
    %v2980 = vld [vmem:[#allocation5 + $0x1e8] sm:$0xff]
    %v2981 = vld [vmem:[#allocation5 + $0x1f0] sm:$0xff]
    %v2982 = vld [vmem:[#allocation5 + $0x1f8] sm:$0xff]
    %v2983 = vld [vmem:[#allocation5 + $0x200] sm:$0xff]
    %v2984 = vld [vmem:[#allocation5 + $0x208] sm:$0xff]
    %v2985 = vld [vmem:[#allocation5 + $0x210] sm:$0xff]
    %v2986 = vld [vmem:[#allocation5 + $0x218] sm:$0xff]
    %2987 = vmatprep.subr.mxu0 0.0
    %2988 = vmatpush1.msra.mxu0 %v2971
    %2989 = vmatprep.subr.mxu0 0.0
    %2990 = vmatpush1.msra.mxu0 %v2972
    %2991 = vmatprep.subr.mxu0 0.0
    %2992 = vmatpush1.msra.mxu0 %v2973
    %2993 = vmatprep.subr.mxu0 0.0
    %2994 = vmatpush1.msra.mxu0 %v2974
    %2995 = vmatprep.subr.mxu0 0.0
    %2996 = vmatpush1.msra.mxu0 %v2975
    %2997 = vmatprep.subr.mxu0 0.0
    %2998 = vmatpush1.msra.mxu0 %v2976
    %2999 = vmatprep.subr.mxu0 0.0
    %3000 = vmatpush1.msra.mxu0 %v2977
    %3001 = vmatprep.subr.mxu0 0.0
    %3002 = vmatpush1.msra.mxu0 %v2978
    %3003 = vmatprep.subr.mxu0 0.0
    %3004 = vmatpush1.msra.mxu0 %v2979
    %3005 = vmatprep.subr.mxu0 0.0
    %3006 = vmatpush1.msra.mxu0 %v2980
    %3007 = vmatprep.subr.mxu0 0.0
    %3008 = vmatpush1.msra.mxu0 %v2981
    %3009 = vmatprep.subr.mxu0 0.0
    %3010 = vmatpush1.msra.mxu0 %v2982
    %3011 = vmatprep.subr.mxu0 0.0
    %3012 = vmatpush1.msra.mxu0 %v2983
    %3013 = vmatprep.subr.mxu0 0.0
    %3014 = vmatpush1.msra.mxu0 %v2984
    %3015 = vmatprep.subr.mxu0 0.0
    %3016 = vmatpush1.msra.mxu0 %v2985
    %3017 = vmatprep.subr.mxu0 0.0
    %3018 = vmatpush1.msra.mxu0 %v2986
    %3019 = vmatprep.subr.mxu0 0.0
    %3020 = vmatpush1.msra.mxu0 0.0
    %3021 = vmatprep.subr.mxu0 0.0
    %3022 = vmatpush1.msra.mxu0 0.0
    %3023 = vmatprep.subr.mxu0 0.0
    %3024 = vmatpush1.msra.mxu0 0.0
    %3025 = vmatprep.subr.mxu0 0.0
    %3026 = vmatpush1.msra.mxu0 0.0
    %3027 = vmatprep.subr.mxu0 0.0
    %3028 = vmatpush1.msra.mxu0 0.0
    %3029 = vmatprep.subr.mxu0 0.0
    %3030 = vmatpush1.msra.mxu0 0.0
    %3031 = vmatprep.subr.mxu0 0.0
    %3032 = vmatpush1.msra.mxu0 0.0
    %3033 = vmatprep.subr.mxu0 0.0
    %3034 = vmatpush1.msra.mxu0 0.0
    %3035 = vmatprep.subr.mxu0 0.0
    %3036 = vmatpush1.msra.mxu0 0.0
    %3037 = vmatprep.subr.mxu0 0.0
    %3038 = vmatpush1.msra.mxu0 0.0
    %3039 = vmatprep.subr.mxu0 0.0
    %3040 = vmatpush1.msra.mxu0 0.0
    %3041 = vmatprep.subr.mxu0 0.0
    %3042 = vmatpush1.msra.mxu0 0.0
    %3043 = vmatprep.subr.mxu0 0.0
    %3044 = vmatpush1.msra.mxu0 0.0
    %3045 = vmatprep.subr.mxu0 0.0
    %3046 = vmatpush1.msra.mxu0 0.0
    %3047 = vmatprep.subr.mxu0 0.0
    %3048 = vmatpush1.msra.mxu0 0.0
    %3049 = vmatprep.subr.mxu0 0.0
    %3050 = vmatpush1.msra.mxu0 0.0
    %3051 = vmatprep.mubr.f32.mxu0 0.0
    %3052 = vmatmul.mubr.f32.gmra.mrb[0].mxu0 %v2967
    %v3053 = vpop.f32.mrb[0].mxu0
    %v3054 = vadd.f32 0.0, %v3053
    %v3055 = vpop.f32.mrb[0].mxu0
    %3056 = vmatprep.mubr.f32.mxu0 0.0
    %3057 = vmatmul.mubr.f32.gmra.mrb[0].mxu0 %v2968
    %v3058 = vpop.f32.mrb[0].mxu0
    %v3059 = vadd.f32 0.0, %v3058
    %v3060 = vpop.f32.mrb[0].mxu0
    %3061 = vmatprep.mubr.f32.mxu0 0.0
    %3062 = vmatmul.mubr.f32.gmra.mrb[0].mxu0 %v2969
    %v3063 = vpop.f32.mrb[0].mxu0
    %v3064 = vadd.f32 0.0, %v3063
    %v3065 = vpop.f32.mrb[0].mxu0
    %3066 = vmatprep.mubr.f32.mxu0 0.0
    %3067 = vmatmul.mubr.f32.gmra.mrb[0].mxu0 %v2970
    %v3068 = vpop.f32.mrb[0].mxu0
    %v3069 = vadd.f32 0.0, %v3068
    %v3070 = vpop.f32.mrb[0].mxu0
    %3071 = vdwg.mxu0
    %v3072 = vadd.f32 %v2683, %v3054
    %v3073 = vadd.f32 %v2684, %v3059
    %v3074 = vadd.f32 %v2685, %v3064
    %v3075 = vadd.f32 %v2686, %v3069
    %v3076 = vld [vmem:[#allocation5 + $0x30d] sm:$0x1]
    %v3077 = vlaneseq
    %v3078 = vshrl.u32 %v3077, 7
    %v3079 = vsub.s32 0, %v3078
    %v3080 = vrot.slane %v3076, %v3079
    %v3081 = vadd.f32 %v3072, %v3080
    %v3082 = vadd.f32 %v3073, %v3080
    %v3083 = vadd.f32 %v3074, %v3080
    %v3084 = vadd.f32 %v3075, %v3080
    %3085 = vst.msk [vmem:[#allocation7] sm:$0xff] %vm74, %v3081
    %3086 = vst.msk [vmem:[#allocation7 + $0x8] sm:$0xff] %vm74, %v3082
    %3087 = vst.msk [vmem:[#allocation7 + $0x10] sm:$0xff] %vm74, %v3083
    %3088 = vst.msk [vmem:[#allocation7 + $0x18] sm:$0xff] %vm74, %v3084
    // Predicated region
    $region18: #{conv_linformer_forward.1} parent=1 // pred_check
      _
    $region19: #{conv_linformer_forward.1} parent=1 // pred_check_branch
      %3090 = sbr.rel (0) target = $region21
    $region20: #{conv_linformer_forward.1} parent=1 // pred_region
      %s3092 = ssub.s32 512, 512
      %3093 = vsyncadd [#allocation4], %s3092
      %s3094 = sshll.u32 [#allocation7], 4
      %s3095 = int_to_ptr.vmem [resolvable:$true] %s3094
      %3100 = dma.vmem_to_hbm [thread:$0]  %s3095, 512, %s2, [#allocation4], 128, 128, 8
    $region21: #{conv_linformer_forward.1} parent=1 // pred_fallthru
      _
    // Predicated region
    $region22: #{conv_linformer_forward.1} parent=1 // pred_check
      _
    $region23: #{conv_linformer_forward.1} parent=1 // pred_check_branch
      %3102 = sbr.rel (0) target = $region25
    $region24: #{conv_linformer_forward.1} parent=1 // pred_region
      %3103 = dma.done [#allocation4], 512
    $region25: #{conv_linformer_forward.1} parent=1 // pred_fallthru
      _
    %3104 = vsyncpa [#allocation3], 1
    %3105 = vsyncpa [#allocation6], 1
    %3106 = vsyncpa [#allocation4], 1

</llo_original>
